<compile_context>
chip_gen: v7x
topology: tpu7x:2x2x1
jax: 0.10.0
libtpu: 0.0.40
codegen_flags: <defaults>
</compile_context>

<pallas_src>
import jax
import jax.numpy as jnp
from jax import lax
from jax.experimental import pallas as pl
from jax.experimental.pallas import tpu as pltpu

IN_DIM = 10000
H_DIM = 16
OUT_DIM = 1

# Max batch tile in f32 rows: 256 * 10000 * 4 B ~= 9.8 MiB per buffer,
# ~19.5 MiB double-buffered -- fits every generation (incl. v7x 64 MiB/TC)
# with the explicit vmem limit below.
MAX_TB = 256
# ~0.35 us per grid step expressed in "rows of x DMA" (40 KB/row @ ~1.4 TB/s).
_STEP_OVERHEAD_ROWS = 12


def _cdiv(a, b):
    return -(-a // b)


def _choose_batch_tile(B):
    """Rows of x per grid step.

    B <= MAX_TB: one full-array tile (tb == B): layout-legal for any B (block
    dims equal the full array dims), zero wasted DMA.
    B >  MAX_TB: tb must be a multiple of 128 so the lane-dense (1, tb) output
    blocks satisfy the (8,128) layout rule on a multi-tile grid.  Pick the
    candidate minimizing DMA'd rows (incl. partial-last-tile waste) plus
    per-step overhead; this always gives >= 2 tiles (v7x megacore split).
    """
    if B <= MAX_TB:
        return B
    best_tb, best_cost = None, None
    for cand in (128, 256):
        nt = _cdiv(B, cand)
        cost = nt * (cand + _STEP_OVERHEAD_ROWS)
        if best_cost is None or cost < best_cost:
            best_tb, best_cost = cand, cost
    return best_tb


def mlp_kernel(x_ref, w1_ref, b1_ref, w2_ref, b2_ref, w3t_ref, b3_ref, o_ref):
    # Layer 1: Linear(10000, 16) + ReLU.  Cast the streamed f32 tile to bf16
    # right before the MXU (in-kernel, so there is no extra HBM pass); f32
    # accumulation.  Cast + matmul are hidden under the x-tile DMA.
    x_bf16 = x_ref[...].astype(jnp.bfloat16)
    h = jnp.dot(x_bf16, w1_ref[...], preferred_element_type=jnp.float32)
    h = jnp.maximum(h + b1_ref[...], 0.0)                        # (tb, 16) f32
    # Layer 2: Linear(16, 16) + ReLU (tiny, f32).
    h = jnp.dot(h, w2_ref[...], preferred_element_type=jnp.float32)
    h = jnp.maximum(h + b2_ref[...], 0.0)                        # (tb, 16) f32
    # Layer 3: Linear(16, 1) + Sigmoid, emitted lane-dense as one (1, tb) row:
    # contract W3^T (1, 16) with h (tb, 16) over the 16-dim.
    z = lax.dot_general(w3t_ref[...], h, (((1,), (1,)), ((), ())),
                        preferred_element_type=jnp.float32)
    z = z + b3_ref[...]                                          # (1, tb) f32
    o_ref[...] = jax.nn.sigmoid(z).astype(o_ref.dtype)


def reference_classificator_forward(x, params):
    """x: [B, 10000] float32 -> [B, 1] float32."""
    w1, b1, w2, b2, w3, b3 = params
    B = x.shape[0]

    tb = _choose_batch_tile(B)
    num_tiles = _cdiv(B, tb)
    b_out = num_tiles * tb          # padded logical output length (>= B)

    # One-time tiny weight transforms only (x itself gets no wrapper-side pass).
    w1_bf16 = w1.astype(jnp.bfloat16)   # 10000x16 bf16, ~0.3 MiB resident
    w3t = w3.T                          # (1, 16) for the lane-dense final layer

    in_specs = [
        pl.BlockSpec((tb, IN_DIM), lambda i: (i, 0)),      # x: streamed f32 per tile
        pl.BlockSpec((IN_DIM, H_DIM), lambda i: (0, 0)),   # W1 (bf16): resident
        pl.BlockSpec((1, H_DIM), lambda i: (0, 0)),        # b1
        pl.BlockSpec((H_DIM, H_DIM), lambda i: (0, 0)),    # W2
        pl.BlockSpec((1, H_DIM), lambda i: (0, 0)),        # b2
        pl.BlockSpec((1, H_DIM), lambda i: (0, 0)),        # W3^T
        pl.BlockSpec((1, OUT_DIM), lambda i: (0, 0)),      # b3
    ]
    out_specs = pl.BlockSpec((1, tb), lambda i: (0, i))    # lane-dense output row

    out_row = pl.pallas_call(
        mlp_kernel,
        out_shape=jax.ShapeDtypeStruct((1, b_out), jnp.float32),
        grid_spec=pl.GridSpec(
            grid=(num_tiles,),
            in_specs=in_specs,
            out_specs=out_specs,
        ),
        compiler_params=pltpu.CompilerParams(
            dimension_semantics=("parallel",),
            # Worst-case usage ~25 MiB (x f32 double-buffered + in-kernel bf16
            # copy + resident weights): above v5e's 16 MiB default scoped
            # limit, well under v7x's 64 MiB/TC physical VMEM.
            vmem_limit_bytes=40 * 1024 * 1024,
        ),
    )(x, w1_bf16, b1, w2, b2, w3t, b3)

    # Drop the (<= tb-1) rows that came from the partial last tile; the output
    # is only 4 bytes/row, so this slice is negligible HBM traffic.
    return out_row[0, :B].reshape(B, OUT_DIM)


def init_params(key):
    """Deterministic init matching the nn.Linear shapes (stored as [in, out])."""
    ks = jax.random.split(key, 6)

    def lin(kw, kb, fan_in, fan_out):
        # torch.nn.Linear default: U(-1/sqrt(fan_in), 1/sqrt(fan_in))
        bound = 1.0 / jnp.sqrt(float(fan_in))
        w = jax.random.uniform(kw, (fan_in, fan_out), jnp.float32, -bound, bound)
        b = jax.random.uniform(kb, (1, fan_out), jnp.float32, -bound, bound)
        return w, b

    w1, b1 = lin(ks[0], ks[1], IN_DIM, H_DIM)
    w2, b2 = lin(ks[2], ks[3], H_DIM, H_DIM)
    w3, b3 = lin(ks[4], ks[5], H_DIM, OUT_DIM)
    return (w1, b1, w2, b2, w3, b3)


def reference_forward_jax(x, params, match_kernel_dtypes=True):
    """Pure-JAX reference. match_kernel_dtypes=True mirrors the kernel's bf16 layer-1."""
    w1, b1, w2, b2, w3, b3 = params
    if match_kernel_dtypes:
        h = jnp.dot(x.astype(jnp.bfloat16), w1.astype(jnp.bfloat16),
                    preferred_element_type=jnp.float32)
    else:
        h = x @ w1
    h = jnp.maximum(h + b1, 0.0)
    h = jnp.maximum(h @ w2 + b2, 0.0)
    return jax.nn.sigmoid(h @ w3 + b3)


if __name__ == "__main__":
    key = jax.random.PRNGKey(0)
    kx, kp = jax.random.split(key)
    params = init_params(kp)

    # Small case: single full-array tile (tb == B), zero padding / waste.
    B = 8
    x = jax.random.normal(kx, (B, IN_DIM), jnp.float32)
    out = jax.block_until_ready(reference_classificator_forward(x, params))
    assert out.shape == (B, OUT_DIM)

    ref_bf16 = reference_forward_jax(x, params, match_kernel_dtypes=True)
    assert jnp.allclose(out, ref_bf16, atol=2e-3), "mismatch vs bf16-matched reference"
    ref_f32 = reference_forward_jax(x, params, match_kernel_dtypes=False)
    assert jnp.allclose(out, ref_f32, atol=3e-2), "mismatch vs f32 reference"

    # Multi-tile case: 3 tiles of 128 rows, partial last block (no jnp.pad pass),
    # exercises the >=2-tile grid used by v7x megacore.
    B2 = 300
    x2 = jax.random.normal(jax.random.PRNGKey(1), (B2, IN_DIM), jnp.float32)
    out2 = jax.block_until_ready(reference_classificator_forward(x2, params))
    assert out2.shape == (B2, OUT_DIM)
    ref2 = reference_forward_jax(x2, params, match_kernel_dtypes=True)
    assert jnp.allclose(out2, ref2, atol=2e-3), "multi-tile mismatch vs reference"

    print("KERNEL_OK")
</pallas_src>

<mosaic_0001>
module attributes {stable_mosaic.version = 11 : i64} {
  func.func @mlp_kernel(%arg0: i32, %arg1: memref<8x10000xf32, #tpu.memory_space<vmem>>, %arg2: memref<10000x16xbf16, #tpu.memory_space<vmem>>, %arg3: memref<1x16xf32, #tpu.memory_space<vmem>>, %arg4: memref<16x16xf32, #tpu.memory_space<vmem>>, %arg5: memref<1x16xf32, #tpu.memory_space<vmem>>, %arg6: memref<1x16xf32, #tpu.memory_space<vmem>>, %arg7: memref<1x1xf32, #tpu.memory_space<vmem>>, %arg8: memref<1x8xf32, #tpu.memory_space<vmem>>) attributes {dimension_semantics = [#tpu.dimension_semantics<parallel>], iteration_bounds = array<i64: 1>, scalar_prefetch = 0 : i64, scratch_operands = 0 : i64, tpu.core_type = #tpu.core_type<tc>, window_params = [{transform_indices = @transform_0, window_bounds = array<i64: 8, 10000>}, {pipeline_mode = #tpu.pipeline_mode<synchronous>, transform_indices = @transform_1, window_bounds = array<i64: 10000, 16>}, {pipeline_mode = #tpu.pipeline_mode<synchronous>, transform_indices = @transform_2, window_bounds = array<i64: 1, 16>}, {pipeline_mode = #tpu.pipeline_mode<synchronous>, transform_indices = @transform_3, window_bounds = array<i64: 16, 16>}, {pipeline_mode = #tpu.pipeline_mode<synchronous>, transform_indices = @transform_4, window_bounds = array<i64: 1, 16>}, {pipeline_mode = #tpu.pipeline_mode<synchronous>, transform_indices = @transform_5, window_bounds = array<i64: 1, 16>}, {pipeline_mode = #tpu.pipeline_mode<synchronous>, transform_indices = @transform_6, window_bounds = array<i64: 1, 1>}, {transform_indices = @transform_7, window_bounds = array<i64: 1, 8>}]} {
    %c0 = arith.constant 0 : index
    %c0_0 = arith.constant 0 : index
    %0 = vector.load %arg1[%c0, %c0_0] : memref<8x10000xf32, #tpu.memory_space<vmem>>, vector<8x10000xf32>
    %1 = arith.truncf %0 : vector<8x10000xf32> to vector<8x10000xbf16>
    %c0_1 = arith.constant 0 : index
    %c0_2 = arith.constant 0 : index
    %2 = vector.load %arg2[%c0_1, %c0_2] : memref<10000x16xbf16, #tpu.memory_space<vmem>>, vector<10000x16xbf16>
    %cst = arith.constant dense<0.000000e+00> : vector<8x16xf32>
    %3 = tpu.matmul %1, %2, %cst {dimension_numbers = #tpu.dot_dimension_numbers<[1], [0], [0], [1], [0, 0, 1, 1], [], []>} : vector<8x10000xbf16>, vector<10000x16xbf16>, vector<8x16xf32> -> vector<8x16xf32>
    %c0_3 = arith.constant 0 : index
    %c0_4 = arith.constant 0 : index
    %4 = vector.load %arg3[%c0_3, %c0_4] : memref<1x16xf32, #tpu.memory_space<vmem>>, vector<1x16xf32>
    %5 = vector.broadcast %4 : vector<1x16xf32> to vector<8x16xf32>
    %6 = arith.addf %3, %5 : vector<8x16xf32>
    %cst_5 = arith.constant 0.000000e+00 : f32
    %7 = vector.broadcast %cst_5 : f32 to vector<8x16xf32>
    %8 = arith.maximumf %6, %7 : vector<8x16xf32>
    %c0_6 = arith.constant 0 : index
    %c0_7 = arith.constant 0 : index
    %9 = vector.load %arg4[%c0_6, %c0_7] : memref<16x16xf32, #tpu.memory_space<vmem>>, vector<16x16xf32>
    %cst_8 = arith.constant dense<0.000000e+00> : vector<8x16xf32>
    %10 = tpu.matmul %8, %9, %cst_8 {dimension_numbers = #tpu.dot_dimension_numbers<[1], [0], [0], [1], [0, 0, 1, 1], [], []>} : vector<8x16xf32>, vector<16x16xf32>, vector<8x16xf32> -> vector<8x16xf32>
    %c0_9 = arith.constant 0 : index
    %c0_10 = arith.constant 0 : index
    %11 = vector.load %arg5[%c0_9, %c0_10] : memref<1x16xf32, #tpu.memory_space<vmem>>, vector<1x16xf32>
    %12 = vector.broadcast %11 : vector<1x16xf32> to vector<8x16xf32>
    %13 = arith.addf %10, %12 : vector<8x16xf32>
    %cst_11 = arith.constant 0.000000e+00 : f32
    %14 = vector.broadcast %cst_11 : f32 to vector<8x16xf32>
    %15 = arith.maximumf %13, %14 : vector<8x16xf32>
    %c0_12 = arith.constant 0 : index
    %c0_13 = arith.constant 0 : index
    %16 = vector.load %arg6[%c0_12, %c0_13] : memref<1x16xf32, #tpu.memory_space<vmem>>, vector<1x16xf32>
    %cst_14 = arith.constant dense<0.000000e+00> : vector<1x8xf32>
    %17 = tpu.matmul %16, %15, %cst_14 {dimension_numbers = #tpu.dot_dimension_numbers<[1], [1], [0], [0], [0, 0, 1, 0], [], []>} : vector<1x16xf32>, vector<8x16xf32>, vector<1x8xf32> -> vector<1x8xf32>
    %c0_15 = arith.constant 0 : index
    %c0_16 = arith.constant 0 : index
    %18 = vector.load %arg7[%c0_15, %c0_16] : memref<1x1xf32, #tpu.memory_space<vmem>>, vector<1x1xf32>
    %19 = vector.broadcast %18 : vector<1x1xf32> to vector<1x8xf32>
    %20 = arith.addf %17, %19 : vector<1x8xf32>
    %21 = arith.negf %20 : vector<1x8xf32>
    %22 = math.exp %21 : vector<1x8xf32>
    %cst_17 = arith.constant 1.000000e+00 : f32
    %23 = vector.broadcast %cst_17 : f32 to vector<1x8xf32>
    %24 = arith.addf %23, %22 : vector<1x8xf32>
    %25 = arith.divf %23, %24 : vector<1x8xf32>
    %c0_18 = arith.constant 0 : index
    %c0_19 = arith.constant 0 : index
    %26 = vector.load %arg8[%c0_18, %c0_19] : memref<1x8xf32, #tpu.memory_space<vmem>>, vector<1x8xf32>
    tpu.vector_store %arg8[%c0_18, %c0_19], %25 {strides = array<i32>} : memref<1x8xf32, #tpu.memory_space<vmem>>, vector<1x8xf32>,
    return
  }
  func.func @transform_0(%arg0: i32) -> (i32, i32) {
    %c0_i32 = arith.constant 0 : i32
    %c0_i32_0 = arith.constant 0 : i32
    return %arg0, %c0_i32 : i32, i32
  }
  func.func @transform_1(%arg0: i32) -> (i32, i32) {
    %c0_i32 = arith.constant 0 : i32
    %c0_i32_0 = arith.constant 0 : i32
    %c0_i32_1 = arith.constant 0 : i32
    return %c0_i32, %c0_i32_0 : i32, i32
  }
  func.func @transform_2(%arg0: i32) -> (i32, i32) {
    %c0_i32 = arith.constant 0 : i32
    %c0_i32_0 = arith.constant 0 : i32
    %c0_i32_1 = arith.constant 0 : i32
    return %c0_i32, %c0_i32_0 : i32, i32
  }
  func.func @transform_3(%arg0: i32) -> (i32, i32) {
    %c0_i32 = arith.constant 0 : i32
    %c0_i32_0 = arith.constant 0 : i32
    %c0_i32_1 = arith.constant 0 : i32
    return %c0_i32, %c0_i32_0 : i32, i32
  }
  func.func @transform_4(%arg0: i32) -> (i32, i32) {
    %c0_i32 = arith.constant 0 : i32
    %c0_i32_0 = arith.constant 0 : i32
    %c0_i32_1 = arith.constant 0 : i32
    return %c0_i32, %c0_i32_0 : i32, i32
  }
  func.func @transform_5(%arg0: i32) -> (i32, i32) {
    %c0_i32 = arith.constant 0 : i32
    %c0_i32_0 = arith.constant 0 : i32
    %c0_i32_1 = arith.constant 0 : i32
    return %c0_i32, %c0_i32_0 : i32, i32
  }
  func.func @transform_6(%arg0: i32) -> (i32, i32) {
    %c0_i32 = arith.constant 0 : i32
    %c0_i32_0 = arith.constant 0 : i32
    %c0_i32_1 = arith.constant 0 : i32
    return %c0_i32, %c0_i32_0 : i32, i32
  }
  func.func @transform_7(%arg0: i32) -> (i32, i32) {
    %c0_i32 = arith.constant 0 : i32
    %c0_i32_0 = arith.constant 0 : i32
    return %c0_i32, %arg0 : i32, i32
  }
}

</mosaic_0001>

<llo_original>
// kernel: tpu_custom_call.1
$region0: #{tpu_custom_call.1}
  #allocation0 [shape = 'u32[]', space=smem, size = 0x4, offset = 0x4, fixed_abs, tag = 'smem constant byte address 0x4 - core index']
  #allocation1 [shape = 'u32[144,128]{1,0:T(1,128)}', space=vmem, size = 0x12000, scoped, tag = 'internal scratch']
  #allocation2 [shape = 'f32[1,1]{1,0:T(1,128)S(1)}', space=vmem, size = 0x200, scoped, tag = 'scoped memory for tpu_custom_call.1']
  %s0 = inlined_call_operand.vmem [shape: f32[8,10000], index: 0, kind: input, shape index: {}]
  %s1 = inlined_call_operand.vmem [shape: bf16[10000,16], index: 1, kind: input, shape index: {}]
  %s2 = inlined_call_operand.vmem [shape: f32[1,16], index: 2, kind: input, shape index: {}]
  %s3 = inlined_call_operand.vmem [shape: f32[16,16], index: 3, kind: input, shape index: {}]
  %s4 = inlined_call_operand.vmem [shape: f32[1,16], index: 4, kind: input, shape index: {}]
  %s5 = inlined_call_operand.vmem [shape: f32[1,16], index: 5, kind: input, shape index: {}]
  %s6 = inlined_call_operand.<no memory space> [shape: f32[1,1], index: 6, kind: input, shape index: {}]
  %s7 = inlined_call_operand.hbm [shape: f32[1,8], index: 7, kind: output, shape index: {}]
  %s8 = sld [smem:[#allocation0]]
  $region38: #{tpu_custom_call.1} parent=0
    _
  %s10 = ssub.s32 1, %s8
  %s11 = scalar_select 0, %s10, %s8
  %v12 = vstv %s6
  %13 = vst [vmem:[#allocation2] sm:$0x1] %v12
  $region1: #{tpu_custom_call.1} parent=0
    #allocation3 [shape = 'u8[512]{0}', space=vmem, size = 0x400, scoped, tag = 'output window, operand 0, single buffered']
    #allocation4 [shape = 's32[1]{0}', space=sflag, size = 0x4, scoped, tag = 'scoped memory for tpu_custom_call.1']
    %14 = vsyncpa [#allocation4], 0
    // Predicated region
    $region2: #{tpu_custom_call.1} parent=1 // pred_check
      _
    $region3: #{tpu_custom_call.1} parent=1 // pred_check_branch
      %16 = sbr.rel (0) target = $region5
    $region4: #{tpu_custom_call.1} parent=1 // pred_region
      _
    $region5: #{tpu_custom_call.1} parent=1 // pred_fallthru
      _
    // Predicated region
    $region6: #{tpu_custom_call.1} parent=1 // pred_check
      _
    $region7: #{tpu_custom_call.1} parent=1 // pred_check_branch
      %18 = sbr.rel (0) target = $region9
    $region8: #{tpu_custom_call.1} parent=1 // pred_region
      _
    $region9: #{tpu_custom_call.1} parent=1 // pred_fallthru
      _
    // Predicated region
    $region10: #{tpu_custom_call.1} parent=1 // pred_check
      _
    $region11: #{tpu_custom_call.1} parent=1 // pred_check_branch
      %20 = sbr.rel (0) target = $region13
    $region12: #{tpu_custom_call.1} parent=1 // pred_region
      _
    $region13: #{tpu_custom_call.1} parent=1 // pred_fallthru
      _
    // Predicated region
    $region14: #{tpu_custom_call.1} parent=1 // pred_check
      _
    $region15: #{tpu_custom_call.1} parent=1 // pred_check_branch
      %22 = sbr.rel (0) target = $region17
    $region16: #{tpu_custom_call.1} parent=1 // pred_region
      _
    $region17: #{tpu_custom_call.1} parent=1 // pred_fallthru
      _
    // Predicated region
    $region18: #{tpu_custom_call.1} parent=1 // pred_check
      _
    $region19: #{tpu_custom_call.1} parent=1 // pred_check_branch
      %24 = sbr.rel (0) target = $region21
    $region20: #{tpu_custom_call.1} parent=1 // pred_region
      _
    $region21: #{tpu_custom_call.1} parent=1 // pred_fallthru
      _
    // Predicated region
    $region22: #{tpu_custom_call.1} parent=1 // pred_check
      _
    $region23: #{tpu_custom_call.1} parent=1 // pred_check_branch
      %26 = sbr.rel (0) target = $region25
    $region24: #{tpu_custom_call.1} parent=1 // pred_region
      _
    $region25: #{tpu_custom_call.1} parent=1 // pred_fallthru
      _
    // Predicated region
    $region26: #{tpu_custom_call.1} parent=1 // pred_check
      _
    $region27: #{tpu_custom_call.1} parent=1 // pred_check_branch
      %28 = sbr.rel (0) target = $region29
    $region28: #{tpu_custom_call.1} parent=1 // pred_region
      _
    $region29: #{tpu_custom_call.1} parent=1 // pred_fallthru
      _
    %v30 = vld [vmem:[%s0] sm:$0xff]
    %v31 = vld [vmem:[%s0 + $0x8] sm:$0xff]
    %v32 = vld [vmem:[%s0 + $0x10] sm:$0xff]
    %v33 = vld [vmem:[%s0 + $0x18] sm:$0xff]
    %v34 = vld [vmem:[%s0 + $0x20] sm:$0xff]
    %v35 = vld [vmem:[%s0 + $0x28] sm:$0xff]
    %v36 = vld [vmem:[%s0 + $0x30] sm:$0xff]
    %v37 = vld [vmem:[%s0 + $0x38] sm:$0xff]
    %v38 = vld [vmem:[%s0 + $0x40] sm:$0xff]
    %v39 = vld [vmem:[%s0 + $0x48] sm:$0xff]
    %v40 = vld [vmem:[%s0 + $0x50] sm:$0xff]
    %v41 = vld [vmem:[%s0 + $0x58] sm:$0xff]
    %v42 = vld [vmem:[%s0 + $0x60] sm:$0xff]
    %v43 = vld [vmem:[%s0 + $0x68] sm:$0xff]
    %v44 = vld [vmem:[%s0 + $0x70] sm:$0xff]
    %v45 = vld [vmem:[%s0 + $0x78] sm:$0xff]
    %v46 = vld [vmem:[%s0 + $0x80] sm:$0xff]
    %v47 = vld [vmem:[%s0 + $0x88] sm:$0xff]
    %v48 = vld [vmem:[%s0 + $0x90] sm:$0xff]
    %v49 = vld [vmem:[%s0 + $0x98] sm:$0xff]
    %v50 = vld [vmem:[%s0 + $0xa0] sm:$0xff]
    %v51 = vld [vmem:[%s0 + $0xa8] sm:$0xff]
    %v52 = vld [vmem:[%s0 + $0xb0] sm:$0xff]
    %v53 = vld [vmem:[%s0 + $0xb8] sm:$0xff]
    %v54 = vld [vmem:[%s0 + $0xc0] sm:$0xff]
    %v55 = vld [vmem:[%s0 + $0xc8] sm:$0xff]
    %v56 = vld [vmem:[%s0 + $0xd0] sm:$0xff]
    %v57 = vld [vmem:[%s0 + $0xd8] sm:$0xff]
    %v58 = vld [vmem:[%s0 + $0xe0] sm:$0xff]
    %v59 = vld [vmem:[%s0 + $0xe8] sm:$0xff]
    %v60 = vld [vmem:[%s0 + $0xf0] sm:$0xff]
    %v61 = vld [vmem:[%s0 + $0xf8] sm:$0xff]
    %v62 = vld [vmem:[%s0 + $0x100] sm:$0xff]
    %v63 = vld [vmem:[%s0 + $0x108] sm:$0xff]
    %v64 = vld [vmem:[%s0 + $0x110] sm:$0xff]
    %v65 = vld [vmem:[%s0 + $0x118] sm:$0xff]
    %v66 = vld [vmem:[%s0 + $0x120] sm:$0xff]
    %v67 = vld [vmem:[%s0 + $0x128] sm:$0xff]
    %v68 = vld [vmem:[%s0 + $0x130] sm:$0xff]
    %v69 = vld [vmem:[%s0 + $0x138] sm:$0xff]
    %v70 = vld [vmem:[%s0 + $0x140] sm:$0xff]
    %v71 = vld [vmem:[%s0 + $0x148] sm:$0xff]
    %v72 = vld [vmem:[%s0 + $0x150] sm:$0xff]
    %v73 = vld [vmem:[%s0 + $0x158] sm:$0xff]
    %v74 = vld [vmem:[%s0 + $0x160] sm:$0xff]
    %v75 = vld [vmem:[%s0 + $0x168] sm:$0xff]
    %v76 = vld [vmem:[%s0 + $0x170] sm:$0xff]
    %v77 = vld [vmem:[%s0 + $0x178] sm:$0xff]
    %v78 = vld [vmem:[%s0 + $0x180] sm:$0xff]
    %v79 = vld [vmem:[%s0 + $0x188] sm:$0xff]
    %v80 = vld [vmem:[%s0 + $0x190] sm:$0xff]
    %v81 = vld [vmem:[%s0 + $0x198] sm:$0xff]
    %v82 = vld [vmem:[%s0 + $0x1a0] sm:$0xff]
    %v83 = vld [vmem:[%s0 + $0x1a8] sm:$0xff]
    %v84 = vld [vmem:[%s0 + $0x1b0] sm:$0xff]
    %v85 = vld [vmem:[%s0 + $0x1b8] sm:$0xff]
    %v86 = vld [vmem:[%s0 + $0x1c0] sm:$0xff]
    %v87 = vld [vmem:[%s0 + $0x1c8] sm:$0xff]
    %v88 = vld [vmem:[%s0 + $0x1d0] sm:$0xff]
    %v89 = vld [vmem:[%s0 + $0x1d8] sm:$0xff]
    %v90 = vld [vmem:[%s0 + $0x1e0] sm:$0xff]
    %v91 = vld [vmem:[%s0 + $0x1e8] sm:$0xff]
    %v92 = vld [vmem:[%s0 + $0x1f0] sm:$0xff]
    %v93 = vld [vmem:[%s0 + $0x1f8] sm:$0xff]
    %v94 = vld [vmem:[%s0 + $0x200] sm:$0xff]
    %v95 = vld [vmem:[%s0 + $0x208] sm:$0xff]
    %v96 = vld [vmem:[%s0 + $0x210] sm:$0xff]
    %v97 = vld [vmem:[%s0 + $0x218] sm:$0xff]
    %v98 = vld [vmem:[%s0 + $0x220] sm:$0xff]
    %v99 = vld [vmem:[%s0 + $0x228] sm:$0xff]
    %v100 = vld [vmem:[%s0 + $0x230] sm:$0xff]
    %v101 = vld [vmem:[%s0 + $0x238] sm:$0xff]
    %v102 = vld [vmem:[%s0 + $0x240] sm:$0xff]
    %v103 = vld [vmem:[%s0 + $0x248] sm:$0xff]
    %v104 = vld [vmem:[%s0 + $0x250] sm:$0xff]
    %v105 = vld [vmem:[%s0 + $0x258] sm:$0xff]
    %v106 = vld [vmem:[%s0 + $0x260] sm:$0xff]
    %v107 = vld [vmem:[%s0 + $0x268] sm:$0xff]
    %v108 = vld [vmem:[%s0 + $0x270] sm:$0xff]
    %v109 = vpack.c.bf16 %v30, %v30
    %v110 = vpack.c.bf16 %v31, %v31
    %v111 = vpack.c.bf16 %v32, %v32
    %v112 = vpack.c.bf16 %v33, %v33
    %v113 = vpack.c.bf16 %v34, %v34
    %v114 = vpack.c.bf16 %v35, %v35
    %v115 = vpack.c.bf16 %v36, %v36
    %v116 = vpack.c.bf16 %v37, %v37
    %v117 = vpack.c.bf16 %v38, %v38
    %v118 = vpack.c.bf16 %v39, %v39
    %v119 = vpack.c.bf16 %v40, %v40
    %v120 = vpack.c.bf16 %v41, %v41
    %v121 = vpack.c.bf16 %v42, %v42
    %v122 = vpack.c.bf16 %v43, %v43
    %v123 = vpack.c.bf16 %v44, %v44
    %v124 = vpack.c.bf16 %v45, %v45
    %v125 = vpack.c.bf16 %v46, %v46
    %v126 = vpack.c.bf16 %v47, %v47
    %v127 = vpack.c.bf16 %v48, %v48
    %v128 = vpack.c.bf16 %v49, %v49
    %v129 = vpack.c.bf16 %v50, %v50
    %v130 = vpack.c.bf16 %v51, %v51
    %v131 = vpack.c.bf16 %v52, %v52
    %v132 = vpack.c.bf16 %v53, %v53
    %v133 = vpack.c.bf16 %v54, %v54
    %v134 = vpack.c.bf16 %v55, %v55
    %v135 = vpack.c.bf16 %v56, %v56
    %v136 = vpack.c.bf16 %v57, %v57
    %v137 = vpack.c.bf16 %v58, %v58
    %v138 = vpack.c.bf16 %v59, %v59
    %v139 = vpack.c.bf16 %v60, %v60
    %v140 = vpack.c.bf16 %v61, %v61
    %v141 = vpack.c.bf16 %v62, %v62
    %v142 = vpack.c.bf16 %v63, %v63
    %v143 = vpack.c.bf16 %v64, %v64
    %v144 = vpack.c.bf16 %v65, %v65
    %v145 = vpack.c.bf16 %v66, %v66
    %v146 = vpack.c.bf16 %v67, %v67
    %v147 = vpack.c.bf16 %v68, %v68
    %v148 = vpack.c.bf16 %v69, %v69
    %v149 = vpack.c.bf16 %v70, %v70
    %v150 = vpack.c.bf16 %v71, %v71
    %v151 = vpack.c.bf16 %v72, %v72
    %v152 = vpack.c.bf16 %v73, %v73
    %v153 = vpack.c.bf16 %v74, %v74
    %v154 = vpack.c.bf16 %v75, %v75
    %v155 = vpack.c.bf16 %v76, %v76
    %v156 = vpack.c.bf16 %v77, %v77
    %v157 = vpack.c.bf16 %v78, %v78
    %v158 = vpack.c.bf16 %v79, %v79
    %v159 = vpack.c.bf16 %v80, %v80
    %v160 = vpack.c.bf16 %v81, %v81
    %v161 = vpack.c.bf16 %v82, %v82
    %v162 = vpack.c.bf16 %v83, %v83
    %v163 = vpack.c.bf16 %v84, %v84
    %v164 = vpack.c.bf16 %v85, %v85
    %v165 = vpack.c.bf16 %v86, %v86
    %v166 = vpack.c.bf16 %v87, %v87
    %v167 = vpack.c.bf16 %v88, %v88
    %v168 = vpack.c.bf16 %v89, %v89
    %v169 = vpack.c.bf16 %v90, %v90
    %v170 = vpack.c.bf16 %v91, %v91
    %v171 = vpack.c.bf16 %v92, %v92
    %v172 = vpack.c.bf16 %v93, %v93
    %v173 = vpack.c.bf16 %v94, %v94
    %v174 = vpack.c.bf16 %v95, %v95
    %v175 = vpack.c.bf16 %v96, %v96
    %v176 = vpack.c.bf16 %v97, %v97
    %v177 = vpack.c.bf16 %v98, %v98
    %v178 = vpack.c.bf16 %v99, %v99
    %v179 = vpack.c.bf16 %v100, %v100
    %v180 = vpack.c.bf16 %v101, %v101
    %v181 = vpack.c.bf16 %v102, %v102
    %v182 = vpack.c.bf16 %v103, %v103
    %v183 = vpack.c.bf16 %v104, %v104
    %v184 = vpack.c.bf16 %v105, %v105
    %v185 = vpack.c.bf16 %v106, %v106
    %v186 = vpack.c.bf16 %v107, %v107
    %v187 = vpack.c.bf16 %v108, %v108
    %v188 = vld [vmem:[%s1] sm:$0xf]
    %v189 = vld [vmem:[%s1 + $0x4] sm:$0xf]
    %v190 = vld [vmem:[%s1 + $0x8] sm:$0xf]
    %v191 = vld [vmem:[%s1 + $0xc] sm:$0xf]
    %v192 = vld [vmem:[%s1 + $0x10] sm:$0xf]
    %v193 = vld [vmem:[%s1 + $0x14] sm:$0xf]
    %v194 = vld [vmem:[%s1 + $0x18] sm:$0xf]
    %v195 = vld [vmem:[%s1 + $0x1c] sm:$0xf]
    %v196 = vld [vmem:[%s1 + $0x20] sm:$0xf]
    %v197 = vld [vmem:[%s1 + $0x24] sm:$0xf]
    %v198 = vld [vmem:[%s1 + $0x28] sm:$0xf]
    %v199 = vld [vmem:[%s1 + $0x2c] sm:$0xf]
    %v200 = vld [vmem:[%s1 + $0x30] sm:$0xf]
    %v201 = vld [vmem:[%s1 + $0x34] sm:$0xf]
    %v202 = vld [vmem:[%s1 + $0x38] sm:$0xf]
    %v203 = vld [vmem:[%s1 + $0x3c] sm:$0xf]
    %v204 = vld [vmem:[%s1 + $0x40] sm:$0xf]
    %v205 = vld [vmem:[%s1 + $0x44] sm:$0xf]
    %v206 = vld [vmem:[%s1 + $0x48] sm:$0xf]
    %v207 = vld [vmem:[%s1 + $0x4c] sm:$0xf]
    %v208 = vld [vmem:[%s1 + $0x50] sm:$0xf]
    %v209 = vld [vmem:[%s1 + $0x54] sm:$0xf]
    %v210 = vld [vmem:[%s1 + $0x58] sm:$0xf]
    %v211 = vld [vmem:[%s1 + $0x5c] sm:$0xf]
    %v212 = vld [vmem:[%s1 + $0x60] sm:$0xf]
    %v213 = vld [vmem:[%s1 + $0x64] sm:$0xf]
    %v214 = vld [vmem:[%s1 + $0x68] sm:$0xf]
    %v215 = vld [vmem:[%s1 + $0x6c] sm:$0xf]
    %v216 = vld [vmem:[%s1 + $0x70] sm:$0xf]
    %v217 = vld [vmem:[%s1 + $0x74] sm:$0xf]
    %v218 = vld [vmem:[%s1 + $0x78] sm:$0xf]
    %v219 = vld [vmem:[%s1 + $0x7c] sm:$0xf]
    %v220 = vld [vmem:[%s1 + $0x80] sm:$0xf]
    %v221 = vld [vmem:[%s1 + $0x84] sm:$0xf]
    %v222 = vld [vmem:[%s1 + $0x88] sm:$0xf]
    %v223 = vld [vmem:[%s1 + $0x8c] sm:$0xf]
    %v224 = vld [vmem:[%s1 + $0x90] sm:$0xf]
    %v225 = vld [vmem:[%s1 + $0x94] sm:$0xf]
    %v226 = vld [vmem:[%s1 + $0x98] sm:$0xf]
    %v227 = vld [vmem:[%s1 + $0x9c] sm:$0xf]
    %v228 = vld [vmem:[%s1 + $0xa0] sm:$0xf]
    %v229 = vld [vmem:[%s1 + $0xa4] sm:$0xf]
    %v230 = vld [vmem:[%s1 + $0xa8] sm:$0xf]
    %v231 = vld [vmem:[%s1 + $0xac] sm:$0xf]
    %v232 = vld [vmem:[%s1 + $0xb0] sm:$0xf]
    %v233 = vld [vmem:[%s1 + $0xb4] sm:$0xf]
    %v234 = vld [vmem:[%s1 + $0xb8] sm:$0xf]
    %v235 = vld [vmem:[%s1 + $0xbc] sm:$0xf]
    %v236 = vld [vmem:[%s1 + $0xc0] sm:$0xf]
    %v237 = vld [vmem:[%s1 + $0xc4] sm:$0xf]
    %v238 = vld [vmem:[%s1 + $0xc8] sm:$0xf]
    %v239 = vld [vmem:[%s1 + $0xcc] sm:$0xf]
    %v240 = vld [vmem:[%s1 + $0xd0] sm:$0xf]
    %v241 = vld [vmem:[%s1 + $0xd4] sm:$0xf]
    %v242 = vld [vmem:[%s1 + $0xd8] sm:$0xf]
    %v243 = vld [vmem:[%s1 + $0xdc] sm:$0xf]
    %v244 = vld [vmem:[%s1 + $0xe0] sm:$0xf]
    %v245 = vld [vmem:[%s1 + $0xe4] sm:$0xf]
    %v246 = vld [vmem:[%s1 + $0xe8] sm:$0xf]
    %v247 = vld [vmem:[%s1 + $0xec] sm:$0xf]
    %v248 = vld [vmem:[%s1 + $0xf0] sm:$0xf]
    %v249 = vld [vmem:[%s1 + $0xf4] sm:$0xf]
    %v250 = vld [vmem:[%s1 + $0xf8] sm:$0xf]
    %v251 = vld [vmem:[%s1 + $0xfc] sm:$0xf]
    %v252 = vld [vmem:[%s1 + $0x100] sm:$0xf]
    %v253 = vld [vmem:[%s1 + $0x104] sm:$0xf]
    %v254 = vld [vmem:[%s1 + $0x108] sm:$0xf]
    %v255 = vld [vmem:[%s1 + $0x10c] sm:$0xf]
    %v256 = vld [vmem:[%s1 + $0x110] sm:$0xf]
    %v257 = vld [vmem:[%s1 + $0x114] sm:$0xf]
    %v258 = vld [vmem:[%s1 + $0x118] sm:$0xf]
    %v259 = vld [vmem:[%s1 + $0x11c] sm:$0xf]
    %v260 = vld [vmem:[%s1 + $0x120] sm:$0xf]
    %v261 = vld [vmem:[%s1 + $0x124] sm:$0xf]
    %v262 = vld [vmem:[%s1 + $0x128] sm:$0xf]
    %v263 = vld [vmem:[%s1 + $0x12c] sm:$0xf]
    %v264 = vld [vmem:[%s1 + $0x130] sm:$0xf]
    %v265 = vld [vmem:[%s1 + $0x134] sm:$0xf]
    %v266 = vld [vmem:[%s1 + $0x138] sm:$0xf]
    %v267 = vld [vmem:[%s1 + $0x13c] sm:$0xf]
    %v268 = vld [vmem:[%s1 + $0x140] sm:$0xf]
    %v269 = vld [vmem:[%s1 + $0x144] sm:$0xf]
    %v270 = vld [vmem:[%s1 + $0x148] sm:$0xf]
    %v271 = vld [vmem:[%s1 + $0x14c] sm:$0xf]
    %v272 = vld [vmem:[%s1 + $0x150] sm:$0xf]
    %v273 = vld [vmem:[%s1 + $0x154] sm:$0xf]
    %v274 = vld [vmem:[%s1 + $0x158] sm:$0xf]
    %v275 = vld [vmem:[%s1 + $0x15c] sm:$0xf]
    %v276 = vld [vmem:[%s1 + $0x160] sm:$0xf]
    %v277 = vld [vmem:[%s1 + $0x164] sm:$0xf]
    %v278 = vld [vmem:[%s1 + $0x168] sm:$0xf]
    %v279 = vld [vmem:[%s1 + $0x16c] sm:$0xf]
    %v280 = vld [vmem:[%s1 + $0x170] sm:$0xf]
    %v281 = vld [vmem:[%s1 + $0x174] sm:$0xf]
    %v282 = vld [vmem:[%s1 + $0x178] sm:$0xf]
    %v283 = vld [vmem:[%s1 + $0x17c] sm:$0xf]
    %v284 = vld [vmem:[%s1 + $0x180] sm:$0xf]
    %v285 = vld [vmem:[%s1 + $0x184] sm:$0xf]
    %v286 = vld [vmem:[%s1 + $0x188] sm:$0xf]
    %v287 = vld [vmem:[%s1 + $0x18c] sm:$0xf]
    %v288 = vld [vmem:[%s1 + $0x190] sm:$0xf]
    %v289 = vld [vmem:[%s1 + $0x194] sm:$0xf]
    %v290 = vld [vmem:[%s1 + $0x198] sm:$0xf]
    %v291 = vld [vmem:[%s1 + $0x19c] sm:$0xf]
    %v292 = vld [vmem:[%s1 + $0x1a0] sm:$0xf]
    %v293 = vld [vmem:[%s1 + $0x1a4] sm:$0xf]
    %v294 = vld [vmem:[%s1 + $0x1a8] sm:$0xf]
    %v295 = vld [vmem:[%s1 + $0x1ac] sm:$0xf]
    %v296 = vld [vmem:[%s1 + $0x1b0] sm:$0xf]
    %v297 = vld [vmem:[%s1 + $0x1b4] sm:$0xf]
    %v298 = vld [vmem:[%s1 + $0x1b8] sm:$0xf]
    %v299 = vld [vmem:[%s1 + $0x1bc] sm:$0xf]
    %v300 = vld [vmem:[%s1 + $0x1c0] sm:$0xf]
    %v301 = vld [vmem:[%s1 + $0x1c4] sm:$0xf]
    %v302 = vld [vmem:[%s1 + $0x1c8] sm:$0xf]
    %v303 = vld [vmem:[%s1 + $0x1cc] sm:$0xf]
    %v304 = vld [vmem:[%s1 + $0x1d0] sm:$0xf]
    %v305 = vld [vmem:[%s1 + $0x1d4] sm:$0xf]
    %v306 = vld [vmem:[%s1 + $0x1d8] sm:$0xf]
    %v307 = vld [vmem:[%s1 + $0x1dc] sm:$0xf]
    %v308 = vld [vmem:[%s1 + $0x1e0] sm:$0xf]
    %v309 = vld [vmem:[%s1 + $0x1e4] sm:$0xf]
    %v310 = vld [vmem:[%s1 + $0x1e8] sm:$0xf]
    %v311 = vld [vmem:[%s1 + $0x1ec] sm:$0xf]
    %v312 = vld [vmem:[%s1 + $0x1f0] sm:$0xf]
    %v313 = vld [vmem:[%s1 + $0x1f4] sm:$0xf]
    %v314 = vld [vmem:[%s1 + $0x1f8] sm:$0xf]
    %v315 = vld [vmem:[%s1 + $0x1fc] sm:$0xf]
    %v316 = vld [vmem:[%s1 + $0x200] sm:$0xf]
    %v317 = vld [vmem:[%s1 + $0x204] sm:$0xf]
    %v318 = vld [vmem:[%s1 + $0x208] sm:$0xf]
    %v319 = vld [vmem:[%s1 + $0x20c] sm:$0xf]
    %v320 = vld [vmem:[%s1 + $0x210] sm:$0xf]
    %v321 = vld [vmem:[%s1 + $0x214] sm:$0xf]
    %v322 = vld [vmem:[%s1 + $0x218] sm:$0xf]
    %v323 = vld [vmem:[%s1 + $0x21c] sm:$0xf]
    %v324 = vld [vmem:[%s1 + $0x220] sm:$0xf]
    %v325 = vld [vmem:[%s1 + $0x224] sm:$0xf]
    %v326 = vld [vmem:[%s1 + $0x228] sm:$0xf]
    %v327 = vld [vmem:[%s1 + $0x22c] sm:$0xf]
    %v328 = vld [vmem:[%s1 + $0x230] sm:$0xf]
    %v329 = vld [vmem:[%s1 + $0x234] sm:$0xf]
    %v330 = vld [vmem:[%s1 + $0x238] sm:$0xf]
    %v331 = vld [vmem:[%s1 + $0x23c] sm:$0xf]
    %v332 = vld [vmem:[%s1 + $0x240] sm:$0xf]
    %v333 = vld [vmem:[%s1 + $0x244] sm:$0xf]
    %v334 = vld [vmem:[%s1 + $0x248] sm:$0xf]
    %v335 = vld [vmem:[%s1 + $0x24c] sm:$0xf]
    %v336 = vld [vmem:[%s1 + $0x250] sm:$0xf]
    %v337 = vld [vmem:[%s1 + $0x254] sm:$0xf]
    %v338 = vld [vmem:[%s1 + $0x258] sm:$0xf]
    %v339 = vld [vmem:[%s1 + $0x25c] sm:$0xf]
    %v340 = vld [vmem:[%s1 + $0x260] sm:$0xf]
    %v341 = vld [vmem:[%s1 + $0x264] sm:$0xf]
    %v342 = vld [vmem:[%s1 + $0x268] sm:$0xf]
    %v343 = vld [vmem:[%s1 + $0x26c] sm:$0xf]
    %v344 = vld [vmem:[%s1 + $0x270] sm:$0xf]
    %v345 = vld [vmem:[%s1 + $0x274] sm:$0xf]
    %v346 = vld [vmem:[%s1 + $0x278] sm:$0xf]
    %v347 = vld [vmem:[%s1 + $0x27c] sm:$0xf]
    %v348 = vld [vmem:[%s1 + $0x280] sm:$0xf]
    %v349 = vld [vmem:[%s1 + $0x284] sm:$0xf]
    %v350 = vld [vmem:[%s1 + $0x288] sm:$0xf]
    %v351 = vld [vmem:[%s1 + $0x28c] sm:$0xf]
    %v352 = vld [vmem:[%s1 + $0x290] sm:$0xf]
    %v353 = vld [vmem:[%s1 + $0x294] sm:$0xf]
    %v354 = vld [vmem:[%s1 + $0x298] sm:$0xf]
    %v355 = vld [vmem:[%s1 + $0x29c] sm:$0xf]
    %v356 = vld [vmem:[%s1 + $0x2a0] sm:$0xf]
    %v357 = vld [vmem:[%s1 + $0x2a4] sm:$0xf]
    %v358 = vld [vmem:[%s1 + $0x2a8] sm:$0xf]
    %v359 = vld [vmem:[%s1 + $0x2ac] sm:$0xf]
    %v360 = vld [vmem:[%s1 + $0x2b0] sm:$0xf]
    %v361 = vld [vmem:[%s1 + $0x2b4] sm:$0xf]
    %v362 = vld [vmem:[%s1 + $0x2b8] sm:$0xf]
    %v363 = vld [vmem:[%s1 + $0x2bc] sm:$0xf]
    %v364 = vld [vmem:[%s1 + $0x2c0] sm:$0xf]
    %v365 = vld [vmem:[%s1 + $0x2c4] sm:$0xf]
    %v366 = vld [vmem:[%s1 + $0x2c8] sm:$0xf]
    %v367 = vld [vmem:[%s1 + $0x2cc] sm:$0xf]
    %v368 = vld [vmem:[%s1 + $0x2d0] sm:$0xf]
    %v369 = vld [vmem:[%s1 + $0x2d4] sm:$0xf]
    %v370 = vld [vmem:[%s1 + $0x2d8] sm:$0xf]
    %v371 = vld [vmem:[%s1 + $0x2dc] sm:$0xf]
    %v372 = vld [vmem:[%s1 + $0x2e0] sm:$0xf]
    %v373 = vld [vmem:[%s1 + $0x2e4] sm:$0xf]
    %v374 = vld [vmem:[%s1 + $0x2e8] sm:$0xf]
    %v375 = vld [vmem:[%s1 + $0x2ec] sm:$0xf]
    %v376 = vld [vmem:[%s1 + $0x2f0] sm:$0xf]
    %v377 = vld [vmem:[%s1 + $0x2f4] sm:$0xf]
    %v378 = vld [vmem:[%s1 + $0x2f8] sm:$0xf]
    %v379 = vld [vmem:[%s1 + $0x2fc] sm:$0xf]
    %v380 = vld [vmem:[%s1 + $0x300] sm:$0xf]
    %v381 = vld [vmem:[%s1 + $0x304] sm:$0xf]
    %v382 = vld [vmem:[%s1 + $0x308] sm:$0xf]
    %v383 = vld [vmem:[%s1 + $0x30c] sm:$0xf]
    %v384 = vld [vmem:[%s1 + $0x310] sm:$0xf]
    %v385 = vld [vmem:[%s1 + $0x314] sm:$0xf]
    %v386 = vld [vmem:[%s1 + $0x318] sm:$0xf]
    %v387 = vld [vmem:[%s1 + $0x31c] sm:$0xf]
    %v388 = vld [vmem:[%s1 + $0x320] sm:$0xf]
    %v389 = vld [vmem:[%s1 + $0x324] sm:$0xf]
    %v390 = vld [vmem:[%s1 + $0x328] sm:$0xf]
    %v391 = vld [vmem:[%s1 + $0x32c] sm:$0xf]
    %v392 = vld [vmem:[%s1 + $0x330] sm:$0xf]
    %v393 = vld [vmem:[%s1 + $0x334] sm:$0xf]
    %v394 = vld [vmem:[%s1 + $0x338] sm:$0xf]
    %v395 = vld [vmem:[%s1 + $0x33c] sm:$0xf]
    %v396 = vld [vmem:[%s1 + $0x340] sm:$0xf]
    %v397 = vld [vmem:[%s1 + $0x344] sm:$0xf]
    %v398 = vld [vmem:[%s1 + $0x348] sm:$0xf]
    %v399 = vld [vmem:[%s1 + $0x34c] sm:$0xf]
    %v400 = vld [vmem:[%s1 + $0x350] sm:$0xf]
    %v401 = vld [vmem:[%s1 + $0x354] sm:$0xf]
    %v402 = vld [vmem:[%s1 + $0x358] sm:$0xf]
    %v403 = vld [vmem:[%s1 + $0x35c] sm:$0xf]
    %v404 = vld [vmem:[%s1 + $0x360] sm:$0xf]
    %v405 = vld [vmem:[%s1 + $0x364] sm:$0xf]
    %v406 = vld [vmem:[%s1 + $0x368] sm:$0xf]
    %v407 = vld [vmem:[%s1 + $0x36c] sm:$0xf]
    %v408 = vld [vmem:[%s1 + $0x370] sm:$0xf]
    %v409 = vld [vmem:[%s1 + $0x374] sm:$0xf]
    %v410 = vld [vmem:[%s1 + $0x378] sm:$0xf]
    %v411 = vld [vmem:[%s1 + $0x37c] sm:$0xf]
    %v412 = vld [vmem:[%s1 + $0x380] sm:$0xf]
    %v413 = vld [vmem:[%s1 + $0x384] sm:$0xf]
    %v414 = vld [vmem:[%s1 + $0x388] sm:$0xf]
    %v415 = vld [vmem:[%s1 + $0x38c] sm:$0xf]
    %v416 = vld [vmem:[%s1 + $0x390] sm:$0xf]
    %v417 = vld [vmem:[%s1 + $0x394] sm:$0xf]
    %v418 = vld [vmem:[%s1 + $0x398] sm:$0xf]
    %v419 = vld [vmem:[%s1 + $0x39c] sm:$0xf]
    %v420 = vld [vmem:[%s1 + $0x3a0] sm:$0xf]
    %v421 = vld [vmem:[%s1 + $0x3a4] sm:$0xf]
    %v422 = vld [vmem:[%s1 + $0x3a8] sm:$0xf]
    %v423 = vld [vmem:[%s1 + $0x3ac] sm:$0xf]
    %v424 = vld [vmem:[%s1 + $0x3b0] sm:$0xf]
    %v425 = vld [vmem:[%s1 + $0x3b4] sm:$0xf]
    %v426 = vld [vmem:[%s1 + $0x3b8] sm:$0xf]
    %v427 = vld [vmem:[%s1 + $0x3bc] sm:$0xf]
    %v428 = vld [vmem:[%s1 + $0x3c0] sm:$0xf]
    %v429 = vld [vmem:[%s1 + $0x3c4] sm:$0xf]
    %v430 = vld [vmem:[%s1 + $0x3c8] sm:$0xf]
    %v431 = vld [vmem:[%s1 + $0x3cc] sm:$0xf]
    %v432 = vld [vmem:[%s1 + $0x3d0] sm:$0xf]
    %v433 = vld [vmem:[%s1 + $0x3d4] sm:$0xf]
    %v434 = vld [vmem:[%s1 + $0x3d8] sm:$0xf]
    %v435 = vld [vmem:[%s1 + $0x3dc] sm:$0xf]
    %v436 = vld [vmem:[%s1 + $0x3e0] sm:$0xf]
    %v437 = vld [vmem:[%s1 + $0x3e4] sm:$0xf]
    %v438 = vld [vmem:[%s1 + $0x3e8] sm:$0xf]
    %v439 = vld [vmem:[%s1 + $0x3ec] sm:$0xf]
    %v440 = vld [vmem:[%s1 + $0x3f0] sm:$0xf]
    %v441 = vld [vmem:[%s1 + $0x3f4] sm:$0xf]
    %v442 = vld [vmem:[%s1 + $0x3f8] sm:$0xf]
    %v443 = vld [vmem:[%s1 + $0x3fc] sm:$0xf]
    %v444 = vld [vmem:[%s1 + $0x400] sm:$0xf]
    %v445 = vld [vmem:[%s1 + $0x404] sm:$0xf]
    %v446 = vld [vmem:[%s1 + $0x408] sm:$0xf]
    %v447 = vld [vmem:[%s1 + $0x40c] sm:$0xf]
    %v448 = vld [vmem:[%s1 + $0x410] sm:$0xf]
    %v449 = vld [vmem:[%s1 + $0x414] sm:$0xf]
    %v450 = vld [vmem:[%s1 + $0x418] sm:$0xf]
    %v451 = vld [vmem:[%s1 + $0x41c] sm:$0xf]
    %v452 = vld [vmem:[%s1 + $0x420] sm:$0xf]
    %v453 = vld [vmem:[%s1 + $0x424] sm:$0xf]
    %v454 = vld [vmem:[%s1 + $0x428] sm:$0xf]
    %v455 = vld [vmem:[%s1 + $0x42c] sm:$0xf]
    %v456 = vld [vmem:[%s1 + $0x430] sm:$0xf]
    %v457 = vld [vmem:[%s1 + $0x434] sm:$0xf]
    %v458 = vld [vmem:[%s1 + $0x438] sm:$0xf]
    %v459 = vld [vmem:[%s1 + $0x43c] sm:$0xf]
    %v460 = vld [vmem:[%s1 + $0x440] sm:$0xf]
    %v461 = vld [vmem:[%s1 + $0x444] sm:$0xf]
    %v462 = vld [vmem:[%s1 + $0x448] sm:$0xf]
    %v463 = vld [vmem:[%s1 + $0x44c] sm:$0xf]
    %v464 = vld [vmem:[%s1 + $0x450] sm:$0xf]
    %v465 = vld [vmem:[%s1 + $0x454] sm:$0xf]
    %v466 = vld [vmem:[%s1 + $0x458] sm:$0xf]
    %v467 = vld [vmem:[%s1 + $0x45c] sm:$0xf]
    %v468 = vld [vmem:[%s1 + $0x460] sm:$0xf]
    %v469 = vld [vmem:[%s1 + $0x464] sm:$0xf]
    %v470 = vld [vmem:[%s1 + $0x468] sm:$0xf]
    %v471 = vld [vmem:[%s1 + $0x46c] sm:$0xf]
    %v472 = vld [vmem:[%s1 + $0x470] sm:$0xf]
    %v473 = vld [vmem:[%s1 + $0x474] sm:$0xf]
    %v474 = vld [vmem:[%s1 + $0x478] sm:$0xf]
    %v475 = vld [vmem:[%s1 + $0x47c] sm:$0xf]
    %v476 = vld [vmem:[%s1 + $0x480] sm:$0xf]
    %v477 = vld [vmem:[%s1 + $0x484] sm:$0xf]
    %v478 = vld [vmem:[%s1 + $0x488] sm:$0xf]
    %v479 = vld [vmem:[%s1 + $0x48c] sm:$0xf]
    %v480 = vld [vmem:[%s1 + $0x490] sm:$0xf]
    %v481 = vld [vmem:[%s1 + $0x494] sm:$0xf]
    %v482 = vld [vmem:[%s1 + $0x498] sm:$0xf]
    %v483 = vld [vmem:[%s1 + $0x49c] sm:$0xf]
    %v484 = vld [vmem:[%s1 + $0x4a0] sm:$0xf]
    %v485 = vld [vmem:[%s1 + $0x4a4] sm:$0xf]
    %v486 = vld [vmem:[%s1 + $0x4a8] sm:$0xf]
    %v487 = vld [vmem:[%s1 + $0x4ac] sm:$0xf]
    %v488 = vld [vmem:[%s1 + $0x4b0] sm:$0xf]
    %v489 = vld [vmem:[%s1 + $0x4b4] sm:$0xf]
    %v490 = vld [vmem:[%s1 + $0x4b8] sm:$0xf]
    %v491 = vld [vmem:[%s1 + $0x4bc] sm:$0xf]
    %v492 = vld [vmem:[%s1 + $0x4c0] sm:$0xf]
    %v493 = vld [vmem:[%s1 + $0x4c4] sm:$0xf]
    %v494 = vld [vmem:[%s1 + $0x4c8] sm:$0xf]
    %v495 = vld [vmem:[%s1 + $0x4cc] sm:$0xf]
    %v496 = vld [vmem:[%s1 + $0x4d0] sm:$0xf]
    %v497 = vld [vmem:[%s1 + $0x4d4] sm:$0xf]
    %v498 = vld [vmem:[%s1 + $0x4d8] sm:$0xf]
    %v499 = vld [vmem:[%s1 + $0x4dc] sm:$0xf]
    %v500 = vld [vmem:[%s1 + $0x4e0] sm:$0xf]
    %v501 = vld [vmem:[%s1 + $0x4e4] sm:$0xf]
    %v502 = vld [vmem:[%s1 + $0x4e8] sm:$0xf]
    %v503 = vld [vmem:[%s1 + $0x4ec] sm:$0xf]
    %v504 = vld [vmem:[%s1 + $0x4f0] sm:$0xf]
    %v505 = vld [vmem:[%s1 + $0x4f4] sm:$0xf]
    %v506 = vld [vmem:[%s1 + $0x4f8] sm:$0xf]
    %v507 = vld [vmem:[%s1 + $0x4fc] sm:$0xf]
    %v508 = vld [vmem:[%s1 + $0x500] sm:$0xf]
    %v509 = vld [vmem:[%s1 + $0x504] sm:$0xf]
    %v510 = vld [vmem:[%s1 + $0x508] sm:$0xf]
    %v511 = vld [vmem:[%s1 + $0x50c] sm:$0xf]
    %v512 = vld [vmem:[%s1 + $0x510] sm:$0xf]
    %v513 = vld [vmem:[%s1 + $0x514] sm:$0xf]
    %v514 = vld [vmem:[%s1 + $0x518] sm:$0xf]
    %v515 = vld [vmem:[%s1 + $0x51c] sm:$0xf]
    %v516 = vld [vmem:[%s1 + $0x520] sm:$0xf]
    %v517 = vld [vmem:[%s1 + $0x524] sm:$0xf]
    %v518 = vld [vmem:[%s1 + $0x528] sm:$0xf]
    %v519 = vld [vmem:[%s1 + $0x52c] sm:$0xf]
    %v520 = vld [vmem:[%s1 + $0x530] sm:$0xf]
    %v521 = vld [vmem:[%s1 + $0x534] sm:$0xf]
    %v522 = vld [vmem:[%s1 + $0x538] sm:$0xf]
    %v523 = vld [vmem:[%s1 + $0x53c] sm:$0xf]
    %v524 = vld [vmem:[%s1 + $0x540] sm:$0xf]
    %v525 = vld [vmem:[%s1 + $0x544] sm:$0xf]
    %v526 = vld [vmem:[%s1 + $0x548] sm:$0xf]
    %v527 = vld [vmem:[%s1 + $0x54c] sm:$0xf]
    %v528 = vld [vmem:[%s1 + $0x550] sm:$0xf]
    %v529 = vld [vmem:[%s1 + $0x554] sm:$0xf]
    %v530 = vld [vmem:[%s1 + $0x558] sm:$0xf]
    %v531 = vld [vmem:[%s1 + $0x55c] sm:$0xf]
    %v532 = vld [vmem:[%s1 + $0x560] sm:$0xf]
    %v533 = vld [vmem:[%s1 + $0x564] sm:$0xf]
    %v534 = vld [vmem:[%s1 + $0x568] sm:$0xf]
    %v535 = vld [vmem:[%s1 + $0x56c] sm:$0xf]
    %v536 = vld [vmem:[%s1 + $0x570] sm:$0xf]
    %v537 = vld [vmem:[%s1 + $0x574] sm:$0xf]
    %v538 = vld [vmem:[%s1 + $0x578] sm:$0xf]
    %v539 = vld [vmem:[%s1 + $0x57c] sm:$0xf]
    %v540 = vld [vmem:[%s1 + $0x580] sm:$0xf]
    %v541 = vld [vmem:[%s1 + $0x584] sm:$0xf]
    %v542 = vld [vmem:[%s1 + $0x588] sm:$0xf]
    %v543 = vld [vmem:[%s1 + $0x58c] sm:$0xf]
    %v544 = vld [vmem:[%s1 + $0x590] sm:$0xf]
    %v545 = vld [vmem:[%s1 + $0x594] sm:$0xf]
    %v546 = vld [vmem:[%s1 + $0x598] sm:$0xf]
    %v547 = vld [vmem:[%s1 + $0x59c] sm:$0xf]
    %v548 = vld [vmem:[%s1 + $0x5a0] sm:$0xf]
    %v549 = vld [vmem:[%s1 + $0x5a4] sm:$0xf]
    %v550 = vld [vmem:[%s1 + $0x5a8] sm:$0xf]
    %v551 = vld [vmem:[%s1 + $0x5ac] sm:$0xf]
    %v552 = vld [vmem:[%s1 + $0x5b0] sm:$0xf]
    %v553 = vld [vmem:[%s1 + $0x5b4] sm:$0xf]
    %v554 = vld [vmem:[%s1 + $0x5b8] sm:$0xf]
    %v555 = vld [vmem:[%s1 + $0x5bc] sm:$0xf]
    %v556 = vld [vmem:[%s1 + $0x5c0] sm:$0xf]
    %v557 = vld [vmem:[%s1 + $0x5c4] sm:$0xf]
    %v558 = vld [vmem:[%s1 + $0x5c8] sm:$0xf]
    %v559 = vld [vmem:[%s1 + $0x5cc] sm:$0xf]
    %v560 = vld [vmem:[%s1 + $0x5d0] sm:$0xf]
    %v561 = vld [vmem:[%s1 + $0x5d4] sm:$0xf]
    %v562 = vld [vmem:[%s1 + $0x5d8] sm:$0xf]
    %v563 = vld [vmem:[%s1 + $0x5dc] sm:$0xf]
    %v564 = vld [vmem:[%s1 + $0x5e0] sm:$0xf]
    %v565 = vld [vmem:[%s1 + $0x5e4] sm:$0xf]
    %v566 = vld [vmem:[%s1 + $0x5e8] sm:$0xf]
    %v567 = vld [vmem:[%s1 + $0x5ec] sm:$0xf]
    %v568 = vld [vmem:[%s1 + $0x5f0] sm:$0xf]
    %v569 = vld [vmem:[%s1 + $0x5f4] sm:$0xf]
    %v570 = vld [vmem:[%s1 + $0x5f8] sm:$0xf]
    %v571 = vld [vmem:[%s1 + $0x5fc] sm:$0xf]
    %v572 = vld [vmem:[%s1 + $0x600] sm:$0xf]
    %v573 = vld [vmem:[%s1 + $0x604] sm:$0xf]
    %v574 = vld [vmem:[%s1 + $0x608] sm:$0xf]
    %v575 = vld [vmem:[%s1 + $0x60c] sm:$0xf]
    %v576 = vld [vmem:[%s1 + $0x610] sm:$0xf]
    %v577 = vld [vmem:[%s1 + $0x614] sm:$0xf]
    %v578 = vld [vmem:[%s1 + $0x618] sm:$0xf]
    %v579 = vld [vmem:[%s1 + $0x61c] sm:$0xf]
    %v580 = vld [vmem:[%s1 + $0x620] sm:$0xf]
    %v581 = vld [vmem:[%s1 + $0x624] sm:$0xf]
    %v582 = vld [vmem:[%s1 + $0x628] sm:$0xf]
    %v583 = vld [vmem:[%s1 + $0x62c] sm:$0xf]
    %v584 = vld [vmem:[%s1 + $0x630] sm:$0xf]
    %v585 = vld [vmem:[%s1 + $0x634] sm:$0xf]
    %v586 = vld [vmem:[%s1 + $0x638] sm:$0xf]
    %v587 = vld [vmem:[%s1 + $0x63c] sm:$0xf]
    %v588 = vld [vmem:[%s1 + $0x640] sm:$0xf]
    %v589 = vld [vmem:[%s1 + $0x644] sm:$0xf]
    %v590 = vld [vmem:[%s1 + $0x648] sm:$0xf]
    %v591 = vld [vmem:[%s1 + $0x64c] sm:$0xf]
    %v592 = vld [vmem:[%s1 + $0x650] sm:$0xf]
    %v593 = vld [vmem:[%s1 + $0x654] sm:$0xf]
    %v594 = vld [vmem:[%s1 + $0x658] sm:$0xf]
    %v595 = vld [vmem:[%s1 + $0x65c] sm:$0xf]
    %v596 = vld [vmem:[%s1 + $0x660] sm:$0xf]
    %v597 = vld [vmem:[%s1 + $0x664] sm:$0xf]
    %v598 = vld [vmem:[%s1 + $0x668] sm:$0xf]
    %v599 = vld [vmem:[%s1 + $0x66c] sm:$0xf]
    %v600 = vld [vmem:[%s1 + $0x670] sm:$0xf]
    %v601 = vld [vmem:[%s1 + $0x674] sm:$0xf]
    %v602 = vld [vmem:[%s1 + $0x678] sm:$0xf]
    %v603 = vld [vmem:[%s1 + $0x67c] sm:$0xf]
    %v604 = vld [vmem:[%s1 + $0x680] sm:$0xf]
    %v605 = vld [vmem:[%s1 + $0x684] sm:$0xf]
    %v606 = vld [vmem:[%s1 + $0x688] sm:$0xf]
    %v607 = vld [vmem:[%s1 + $0x68c] sm:$0xf]
    %v608 = vld [vmem:[%s1 + $0x690] sm:$0xf]
    %v609 = vld [vmem:[%s1 + $0x694] sm:$0xf]
    %v610 = vld [vmem:[%s1 + $0x698] sm:$0xf]
    %v611 = vld [vmem:[%s1 + $0x69c] sm:$0xf]
    %v612 = vld [vmem:[%s1 + $0x6a0] sm:$0xf]
    %v613 = vld [vmem:[%s1 + $0x6a4] sm:$0xf]
    %v614 = vld [vmem:[%s1 + $0x6a8] sm:$0xf]
    %v615 = vld [vmem:[%s1 + $0x6ac] sm:$0xf]
    %v616 = vld [vmem:[%s1 + $0x6b0] sm:$0xf]
    %v617 = vld [vmem:[%s1 + $0x6b4] sm:$0xf]
    %v618 = vld [vmem:[%s1 + $0x6b8] sm:$0xf]
    %v619 = vld [vmem:[%s1 + $0x6bc] sm:$0xf]
    %v620 = vld [vmem:[%s1 + $0x6c0] sm:$0xf]
    %v621 = vld [vmem:[%s1 + $0x6c4] sm:$0xf]
    %v622 = vld [vmem:[%s1 + $0x6c8] sm:$0xf]
    %v623 = vld [vmem:[%s1 + $0x6cc] sm:$0xf]
    %v624 = vld [vmem:[%s1 + $0x6d0] sm:$0xf]
    %v625 = vld [vmem:[%s1 + $0x6d4] sm:$0xf]
    %v626 = vld [vmem:[%s1 + $0x6d8] sm:$0xf]
    %v627 = vld [vmem:[%s1 + $0x6dc] sm:$0xf]
    %v628 = vld [vmem:[%s1 + $0x6e0] sm:$0xf]
    %v629 = vld [vmem:[%s1 + $0x6e4] sm:$0xf]
    %v630 = vld [vmem:[%s1 + $0x6e8] sm:$0xf]
    %v631 = vld [vmem:[%s1 + $0x6ec] sm:$0xf]
    %v632 = vld [vmem:[%s1 + $0x6f0] sm:$0xf]
    %v633 = vld [vmem:[%s1 + $0x6f4] sm:$0xf]
    %v634 = vld [vmem:[%s1 + $0x6f8] sm:$0xf]
    %v635 = vld [vmem:[%s1 + $0x6fc] sm:$0xf]
    %v636 = vld [vmem:[%s1 + $0x700] sm:$0xf]
    %v637 = vld [vmem:[%s1 + $0x704] sm:$0xf]
    %v638 = vld [vmem:[%s1 + $0x708] sm:$0xf]
    %v639 = vld [vmem:[%s1 + $0x70c] sm:$0xf]
    %v640 = vld [vmem:[%s1 + $0x710] sm:$0xf]
    %v641 = vld [vmem:[%s1 + $0x714] sm:$0xf]
    %v642 = vld [vmem:[%s1 + $0x718] sm:$0xf]
    %v643 = vld [vmem:[%s1 + $0x71c] sm:$0xf]
    %v644 = vld [vmem:[%s1 + $0x720] sm:$0xf]
    %v645 = vld [vmem:[%s1 + $0x724] sm:$0xf]
    %v646 = vld [vmem:[%s1 + $0x728] sm:$0xf]
    %v647 = vld [vmem:[%s1 + $0x72c] sm:$0xf]
    %v648 = vld [vmem:[%s1 + $0x730] sm:$0xf]
    %v649 = vld [vmem:[%s1 + $0x734] sm:$0xf]
    %v650 = vld [vmem:[%s1 + $0x738] sm:$0xf]
    %v651 = vld [vmem:[%s1 + $0x73c] sm:$0xf]
    %v652 = vld [vmem:[%s1 + $0x740] sm:$0xf]
    %v653 = vld [vmem:[%s1 + $0x744] sm:$0xf]
    %v654 = vld [vmem:[%s1 + $0x748] sm:$0xf]
    %v655 = vld [vmem:[%s1 + $0x74c] sm:$0xf]
    %v656 = vld [vmem:[%s1 + $0x750] sm:$0xf]
    %v657 = vld [vmem:[%s1 + $0x754] sm:$0xf]
    %v658 = vld [vmem:[%s1 + $0x758] sm:$0xf]
    %v659 = vld [vmem:[%s1 + $0x75c] sm:$0xf]
    %v660 = vld [vmem:[%s1 + $0x760] sm:$0xf]
    %v661 = vld [vmem:[%s1 + $0x764] sm:$0xf]
    %v662 = vld [vmem:[%s1 + $0x768] sm:$0xf]
    %v663 = vld [vmem:[%s1 + $0x76c] sm:$0xf]
    %v664 = vld [vmem:[%s1 + $0x770] sm:$0xf]
    %v665 = vld [vmem:[%s1 + $0x774] sm:$0xf]
    %v666 = vld [vmem:[%s1 + $0x778] sm:$0xf]
    %v667 = vld [vmem:[%s1 + $0x77c] sm:$0xf]
    %v668 = vld [vmem:[%s1 + $0x780] sm:$0xf]
    %v669 = vld [vmem:[%s1 + $0x784] sm:$0xf]
    %v670 = vld [vmem:[%s1 + $0x788] sm:$0xf]
    %v671 = vld [vmem:[%s1 + $0x78c] sm:$0xf]
    %v672 = vld [vmem:[%s1 + $0x790] sm:$0xf]
    %v673 = vld [vmem:[%s1 + $0x794] sm:$0xf]
    %v674 = vld [vmem:[%s1 + $0x798] sm:$0xf]
    %v675 = vld [vmem:[%s1 + $0x79c] sm:$0xf]
    %v676 = vld [vmem:[%s1 + $0x7a0] sm:$0xf]
    %v677 = vld [vmem:[%s1 + $0x7a4] sm:$0xf]
    %v678 = vld [vmem:[%s1 + $0x7a8] sm:$0xf]
    %v679 = vld [vmem:[%s1 + $0x7ac] sm:$0xf]
    %v680 = vld [vmem:[%s1 + $0x7b0] sm:$0xf]
    %v681 = vld [vmem:[%s1 + $0x7b4] sm:$0xf]
    %v682 = vld [vmem:[%s1 + $0x7b8] sm:$0xf]
    %v683 = vld [vmem:[%s1 + $0x7bc] sm:$0xf]
    %v684 = vld [vmem:[%s1 + $0x7c0] sm:$0xf]
    %v685 = vld [vmem:[%s1 + $0x7c4] sm:$0xf]
    %v686 = vld [vmem:[%s1 + $0x7c8] sm:$0xf]
    %v687 = vld [vmem:[%s1 + $0x7cc] sm:$0xf]
    %v688 = vld [vmem:[%s1 + $0x7d0] sm:$0xf]
    %v689 = vld [vmem:[%s1 + $0x7d4] sm:$0xf]
    %v690 = vld [vmem:[%s1 + $0x7d8] sm:$0xf]
    %v691 = vld [vmem:[%s1 + $0x7dc] sm:$0xf]
    %v692 = vld [vmem:[%s1 + $0x7e0] sm:$0xf]
    %v693 = vld [vmem:[%s1 + $0x7e4] sm:$0xf]
    %v694 = vld [vmem:[%s1 + $0x7e8] sm:$0xf]
    %v695 = vld [vmem:[%s1 + $0x7ec] sm:$0xf]
    %v696 = vld [vmem:[%s1 + $0x7f0] sm:$0xf]
    %v697 = vld [vmem:[%s1 + $0x7f4] sm:$0xf]
    %v698 = vld [vmem:[%s1 + $0x7f8] sm:$0xf]
    %v699 = vld [vmem:[%s1 + $0x7fc] sm:$0xf]
    %v700 = vld [vmem:[%s1 + $0x800] sm:$0xf]
    %v701 = vld [vmem:[%s1 + $0x804] sm:$0xf]
    %v702 = vld [vmem:[%s1 + $0x808] sm:$0xf]
    %v703 = vld [vmem:[%s1 + $0x80c] sm:$0xf]
    %v704 = vld [vmem:[%s1 + $0x810] sm:$0xf]
    %v705 = vld [vmem:[%s1 + $0x814] sm:$0xf]
    %v706 = vld [vmem:[%s1 + $0x818] sm:$0xf]
    %v707 = vld [vmem:[%s1 + $0x81c] sm:$0xf]
    %v708 = vld [vmem:[%s1 + $0x820] sm:$0xf]
    %v709 = vld [vmem:[%s1 + $0x824] sm:$0xf]
    %v710 = vld [vmem:[%s1 + $0x828] sm:$0xf]
    %v711 = vld [vmem:[%s1 + $0x82c] sm:$0xf]
    %v712 = vld [vmem:[%s1 + $0x830] sm:$0xf]
    %v713 = vld [vmem:[%s1 + $0x834] sm:$0xf]
    %v714 = vld [vmem:[%s1 + $0x838] sm:$0xf]
    %v715 = vld [vmem:[%s1 + $0x83c] sm:$0xf]
    %v716 = vld [vmem:[%s1 + $0x840] sm:$0xf]
    %v717 = vld [vmem:[%s1 + $0x844] sm:$0xf]
    %v718 = vld [vmem:[%s1 + $0x848] sm:$0xf]
    %v719 = vld [vmem:[%s1 + $0x84c] sm:$0xf]
    %v720 = vld [vmem:[%s1 + $0x850] sm:$0xf]
    %v721 = vld [vmem:[%s1 + $0x854] sm:$0xf]
    %v722 = vld [vmem:[%s1 + $0x858] sm:$0xf]
    %v723 = vld [vmem:[%s1 + $0x85c] sm:$0xf]
    %v724 = vld [vmem:[%s1 + $0x860] sm:$0xf]
    %v725 = vld [vmem:[%s1 + $0x864] sm:$0xf]
    %v726 = vld [vmem:[%s1 + $0x868] sm:$0xf]
    %v727 = vld [vmem:[%s1 + $0x86c] sm:$0xf]
    %v728 = vld [vmem:[%s1 + $0x870] sm:$0xf]
    %v729 = vld [vmem:[%s1 + $0x874] sm:$0xf]
    %v730 = vld [vmem:[%s1 + $0x878] sm:$0xf]
    %v731 = vld [vmem:[%s1 + $0x87c] sm:$0xf]
    %v732 = vld [vmem:[%s1 + $0x880] sm:$0xf]
    %v733 = vld [vmem:[%s1 + $0x884] sm:$0xf]
    %v734 = vld [vmem:[%s1 + $0x888] sm:$0xf]
    %v735 = vld [vmem:[%s1 + $0x88c] sm:$0xf]
    %v736 = vld [vmem:[%s1 + $0x890] sm:$0xf]
    %v737 = vld [vmem:[%s1 + $0x894] sm:$0xf]
    %v738 = vld [vmem:[%s1 + $0x898] sm:$0xf]
    %v739 = vld [vmem:[%s1 + $0x89c] sm:$0xf]
    %v740 = vld [vmem:[%s1 + $0x8a0] sm:$0xf]
    %v741 = vld [vmem:[%s1 + $0x8a4] sm:$0xf]
    %v742 = vld [vmem:[%s1 + $0x8a8] sm:$0xf]
    %v743 = vld [vmem:[%s1 + $0x8ac] sm:$0xf]
    %v744 = vld [vmem:[%s1 + $0x8b0] sm:$0xf]
    %v745 = vld [vmem:[%s1 + $0x8b4] sm:$0xf]
    %v746 = vld [vmem:[%s1 + $0x8b8] sm:$0xf]
    %v747 = vld [vmem:[%s1 + $0x8bc] sm:$0xf]
    %v748 = vld [vmem:[%s1 + $0x8c0] sm:$0xf]
    %v749 = vld [vmem:[%s1 + $0x8c4] sm:$0xf]
    %v750 = vld [vmem:[%s1 + $0x8c8] sm:$0xf]
    %v751 = vld [vmem:[%s1 + $0x8cc] sm:$0xf]
    %v752 = vld [vmem:[%s1 + $0x8d0] sm:$0xf]
    %v753 = vld [vmem:[%s1 + $0x8d4] sm:$0xf]
    %v754 = vld [vmem:[%s1 + $0x8d8] sm:$0xf]
    %v755 = vld [vmem:[%s1 + $0x8dc] sm:$0xf]
    %v756 = vld [vmem:[%s1 + $0x8e0] sm:$0xf]
    %v757 = vld [vmem:[%s1 + $0x8e4] sm:$0xf]
    %v758 = vld [vmem:[%s1 + $0x8e8] sm:$0xf]
    %v759 = vld [vmem:[%s1 + $0x8ec] sm:$0xf]
    %v760 = vld [vmem:[%s1 + $0x8f0] sm:$0xf]
    %v761 = vld [vmem:[%s1 + $0x8f4] sm:$0xf]
    %v762 = vld [vmem:[%s1 + $0x8f8] sm:$0xf]
    %v763 = vld [vmem:[%s1 + $0x8fc] sm:$0xf]
    %v764 = vld [vmem:[%s1 + $0x900] sm:$0xf]
    %v765 = vld [vmem:[%s1 + $0x904] sm:$0xf]
    %v766 = vld [vmem:[%s1 + $0x908] sm:$0xf]
    %v767 = vld [vmem:[%s1 + $0x90c] sm:$0xf]
    %v768 = vld [vmem:[%s1 + $0x910] sm:$0xf]
    %v769 = vld [vmem:[%s1 + $0x914] sm:$0xf]
    %v770 = vld [vmem:[%s1 + $0x918] sm:$0xf]
    %v771 = vld [vmem:[%s1 + $0x91c] sm:$0xf]
    %v772 = vld [vmem:[%s1 + $0x920] sm:$0xf]
    %v773 = vld [vmem:[%s1 + $0x924] sm:$0xf]
    %v774 = vld [vmem:[%s1 + $0x928] sm:$0xf]
    %v775 = vld [vmem:[%s1 + $0x92c] sm:$0xf]
    %v776 = vld [vmem:[%s1 + $0x930] sm:$0xf]
    %v777 = vld [vmem:[%s1 + $0x934] sm:$0xf]
    %v778 = vld [vmem:[%s1 + $0x938] sm:$0xf]
    %v779 = vld [vmem:[%s1 + $0x93c] sm:$0xf]
    %v780 = vld [vmem:[%s1 + $0x940] sm:$0xf]
    %v781 = vld [vmem:[%s1 + $0x944] sm:$0xf]
    %v782 = vld [vmem:[%s1 + $0x948] sm:$0xf]
    %v783 = vld [vmem:[%s1 + $0x94c] sm:$0xf]
    %v784 = vld [vmem:[%s1 + $0x950] sm:$0xf]
    %v785 = vld [vmem:[%s1 + $0x954] sm:$0xf]
    %v786 = vld [vmem:[%s1 + $0x958] sm:$0xf]
    %v787 = vld [vmem:[%s1 + $0x95c] sm:$0xf]
    %v788 = vld [vmem:[%s1 + $0x960] sm:$0xf]
    %v789 = vld [vmem:[%s1 + $0x964] sm:$0xf]
    %v790 = vld [vmem:[%s1 + $0x968] sm:$0xf]
    %v791 = vld [vmem:[%s1 + $0x96c] sm:$0xf]
    %v792 = vld [vmem:[%s1 + $0x970] sm:$0xf]
    %v793 = vld [vmem:[%s1 + $0x974] sm:$0xf]
    %v794 = vld [vmem:[%s1 + $0x978] sm:$0xf]
    %v795 = vld [vmem:[%s1 + $0x97c] sm:$0xf]
    %v796 = vld [vmem:[%s1 + $0x980] sm:$0xf]
    %v797 = vld [vmem:[%s1 + $0x984] sm:$0xf]
    %v798 = vld [vmem:[%s1 + $0x988] sm:$0xf]
    %v799 = vld [vmem:[%s1 + $0x98c] sm:$0xf]
    %v800 = vld [vmem:[%s1 + $0x990] sm:$0xf]
    %v801 = vld [vmem:[%s1 + $0x994] sm:$0xf]
    %v802 = vld [vmem:[%s1 + $0x998] sm:$0xf]
    %v803 = vld [vmem:[%s1 + $0x99c] sm:$0xf]
    %v804 = vld [vmem:[%s1 + $0x9a0] sm:$0xf]
    %v805 = vld [vmem:[%s1 + $0x9a4] sm:$0xf]
    %v806 = vld [vmem:[%s1 + $0x9a8] sm:$0xf]
    %v807 = vld [vmem:[%s1 + $0x9ac] sm:$0xf]
    %v808 = vld [vmem:[%s1 + $0x9b0] sm:$0xf]
    %v809 = vld [vmem:[%s1 + $0x9b4] sm:$0xf]
    %v810 = vld [vmem:[%s1 + $0x9b8] sm:$0xf]
    %v811 = vld [vmem:[%s1 + $0x9bc] sm:$0xf]
    %v812 = vld [vmem:[%s1 + $0x9c0] sm:$0xf]
    %v813 = vld [vmem:[%s1 + $0x9c4] sm:$0xf]
    %v814 = vld [vmem:[%s1 + $0x9c8] sm:$0xf]
    %v815 = vld [vmem:[%s1 + $0x9cc] sm:$0xf]
    %v816 = vld [vmem:[%s1 + $0x9d0] sm:$0xf]
    %v817 = vld [vmem:[%s1 + $0x9d4] sm:$0xf]
    %v818 = vld [vmem:[%s1 + $0x9d8] sm:$0xf]
    %v819 = vld [vmem:[%s1 + $0x9dc] sm:$0xf]
    %v820 = vld [vmem:[%s1 + $0x9e0] sm:$0xf]
    %v821 = vld [vmem:[%s1 + $0x9e4] sm:$0xf]
    %v822 = vld [vmem:[%s1 + $0x9e8] sm:$0xf]
    %v823 = vld [vmem:[%s1 + $0x9ec] sm:$0xf]
    %v824 = vld [vmem:[%s1 + $0x9f0] sm:$0xf]
    %v825 = vld [vmem:[%s1 + $0x9f4] sm:$0xf]
    %v826 = vld [vmem:[%s1 + $0x9f8] sm:$0xf]
    %v827 = vld [vmem:[%s1 + $0x9fc] sm:$0xf]
    %v828 = vld [vmem:[%s1 + $0xa00] sm:$0xf]
    %v829 = vld [vmem:[%s1 + $0xa04] sm:$0xf]
    %v830 = vld [vmem:[%s1 + $0xa08] sm:$0xf]
    %v831 = vld [vmem:[%s1 + $0xa0c] sm:$0xf]
    %v832 = vld [vmem:[%s1 + $0xa10] sm:$0xf]
    %v833 = vld [vmem:[%s1 + $0xa14] sm:$0xf]
    %v834 = vld [vmem:[%s1 + $0xa18] sm:$0xf]
    %v835 = vld [vmem:[%s1 + $0xa1c] sm:$0xf]
    %v836 = vld [vmem:[%s1 + $0xa20] sm:$0xf]
    %v837 = vld [vmem:[%s1 + $0xa24] sm:$0xf]
    %v838 = vld [vmem:[%s1 + $0xa28] sm:$0xf]
    %v839 = vld [vmem:[%s1 + $0xa2c] sm:$0xf]
    %v840 = vld [vmem:[%s1 + $0xa30] sm:$0xf]
    %v841 = vld [vmem:[%s1 + $0xa34] sm:$0xf]
    %v842 = vld [vmem:[%s1 + $0xa38] sm:$0xf]
    %v843 = vld [vmem:[%s1 + $0xa3c] sm:$0xf]
    %v844 = vld [vmem:[%s1 + $0xa40] sm:$0xf]
    %v845 = vld [vmem:[%s1 + $0xa44] sm:$0xf]
    %v846 = vld [vmem:[%s1 + $0xa48] sm:$0xf]
    %v847 = vld [vmem:[%s1 + $0xa4c] sm:$0xf]
    %v848 = vld [vmem:[%s1 + $0xa50] sm:$0xf]
    %v849 = vld [vmem:[%s1 + $0xa54] sm:$0xf]
    %v850 = vld [vmem:[%s1 + $0xa58] sm:$0xf]
    %v851 = vld [vmem:[%s1 + $0xa5c] sm:$0xf]
    %v852 = vld [vmem:[%s1 + $0xa60] sm:$0xf]
    %v853 = vld [vmem:[%s1 + $0xa64] sm:$0xf]
    %v854 = vld [vmem:[%s1 + $0xa68] sm:$0xf]
    %v855 = vld [vmem:[%s1 + $0xa6c] sm:$0xf]
    %v856 = vld [vmem:[%s1 + $0xa70] sm:$0xf]
    %v857 = vld [vmem:[%s1 + $0xa74] sm:$0xf]
    %v858 = vld [vmem:[%s1 + $0xa78] sm:$0xf]
    %v859 = vld [vmem:[%s1 + $0xa7c] sm:$0xf]
    %v860 = vld [vmem:[%s1 + $0xa80] sm:$0xf]
    %v861 = vld [vmem:[%s1 + $0xa84] sm:$0xf]
    %v862 = vld [vmem:[%s1 + $0xa88] sm:$0xf]
    %v863 = vld [vmem:[%s1 + $0xa8c] sm:$0xf]
    %v864 = vld [vmem:[%s1 + $0xa90] sm:$0xf]
    %v865 = vld [vmem:[%s1 + $0xa94] sm:$0xf]
    %v866 = vld [vmem:[%s1 + $0xa98] sm:$0xf]
    %v867 = vld [vmem:[%s1 + $0xa9c] sm:$0xf]
    %v868 = vld [vmem:[%s1 + $0xaa0] sm:$0xf]
    %v869 = vld [vmem:[%s1 + $0xaa4] sm:$0xf]
    %v870 = vld [vmem:[%s1 + $0xaa8] sm:$0xf]
    %v871 = vld [vmem:[%s1 + $0xaac] sm:$0xf]
    %v872 = vld [vmem:[%s1 + $0xab0] sm:$0xf]
    %v873 = vld [vmem:[%s1 + $0xab4] sm:$0xf]
    %v874 = vld [vmem:[%s1 + $0xab8] sm:$0xf]
    %v875 = vld [vmem:[%s1 + $0xabc] sm:$0xf]
    %v876 = vld [vmem:[%s1 + $0xac0] sm:$0xf]
    %v877 = vld [vmem:[%s1 + $0xac4] sm:$0xf]
    %v878 = vld [vmem:[%s1 + $0xac8] sm:$0xf]
    %v879 = vld [vmem:[%s1 + $0xacc] sm:$0xf]
    %v880 = vld [vmem:[%s1 + $0xad0] sm:$0xf]
    %v881 = vld [vmem:[%s1 + $0xad4] sm:$0xf]
    %v882 = vld [vmem:[%s1 + $0xad8] sm:$0xf]
    %v883 = vld [vmem:[%s1 + $0xadc] sm:$0xf]
    %v884 = vld [vmem:[%s1 + $0xae0] sm:$0xf]
    %v885 = vld [vmem:[%s1 + $0xae4] sm:$0xf]
    %v886 = vld [vmem:[%s1 + $0xae8] sm:$0xf]
    %v887 = vld [vmem:[%s1 + $0xaec] sm:$0xf]
    %v888 = vld [vmem:[%s1 + $0xaf0] sm:$0xf]
    %v889 = vld [vmem:[%s1 + $0xaf4] sm:$0xf]
    %v890 = vld [vmem:[%s1 + $0xaf8] sm:$0xf]
    %v891 = vld [vmem:[%s1 + $0xafc] sm:$0xf]
    %v892 = vld [vmem:[%s1 + $0xb00] sm:$0xf]
    %v893 = vld [vmem:[%s1 + $0xb04] sm:$0xf]
    %v894 = vld [vmem:[%s1 + $0xb08] sm:$0xf]
    %v895 = vld [vmem:[%s1 + $0xb0c] sm:$0xf]
    %v896 = vld [vmem:[%s1 + $0xb10] sm:$0xf]
    %v897 = vld [vmem:[%s1 + $0xb14] sm:$0xf]
    %v898 = vld [vmem:[%s1 + $0xb18] sm:$0xf]
    %v899 = vld [vmem:[%s1 + $0xb1c] sm:$0xf]
    %v900 = vld [vmem:[%s1 + $0xb20] sm:$0xf]
    %v901 = vld [vmem:[%s1 + $0xb24] sm:$0xf]
    %v902 = vld [vmem:[%s1 + $0xb28] sm:$0xf]
    %v903 = vld [vmem:[%s1 + $0xb2c] sm:$0xf]
    %v904 = vld [vmem:[%s1 + $0xb30] sm:$0xf]
    %v905 = vld [vmem:[%s1 + $0xb34] sm:$0xf]
    %v906 = vld [vmem:[%s1 + $0xb38] sm:$0xf]
    %v907 = vld [vmem:[%s1 + $0xb3c] sm:$0xf]
    %v908 = vld [vmem:[%s1 + $0xb40] sm:$0xf]
    %v909 = vld [vmem:[%s1 + $0xb44] sm:$0xf]
    %v910 = vld [vmem:[%s1 + $0xb48] sm:$0xf]
    %v911 = vld [vmem:[%s1 + $0xb4c] sm:$0xf]
    %v912 = vld [vmem:[%s1 + $0xb50] sm:$0xf]
    %v913 = vld [vmem:[%s1 + $0xb54] sm:$0xf]
    %v914 = vld [vmem:[%s1 + $0xb58] sm:$0xf]
    %v915 = vld [vmem:[%s1 + $0xb5c] sm:$0xf]
    %v916 = vld [vmem:[%s1 + $0xb60] sm:$0xf]
    %v917 = vld [vmem:[%s1 + $0xb64] sm:$0xf]
    %v918 = vld [vmem:[%s1 + $0xb68] sm:$0xf]
    %v919 = vld [vmem:[%s1 + $0xb6c] sm:$0xf]
    %v920 = vld [vmem:[%s1 + $0xb70] sm:$0xf]
    %v921 = vld [vmem:[%s1 + $0xb74] sm:$0xf]
    %v922 = vld [vmem:[%s1 + $0xb78] sm:$0xf]
    %v923 = vld [vmem:[%s1 + $0xb7c] sm:$0xf]
    %v924 = vld [vmem:[%s1 + $0xb80] sm:$0xf]
    %v925 = vld [vmem:[%s1 + $0xb84] sm:$0xf]
    %v926 = vld [vmem:[%s1 + $0xb88] sm:$0xf]
    %v927 = vld [vmem:[%s1 + $0xb8c] sm:$0xf]
    %v928 = vld [vmem:[%s1 + $0xb90] sm:$0xf]
    %v929 = vld [vmem:[%s1 + $0xb94] sm:$0xf]
    %v930 = vld [vmem:[%s1 + $0xb98] sm:$0xf]
    %v931 = vld [vmem:[%s1 + $0xb9c] sm:$0xf]
    %v932 = vld [vmem:[%s1 + $0xba0] sm:$0xf]
    %v933 = vld [vmem:[%s1 + $0xba4] sm:$0xf]
    %v934 = vld [vmem:[%s1 + $0xba8] sm:$0xf]
    %v935 = vld [vmem:[%s1 + $0xbac] sm:$0xf]
    %v936 = vld [vmem:[%s1 + $0xbb0] sm:$0xf]
    %v937 = vld [vmem:[%s1 + $0xbb4] sm:$0xf]
    %v938 = vld [vmem:[%s1 + $0xbb8] sm:$0xf]
    %v939 = vld [vmem:[%s1 + $0xbbc] sm:$0xf]
    %v940 = vld [vmem:[%s1 + $0xbc0] sm:$0xf]
    %v941 = vld [vmem:[%s1 + $0xbc4] sm:$0xf]
    %v942 = vld [vmem:[%s1 + $0xbc8] sm:$0xf]
    %v943 = vld [vmem:[%s1 + $0xbcc] sm:$0xf]
    %v944 = vld [vmem:[%s1 + $0xbd0] sm:$0xf]
    %v945 = vld [vmem:[%s1 + $0xbd4] sm:$0xf]
    %v946 = vld [vmem:[%s1 + $0xbd8] sm:$0xf]
    %v947 = vld [vmem:[%s1 + $0xbdc] sm:$0xf]
    %v948 = vld [vmem:[%s1 + $0xbe0] sm:$0xf]
    %v949 = vld [vmem:[%s1 + $0xbe4] sm:$0xf]
    %v950 = vld [vmem:[%s1 + $0xbe8] sm:$0xf]
    %v951 = vld [vmem:[%s1 + $0xbec] sm:$0xf]
    %v952 = vld [vmem:[%s1 + $0xbf0] sm:$0xf]
    %v953 = vld [vmem:[%s1 + $0xbf4] sm:$0xf]
    %v954 = vld [vmem:[%s1 + $0xbf8] sm:$0xf]
    %v955 = vld [vmem:[%s1 + $0xbfc] sm:$0xf]
    %v956 = vld [vmem:[%s1 + $0xc00] sm:$0xf]
    %v957 = vld [vmem:[%s1 + $0xc04] sm:$0xf]
    %v958 = vld [vmem:[%s1 + $0xc08] sm:$0xf]
    %v959 = vld [vmem:[%s1 + $0xc0c] sm:$0xf]
    %v960 = vld [vmem:[%s1 + $0xc10] sm:$0xf]
    %v961 = vld [vmem:[%s1 + $0xc14] sm:$0xf]
    %v962 = vld [vmem:[%s1 + $0xc18] sm:$0xf]
    %v963 = vld [vmem:[%s1 + $0xc1c] sm:$0xf]
    %v964 = vld [vmem:[%s1 + $0xc20] sm:$0xf]
    %v965 = vld [vmem:[%s1 + $0xc24] sm:$0xf]
    %v966 = vld [vmem:[%s1 + $0xc28] sm:$0xf]
    %v967 = vld [vmem:[%s1 + $0xc2c] sm:$0xf]
    %v968 = vld [vmem:[%s1 + $0xc30] sm:$0xf]
    %v969 = vld [vmem:[%s1 + $0xc34] sm:$0xf]
    %v970 = vld [vmem:[%s1 + $0xc38] sm:$0xf]
    %v971 = vld [vmem:[%s1 + $0xc3c] sm:$0xf]
    %v972 = vld [vmem:[%s1 + $0xc40] sm:$0xf]
    %v973 = vld [vmem:[%s1 + $0xc44] sm:$0xf]
    %v974 = vld [vmem:[%s1 + $0xc48] sm:$0xf]
    %v975 = vld [vmem:[%s1 + $0xc4c] sm:$0xf]
    %v976 = vld [vmem:[%s1 + $0xc50] sm:$0xf]
    %v977 = vld [vmem:[%s1 + $0xc54] sm:$0xf]
    %v978 = vld [vmem:[%s1 + $0xc58] sm:$0xf]
    %v979 = vld [vmem:[%s1 + $0xc5c] sm:$0xf]
    %v980 = vld [vmem:[%s1 + $0xc60] sm:$0xf]
    %v981 = vld [vmem:[%s1 + $0xc64] sm:$0xf]
    %v982 = vld [vmem:[%s1 + $0xc68] sm:$0xf]
    %v983 = vld [vmem:[%s1 + $0xc6c] sm:$0xf]
    %v984 = vld [vmem:[%s1 + $0xc70] sm:$0xf]
    %v985 = vld [vmem:[%s1 + $0xc74] sm:$0xf]
    %v986 = vld [vmem:[%s1 + $0xc78] sm:$0xf]
    %v987 = vld [vmem:[%s1 + $0xc7c] sm:$0xf]
    %v988 = vld [vmem:[%s1 + $0xc80] sm:$0xf]
    %v989 = vld [vmem:[%s1 + $0xc84] sm:$0xf]
    %v990 = vld [vmem:[%s1 + $0xc88] sm:$0xf]
    %v991 = vld [vmem:[%s1 + $0xc8c] sm:$0xf]
    %v992 = vld [vmem:[%s1 + $0xc90] sm:$0xf]
    %v993 = vld [vmem:[%s1 + $0xc94] sm:$0xf]
    %v994 = vld [vmem:[%s1 + $0xc98] sm:$0xf]
    %v995 = vld [vmem:[%s1 + $0xc9c] sm:$0xf]
    %v996 = vld [vmem:[%s1 + $0xca0] sm:$0xf]
    %v997 = vld [vmem:[%s1 + $0xca4] sm:$0xf]
    %v998 = vld [vmem:[%s1 + $0xca8] sm:$0xf]
    %v999 = vld [vmem:[%s1 + $0xcac] sm:$0xf]
    %v1000 = vld [vmem:[%s1 + $0xcb0] sm:$0xf]
    %v1001 = vld [vmem:[%s1 + $0xcb4] sm:$0xf]
    %v1002 = vld [vmem:[%s1 + $0xcb8] sm:$0xf]
    %v1003 = vld [vmem:[%s1 + $0xcbc] sm:$0xf]
    %v1004 = vld [vmem:[%s1 + $0xcc0] sm:$0xf]
    %v1005 = vld [vmem:[%s1 + $0xcc4] sm:$0xf]
    %v1006 = vld [vmem:[%s1 + $0xcc8] sm:$0xf]
    %v1007 = vld [vmem:[%s1 + $0xccc] sm:$0xf]
    %v1008 = vld [vmem:[%s1 + $0xcd0] sm:$0xf]
    %v1009 = vld [vmem:[%s1 + $0xcd4] sm:$0xf]
    %v1010 = vld [vmem:[%s1 + $0xcd8] sm:$0xf]
    %v1011 = vld [vmem:[%s1 + $0xcdc] sm:$0xf]
    %v1012 = vld [vmem:[%s1 + $0xce0] sm:$0xf]
    %v1013 = vld [vmem:[%s1 + $0xce4] sm:$0xf]
    %v1014 = vld [vmem:[%s1 + $0xce8] sm:$0xf]
    %v1015 = vld [vmem:[%s1 + $0xcec] sm:$0xf]
    %v1016 = vld [vmem:[%s1 + $0xcf0] sm:$0xf]
    %v1017 = vld [vmem:[%s1 + $0xcf4] sm:$0xf]
    %v1018 = vld [vmem:[%s1 + $0xcf8] sm:$0xf]
    %v1019 = vld [vmem:[%s1 + $0xcfc] sm:$0xf]
    %v1020 = vld [vmem:[%s1 + $0xd00] sm:$0xf]
    %v1021 = vld [vmem:[%s1 + $0xd04] sm:$0xf]
    %v1022 = vld [vmem:[%s1 + $0xd08] sm:$0xf]
    %v1023 = vld [vmem:[%s1 + $0xd0c] sm:$0xf]
    %v1024 = vld [vmem:[%s1 + $0xd10] sm:$0xf]
    %v1025 = vld [vmem:[%s1 + $0xd14] sm:$0xf]
    %v1026 = vld [vmem:[%s1 + $0xd18] sm:$0xf]
    %v1027 = vld [vmem:[%s1 + $0xd1c] sm:$0xf]
    %v1028 = vld [vmem:[%s1 + $0xd20] sm:$0xf]
    %v1029 = vld [vmem:[%s1 + $0xd24] sm:$0xf]
    %v1030 = vld [vmem:[%s1 + $0xd28] sm:$0xf]
    %v1031 = vld [vmem:[%s1 + $0xd2c] sm:$0xf]
    %v1032 = vld [vmem:[%s1 + $0xd30] sm:$0xf]
    %v1033 = vld [vmem:[%s1 + $0xd34] sm:$0xf]
    %v1034 = vld [vmem:[%s1 + $0xd38] sm:$0xf]
    %v1035 = vld [vmem:[%s1 + $0xd3c] sm:$0xf]
    %v1036 = vld [vmem:[%s1 + $0xd40] sm:$0xf]
    %v1037 = vld [vmem:[%s1 + $0xd44] sm:$0xf]
    %v1038 = vld [vmem:[%s1 + $0xd48] sm:$0xf]
    %v1039 = vld [vmem:[%s1 + $0xd4c] sm:$0xf]
    %v1040 = vld [vmem:[%s1 + $0xd50] sm:$0xf]
    %v1041 = vld [vmem:[%s1 + $0xd54] sm:$0xf]
    %v1042 = vld [vmem:[%s1 + $0xd58] sm:$0xf]
    %v1043 = vld [vmem:[%s1 + $0xd5c] sm:$0xf]
    %v1044 = vld [vmem:[%s1 + $0xd60] sm:$0xf]
    %v1045 = vld [vmem:[%s1 + $0xd64] sm:$0xf]
    %v1046 = vld [vmem:[%s1 + $0xd68] sm:$0xf]
    %v1047 = vld [vmem:[%s1 + $0xd6c] sm:$0xf]
    %v1048 = vld [vmem:[%s1 + $0xd70] sm:$0xf]
    %v1049 = vld [vmem:[%s1 + $0xd74] sm:$0xf]
    %v1050 = vld [vmem:[%s1 + $0xd78] sm:$0xf]
    %v1051 = vld [vmem:[%s1 + $0xd7c] sm:$0xf]
    %v1052 = vld [vmem:[%s1 + $0xd80] sm:$0xf]
    %v1053 = vld [vmem:[%s1 + $0xd84] sm:$0xf]
    %v1054 = vld [vmem:[%s1 + $0xd88] sm:$0xf]
    %v1055 = vld [vmem:[%s1 + $0xd8c] sm:$0xf]
    %v1056 = vld [vmem:[%s1 + $0xd90] sm:$0xf]
    %v1057 = vld [vmem:[%s1 + $0xd94] sm:$0xf]
    %v1058 = vld [vmem:[%s1 + $0xd98] sm:$0xf]
    %v1059 = vld [vmem:[%s1 + $0xd9c] sm:$0xf]
    %v1060 = vld [vmem:[%s1 + $0xda0] sm:$0xf]
    %v1061 = vld [vmem:[%s1 + $0xda4] sm:$0xf]
    %v1062 = vld [vmem:[%s1 + $0xda8] sm:$0xf]
    %v1063 = vld [vmem:[%s1 + $0xdac] sm:$0xf]
    %v1064 = vld [vmem:[%s1 + $0xdb0] sm:$0xf]
    %v1065 = vld [vmem:[%s1 + $0xdb4] sm:$0xf]
    %v1066 = vld [vmem:[%s1 + $0xdb8] sm:$0xf]
    %v1067 = vld [vmem:[%s1 + $0xdbc] sm:$0xf]
    %v1068 = vld [vmem:[%s1 + $0xdc0] sm:$0xf]
    %v1069 = vld [vmem:[%s1 + $0xdc4] sm:$0xf]
    %v1070 = vld [vmem:[%s1 + $0xdc8] sm:$0xf]
    %v1071 = vld [vmem:[%s1 + $0xdcc] sm:$0xf]
    %v1072 = vld [vmem:[%s1 + $0xdd0] sm:$0xf]
    %v1073 = vld [vmem:[%s1 + $0xdd4] sm:$0xf]
    %v1074 = vld [vmem:[%s1 + $0xdd8] sm:$0xf]
    %v1075 = vld [vmem:[%s1 + $0xddc] sm:$0xf]
    %v1076 = vld [vmem:[%s1 + $0xde0] sm:$0xf]
    %v1077 = vld [vmem:[%s1 + $0xde4] sm:$0xf]
    %v1078 = vld [vmem:[%s1 + $0xde8] sm:$0xf]
    %v1079 = vld [vmem:[%s1 + $0xdec] sm:$0xf]
    %v1080 = vld [vmem:[%s1 + $0xdf0] sm:$0xf]
    %v1081 = vld [vmem:[%s1 + $0xdf4] sm:$0xf]
    %v1082 = vld [vmem:[%s1 + $0xdf8] sm:$0xf]
    %v1083 = vld [vmem:[%s1 + $0xdfc] sm:$0xf]
    %v1084 = vld [vmem:[%s1 + $0xe00] sm:$0xf]
    %v1085 = vld [vmem:[%s1 + $0xe04] sm:$0xf]
    %v1086 = vld [vmem:[%s1 + $0xe08] sm:$0xf]
    %v1087 = vld [vmem:[%s1 + $0xe0c] sm:$0xf]
    %v1088 = vld [vmem:[%s1 + $0xe10] sm:$0xf]
    %v1089 = vld [vmem:[%s1 + $0xe14] sm:$0xf]
    %v1090 = vld [vmem:[%s1 + $0xe18] sm:$0xf]
    %v1091 = vld [vmem:[%s1 + $0xe1c] sm:$0xf]
    %v1092 = vld [vmem:[%s1 + $0xe20] sm:$0xf]
    %v1093 = vld [vmem:[%s1 + $0xe24] sm:$0xf]
    %v1094 = vld [vmem:[%s1 + $0xe28] sm:$0xf]
    %v1095 = vld [vmem:[%s1 + $0xe2c] sm:$0xf]
    %v1096 = vld [vmem:[%s1 + $0xe30] sm:$0xf]
    %v1097 = vld [vmem:[%s1 + $0xe34] sm:$0xf]
    %v1098 = vld [vmem:[%s1 + $0xe38] sm:$0xf]
    %v1099 = vld [vmem:[%s1 + $0xe3c] sm:$0xf]
    %v1100 = vld [vmem:[%s1 + $0xe40] sm:$0xf]
    %v1101 = vld [vmem:[%s1 + $0xe44] sm:$0xf]
    %v1102 = vld [vmem:[%s1 + $0xe48] sm:$0xf]
    %v1103 = vld [vmem:[%s1 + $0xe4c] sm:$0xf]
    %v1104 = vld [vmem:[%s1 + $0xe50] sm:$0xf]
    %v1105 = vld [vmem:[%s1 + $0xe54] sm:$0xf]
    %v1106 = vld [vmem:[%s1 + $0xe58] sm:$0xf]
    %v1107 = vld [vmem:[%s1 + $0xe5c] sm:$0xf]
    %v1108 = vld [vmem:[%s1 + $0xe60] sm:$0xf]
    %v1109 = vld [vmem:[%s1 + $0xe64] sm:$0xf]
    %v1110 = vld [vmem:[%s1 + $0xe68] sm:$0xf]
    %v1111 = vld [vmem:[%s1 + $0xe6c] sm:$0xf]
    %v1112 = vld [vmem:[%s1 + $0xe70] sm:$0xf]
    %v1113 = vld [vmem:[%s1 + $0xe74] sm:$0xf]
    %v1114 = vld [vmem:[%s1 + $0xe78] sm:$0xf]
    %v1115 = vld [vmem:[%s1 + $0xe7c] sm:$0xf]
    %v1116 = vld [vmem:[%s1 + $0xe80] sm:$0xf]
    %v1117 = vld [vmem:[%s1 + $0xe84] sm:$0xf]
    %v1118 = vld [vmem:[%s1 + $0xe88] sm:$0xf]
    %v1119 = vld [vmem:[%s1 + $0xe8c] sm:$0xf]
    %v1120 = vld [vmem:[%s1 + $0xe90] sm:$0xf]
    %v1121 = vld [vmem:[%s1 + $0xe94] sm:$0xf]
    %v1122 = vld [vmem:[%s1 + $0xe98] sm:$0xf]
    %v1123 = vld [vmem:[%s1 + $0xe9c] sm:$0xf]
    %v1124 = vld [vmem:[%s1 + $0xea0] sm:$0xf]
    %v1125 = vld [vmem:[%s1 + $0xea4] sm:$0xf]
    %v1126 = vld [vmem:[%s1 + $0xea8] sm:$0xf]
    %v1127 = vld [vmem:[%s1 + $0xeac] sm:$0xf]
    %v1128 = vld [vmem:[%s1 + $0xeb0] sm:$0xf]
    %v1129 = vld [vmem:[%s1 + $0xeb4] sm:$0xf]
    %v1130 = vld [vmem:[%s1 + $0xeb8] sm:$0xf]
    %v1131 = vld [vmem:[%s1 + $0xebc] sm:$0xf]
    %v1132 = vld [vmem:[%s1 + $0xec0] sm:$0xf]
    %v1133 = vld [vmem:[%s1 + $0xec4] sm:$0xf]
    %v1134 = vld [vmem:[%s1 + $0xec8] sm:$0xf]
    %v1135 = vld [vmem:[%s1 + $0xecc] sm:$0xf]
    %v1136 = vld [vmem:[%s1 + $0xed0] sm:$0xf]
    %v1137 = vld [vmem:[%s1 + $0xed4] sm:$0xf]
    %v1138 = vld [vmem:[%s1 + $0xed8] sm:$0xf]
    %v1139 = vld [vmem:[%s1 + $0xedc] sm:$0xf]
    %v1140 = vld [vmem:[%s1 + $0xee0] sm:$0xf]
    %v1141 = vld [vmem:[%s1 + $0xee4] sm:$0xf]
    %v1142 = vld [vmem:[%s1 + $0xee8] sm:$0xf]
    %v1143 = vld [vmem:[%s1 + $0xeec] sm:$0xf]
    %v1144 = vld [vmem:[%s1 + $0xef0] sm:$0xf]
    %v1145 = vld [vmem:[%s1 + $0xef4] sm:$0xf]
    %v1146 = vld [vmem:[%s1 + $0xef8] sm:$0xf]
    %v1147 = vld [vmem:[%s1 + $0xefc] sm:$0xf]
    %v1148 = vld [vmem:[%s1 + $0xf00] sm:$0xf]
    %v1149 = vld [vmem:[%s1 + $0xf04] sm:$0xf]
    %v1150 = vld [vmem:[%s1 + $0xf08] sm:$0xf]
    %v1151 = vld [vmem:[%s1 + $0xf0c] sm:$0xf]
    %v1152 = vld [vmem:[%s1 + $0xf10] sm:$0xf]
    %v1153 = vld [vmem:[%s1 + $0xf14] sm:$0xf]
    %v1154 = vld [vmem:[%s1 + $0xf18] sm:$0xf]
    %v1155 = vld [vmem:[%s1 + $0xf1c] sm:$0xf]
    %v1156 = vld [vmem:[%s1 + $0xf20] sm:$0xf]
    %v1157 = vld [vmem:[%s1 + $0xf24] sm:$0xf]
    %v1158 = vld [vmem:[%s1 + $0xf28] sm:$0xf]
    %v1159 = vld [vmem:[%s1 + $0xf2c] sm:$0xf]
    %v1160 = vld [vmem:[%s1 + $0xf30] sm:$0xf]
    %v1161 = vld [vmem:[%s1 + $0xf34] sm:$0xf]
    %v1162 = vld [vmem:[%s1 + $0xf38] sm:$0xf]
    %v1163 = vld [vmem:[%s1 + $0xf3c] sm:$0xf]
    %v1164 = vld [vmem:[%s1 + $0xf40] sm:$0xf]
    %v1165 = vld [vmem:[%s1 + $0xf44] sm:$0xf]
    %v1166 = vld [vmem:[%s1 + $0xf48] sm:$0xf]
    %v1167 = vld [vmem:[%s1 + $0xf4c] sm:$0xf]
    %v1168 = vld [vmem:[%s1 + $0xf50] sm:$0xf]
    %v1169 = vld [vmem:[%s1 + $0xf54] sm:$0xf]
    %v1170 = vld [vmem:[%s1 + $0xf58] sm:$0xf]
    %v1171 = vld [vmem:[%s1 + $0xf5c] sm:$0xf]
    %v1172 = vld [vmem:[%s1 + $0xf60] sm:$0xf]
    %v1173 = vld [vmem:[%s1 + $0xf64] sm:$0xf]
    %v1174 = vld [vmem:[%s1 + $0xf68] sm:$0xf]
    %v1175 = vld [vmem:[%s1 + $0xf6c] sm:$0xf]
    %v1176 = vld [vmem:[%s1 + $0xf70] sm:$0xf]
    %v1177 = vld [vmem:[%s1 + $0xf74] sm:$0xf]
    %v1178 = vld [vmem:[%s1 + $0xf78] sm:$0xf]
    %v1179 = vld [vmem:[%s1 + $0xf7c] sm:$0xf]
    %v1180 = vld [vmem:[%s1 + $0xf80] sm:$0xf]
    %v1181 = vld [vmem:[%s1 + $0xf84] sm:$0xf]
    %v1182 = vld [vmem:[%s1 + $0xf88] sm:$0xf]
    %v1183 = vld [vmem:[%s1 + $0xf8c] sm:$0xf]
    %v1184 = vld [vmem:[%s1 + $0xf90] sm:$0xf]
    %v1185 = vld [vmem:[%s1 + $0xf94] sm:$0xf]
    %v1186 = vld [vmem:[%s1 + $0xf98] sm:$0xf]
    %v1187 = vld [vmem:[%s1 + $0xf9c] sm:$0xf]
    %v1188 = vld [vmem:[%s1 + $0xfa0] sm:$0xf]
    %v1189 = vld [vmem:[%s1 + $0xfa4] sm:$0xf]
    %v1190 = vld [vmem:[%s1 + $0xfa8] sm:$0xf]
    %v1191 = vld [vmem:[%s1 + $0xfac] sm:$0xf]
    %v1192 = vld [vmem:[%s1 + $0xfb0] sm:$0xf]
    %v1193 = vld [vmem:[%s1 + $0xfb4] sm:$0xf]
    %v1194 = vld [vmem:[%s1 + $0xfb8] sm:$0xf]
    %v1195 = vld [vmem:[%s1 + $0xfbc] sm:$0xf]
    %v1196 = vld [vmem:[%s1 + $0xfc0] sm:$0xf]
    %v1197 = vld [vmem:[%s1 + $0xfc4] sm:$0xf]
    %v1198 = vld [vmem:[%s1 + $0xfc8] sm:$0xf]
    %v1199 = vld [vmem:[%s1 + $0xfcc] sm:$0xf]
    %v1200 = vld [vmem:[%s1 + $0xfd0] sm:$0xf]
    %v1201 = vld [vmem:[%s1 + $0xfd4] sm:$0xf]
    %v1202 = vld [vmem:[%s1 + $0xfd8] sm:$0xf]
    %v1203 = vld [vmem:[%s1 + $0xfdc] sm:$0xf]
    %v1204 = vld [vmem:[%s1 + $0xfe0] sm:$0xf]
    %v1205 = vld [vmem:[%s1 + $0xfe4] sm:$0xf]
    %v1206 = vld [vmem:[%s1 + $0xfe8] sm:$0xf]
    %v1207 = vld [vmem:[%s1 + $0xfec] sm:$0xf]
    %v1208 = vld [vmem:[%s1 + $0xff0] sm:$0xf]
    %v1209 = vld [vmem:[%s1 + $0xff4] sm:$0xf]
    %v1210 = vld [vmem:[%s1 + $0xff8] sm:$0xf]
    %v1211 = vld [vmem:[%s1 + $0xffc] sm:$0xf]
    %v1212 = vld [vmem:[%s1 + $0x1000] sm:$0xf]
    %v1213 = vld [vmem:[%s1 + $0x1004] sm:$0xf]
    %v1214 = vld [vmem:[%s1 + $0x1008] sm:$0xf]
    %v1215 = vld [vmem:[%s1 + $0x100c] sm:$0xf]
    %v1216 = vld [vmem:[%s1 + $0x1010] sm:$0xf]
    %v1217 = vld [vmem:[%s1 + $0x1014] sm:$0xf]
    %v1218 = vld [vmem:[%s1 + $0x1018] sm:$0xf]
    %v1219 = vld [vmem:[%s1 + $0x101c] sm:$0xf]
    %v1220 = vld [vmem:[%s1 + $0x1020] sm:$0xf]
    %v1221 = vld [vmem:[%s1 + $0x1024] sm:$0xf]
    %v1222 = vld [vmem:[%s1 + $0x1028] sm:$0xf]
    %v1223 = vld [vmem:[%s1 + $0x102c] sm:$0xf]
    %v1224 = vld [vmem:[%s1 + $0x1030] sm:$0xf]
    %v1225 = vld [vmem:[%s1 + $0x1034] sm:$0xf]
    %v1226 = vld [vmem:[%s1 + $0x1038] sm:$0xf]
    %v1227 = vld [vmem:[%s1 + $0x103c] sm:$0xf]
    %v1228 = vld [vmem:[%s1 + $0x1040] sm:$0xf]
    %v1229 = vld [vmem:[%s1 + $0x1044] sm:$0xf]
    %v1230 = vld [vmem:[%s1 + $0x1048] sm:$0xf]
    %v1231 = vld [vmem:[%s1 + $0x104c] sm:$0xf]
    %v1232 = vld [vmem:[%s1 + $0x1050] sm:$0xf]
    %v1233 = vld [vmem:[%s1 + $0x1054] sm:$0xf]
    %v1234 = vld [vmem:[%s1 + $0x1058] sm:$0xf]
    %v1235 = vld [vmem:[%s1 + $0x105c] sm:$0xf]
    %v1236 = vld [vmem:[%s1 + $0x1060] sm:$0xf]
    %v1237 = vld [vmem:[%s1 + $0x1064] sm:$0xf]
    %v1238 = vld [vmem:[%s1 + $0x1068] sm:$0xf]
    %v1239 = vld [vmem:[%s1 + $0x106c] sm:$0xf]
    %v1240 = vld [vmem:[%s1 + $0x1070] sm:$0xf]
    %v1241 = vld [vmem:[%s1 + $0x1074] sm:$0xf]
    %v1242 = vld [vmem:[%s1 + $0x1078] sm:$0xf]
    %v1243 = vld [vmem:[%s1 + $0x107c] sm:$0xf]
    %v1244 = vld [vmem:[%s1 + $0x1080] sm:$0xf]
    %v1245 = vld [vmem:[%s1 + $0x1084] sm:$0xf]
    %v1246 = vld [vmem:[%s1 + $0x1088] sm:$0xf]
    %v1247 = vld [vmem:[%s1 + $0x108c] sm:$0xf]
    %v1248 = vld [vmem:[%s1 + $0x1090] sm:$0xf]
    %v1249 = vld [vmem:[%s1 + $0x1094] sm:$0xf]
    %v1250 = vld [vmem:[%s1 + $0x1098] sm:$0xf]
    %v1251 = vld [vmem:[%s1 + $0x109c] sm:$0xf]
    %v1252 = vld [vmem:[%s1 + $0x10a0] sm:$0xf]
    %v1253 = vld [vmem:[%s1 + $0x10a4] sm:$0xf]
    %v1254 = vld [vmem:[%s1 + $0x10a8] sm:$0xf]
    %v1255 = vld [vmem:[%s1 + $0x10ac] sm:$0xf]
    %v1256 = vld [vmem:[%s1 + $0x10b0] sm:$0xf]
    %v1257 = vld [vmem:[%s1 + $0x10b4] sm:$0xf]
    %v1258 = vld [vmem:[%s1 + $0x10b8] sm:$0xf]
    %v1259 = vld [vmem:[%s1 + $0x10bc] sm:$0xf]
    %v1260 = vld [vmem:[%s1 + $0x10c0] sm:$0xf]
    %v1261 = vld [vmem:[%s1 + $0x10c4] sm:$0xf]
    %v1262 = vld [vmem:[%s1 + $0x10c8] sm:$0xf]
    %v1263 = vld [vmem:[%s1 + $0x10cc] sm:$0xf]
    %v1264 = vld [vmem:[%s1 + $0x10d0] sm:$0xf]
    %v1265 = vld [vmem:[%s1 + $0x10d4] sm:$0xf]
    %v1266 = vld [vmem:[%s1 + $0x10d8] sm:$0xf]
    %v1267 = vld [vmem:[%s1 + $0x10dc] sm:$0xf]
    %v1268 = vld [vmem:[%s1 + $0x10e0] sm:$0xf]
    %v1269 = vld [vmem:[%s1 + $0x10e4] sm:$0xf]
    %v1270 = vld [vmem:[%s1 + $0x10e8] sm:$0xf]
    %v1271 = vld [vmem:[%s1 + $0x10ec] sm:$0xf]
    %v1272 = vld [vmem:[%s1 + $0x10f0] sm:$0xf]
    %v1273 = vld [vmem:[%s1 + $0x10f4] sm:$0xf]
    %v1274 = vld [vmem:[%s1 + $0x10f8] sm:$0xf]
    %v1275 = vld [vmem:[%s1 + $0x10fc] sm:$0xf]
    %v1276 = vld [vmem:[%s1 + $0x1100] sm:$0xf]
    %v1277 = vld [vmem:[%s1 + $0x1104] sm:$0xf]
    %v1278 = vld [vmem:[%s1 + $0x1108] sm:$0xf]
    %v1279 = vld [vmem:[%s1 + $0x110c] sm:$0xf]
    %v1280 = vld [vmem:[%s1 + $0x1110] sm:$0xf]
    %v1281 = vld [vmem:[%s1 + $0x1114] sm:$0xf]
    %v1282 = vld [vmem:[%s1 + $0x1118] sm:$0xf]
    %v1283 = vld [vmem:[%s1 + $0x111c] sm:$0xf]
    %v1284 = vld [vmem:[%s1 + $0x1120] sm:$0xf]
    %v1285 = vld [vmem:[%s1 + $0x1124] sm:$0xf]
    %v1286 = vld [vmem:[%s1 + $0x1128] sm:$0xf]
    %v1287 = vld [vmem:[%s1 + $0x112c] sm:$0xf]
    %v1288 = vld [vmem:[%s1 + $0x1130] sm:$0xf]
    %v1289 = vld [vmem:[%s1 + $0x1134] sm:$0xf]
    %v1290 = vld [vmem:[%s1 + $0x1138] sm:$0xf]
    %v1291 = vld [vmem:[%s1 + $0x113c] sm:$0xf]
    %v1292 = vld [vmem:[%s1 + $0x1140] sm:$0xf]
    %v1293 = vld [vmem:[%s1 + $0x1144] sm:$0xf]
    %v1294 = vld [vmem:[%s1 + $0x1148] sm:$0xf]
    %v1295 = vld [vmem:[%s1 + $0x114c] sm:$0xf]
    %v1296 = vld [vmem:[%s1 + $0x1150] sm:$0xf]
    %v1297 = vld [vmem:[%s1 + $0x1154] sm:$0xf]
    %v1298 = vld [vmem:[%s1 + $0x1158] sm:$0xf]
    %v1299 = vld [vmem:[%s1 + $0x115c] sm:$0xf]
    %v1300 = vld [vmem:[%s1 + $0x1160] sm:$0xf]
    %v1301 = vld [vmem:[%s1 + $0x1164] sm:$0xf]
    %v1302 = vld [vmem:[%s1 + $0x1168] sm:$0xf]
    %v1303 = vld [vmem:[%s1 + $0x116c] sm:$0xf]
    %v1304 = vld [vmem:[%s1 + $0x1170] sm:$0xf]
    %v1305 = vld [vmem:[%s1 + $0x1174] sm:$0xf]
    %v1306 = vld [vmem:[%s1 + $0x1178] sm:$0xf]
    %v1307 = vld [vmem:[%s1 + $0x117c] sm:$0xf]
    %v1308 = vld [vmem:[%s1 + $0x1180] sm:$0xf]
    %v1309 = vld [vmem:[%s1 + $0x1184] sm:$0xf]
    %v1310 = vld [vmem:[%s1 + $0x1188] sm:$0xf]
    %v1311 = vld [vmem:[%s1 + $0x118c] sm:$0xf]
    %v1312 = vld [vmem:[%s1 + $0x1190] sm:$0xf]
    %v1313 = vld [vmem:[%s1 + $0x1194] sm:$0xf]
    %v1314 = vld [vmem:[%s1 + $0x1198] sm:$0xf]
    %v1315 = vld [vmem:[%s1 + $0x119c] sm:$0xf]
    %v1316 = vld [vmem:[%s1 + $0x11a0] sm:$0xf]
    %v1317 = vld [vmem:[%s1 + $0x11a4] sm:$0xf]
    %v1318 = vld [vmem:[%s1 + $0x11a8] sm:$0xf]
    %v1319 = vld [vmem:[%s1 + $0x11ac] sm:$0xf]
    %v1320 = vld [vmem:[%s1 + $0x11b0] sm:$0xf]
    %v1321 = vld [vmem:[%s1 + $0x11b4] sm:$0xf]
    %v1322 = vld [vmem:[%s1 + $0x11b8] sm:$0xf]
    %v1323 = vld [vmem:[%s1 + $0x11bc] sm:$0xf]
    %v1324 = vld [vmem:[%s1 + $0x11c0] sm:$0xf]
    %v1325 = vld [vmem:[%s1 + $0x11c4] sm:$0xf]
    %v1326 = vld [vmem:[%s1 + $0x11c8] sm:$0xf]
    %v1327 = vld [vmem:[%s1 + $0x11cc] sm:$0xf]
    %v1328 = vld [vmem:[%s1 + $0x11d0] sm:$0xf]
    %v1329 = vld [vmem:[%s1 + $0x11d4] sm:$0xf]
    %v1330 = vld [vmem:[%s1 + $0x11d8] sm:$0xf]
    %v1331 = vld [vmem:[%s1 + $0x11dc] sm:$0xf]
    %v1332 = vld [vmem:[%s1 + $0x11e0] sm:$0xf]
    %v1333 = vld [vmem:[%s1 + $0x11e4] sm:$0xf]
    %v1334 = vld [vmem:[%s1 + $0x11e8] sm:$0xf]
    %v1335 = vld [vmem:[%s1 + $0x11ec] sm:$0xf]
    %v1336 = vld [vmem:[%s1 + $0x11f0] sm:$0xf]
    %v1337 = vld [vmem:[%s1 + $0x11f4] sm:$0xf]
    %v1338 = vld [vmem:[%s1 + $0x11f8] sm:$0xf]
    %v1339 = vld [vmem:[%s1 + $0x11fc] sm:$0xf]
    %v1340 = vld [vmem:[%s1 + $0x1200] sm:$0xf]
    %v1341 = vld [vmem:[%s1 + $0x1204] sm:$0xf]
    %v1342 = vld [vmem:[%s1 + $0x1208] sm:$0xf]
    %v1343 = vld [vmem:[%s1 + $0x120c] sm:$0xf]
    %v1344 = vld [vmem:[%s1 + $0x1210] sm:$0xf]
    %v1345 = vld [vmem:[%s1 + $0x1214] sm:$0xf]
    %v1346 = vld [vmem:[%s1 + $0x1218] sm:$0xf]
    %v1347 = vld [vmem:[%s1 + $0x121c] sm:$0xf]
    %v1348 = vld [vmem:[%s1 + $0x1220] sm:$0xf]
    %v1349 = vld [vmem:[%s1 + $0x1224] sm:$0xf]
    %v1350 = vld [vmem:[%s1 + $0x1228] sm:$0xf]
    %v1351 = vld [vmem:[%s1 + $0x122c] sm:$0xf]
    %v1352 = vld [vmem:[%s1 + $0x1230] sm:$0xf]
    %v1353 = vld [vmem:[%s1 + $0x1234] sm:$0xf]
    %v1354 = vld [vmem:[%s1 + $0x1238] sm:$0xf]
    %v1355 = vld [vmem:[%s1 + $0x123c] sm:$0xf]
    %v1356 = vld [vmem:[%s1 + $0x1240] sm:$0xf]
    %v1357 = vld [vmem:[%s1 + $0x1244] sm:$0xf]
    %v1358 = vld [vmem:[%s1 + $0x1248] sm:$0xf]
    %v1359 = vld [vmem:[%s1 + $0x124c] sm:$0xf]
    %v1360 = vld [vmem:[%s1 + $0x1250] sm:$0xf]
    %v1361 = vld [vmem:[%s1 + $0x1254] sm:$0xf]
    %v1362 = vld [vmem:[%s1 + $0x1258] sm:$0xf]
    %v1363 = vld [vmem:[%s1 + $0x125c] sm:$0xf]
    %v1364 = vld [vmem:[%s1 + $0x1260] sm:$0xf]
    %v1365 = vld [vmem:[%s1 + $0x1264] sm:$0xf]
    %v1366 = vld [vmem:[%s1 + $0x1268] sm:$0xf]
    %v1367 = vld [vmem:[%s1 + $0x126c] sm:$0xf]
    %v1368 = vld [vmem:[%s1 + $0x1270] sm:$0xf]
    %v1369 = vld [vmem:[%s1 + $0x1274] sm:$0xf]
    %v1370 = vld [vmem:[%s1 + $0x1278] sm:$0xf]
    %v1371 = vld [vmem:[%s1 + $0x127c] sm:$0xf]
    %v1372 = vld [vmem:[%s1 + $0x1280] sm:$0xf]
    %v1373 = vld [vmem:[%s1 + $0x1284] sm:$0xf]
    %v1374 = vld [vmem:[%s1 + $0x1288] sm:$0xf]
    %v1375 = vld [vmem:[%s1 + $0x128c] sm:$0xf]
    %v1376 = vld [vmem:[%s1 + $0x1290] sm:$0xf]
    %v1377 = vld [vmem:[%s1 + $0x1294] sm:$0xf]
    %v1378 = vld [vmem:[%s1 + $0x1298] sm:$0xf]
    %v1379 = vld [vmem:[%s1 + $0x129c] sm:$0xf]
    %v1380 = vld [vmem:[%s1 + $0x12a0] sm:$0xf]
    %v1381 = vld [vmem:[%s1 + $0x12a4] sm:$0xf]
    %v1382 = vld [vmem:[%s1 + $0x12a8] sm:$0xf]
    %v1383 = vld [vmem:[%s1 + $0x12ac] sm:$0xf]
    %v1384 = vld [vmem:[%s1 + $0x12b0] sm:$0xf]
    %v1385 = vld [vmem:[%s1 + $0x12b4] sm:$0xf]
    %v1386 = vld [vmem:[%s1 + $0x12b8] sm:$0xf]
    %v1387 = vld [vmem:[%s1 + $0x12bc] sm:$0xf]
    %v1388 = vld [vmem:[%s1 + $0x12c0] sm:$0xf]
    %v1389 = vld [vmem:[%s1 + $0x12c4] sm:$0xf]
    %v1390 = vld [vmem:[%s1 + $0x12c8] sm:$0xf]
    %v1391 = vld [vmem:[%s1 + $0x12cc] sm:$0xf]
    %v1392 = vld [vmem:[%s1 + $0x12d0] sm:$0xf]
    %v1393 = vld [vmem:[%s1 + $0x12d4] sm:$0xf]
    %v1394 = vld [vmem:[%s1 + $0x12d8] sm:$0xf]
    %v1395 = vld [vmem:[%s1 + $0x12dc] sm:$0xf]
    %v1396 = vld [vmem:[%s1 + $0x12e0] sm:$0xf]
    %v1397 = vld [vmem:[%s1 + $0x12e4] sm:$0xf]
    %v1398 = vld [vmem:[%s1 + $0x12e8] sm:$0xf]
    %v1399 = vld [vmem:[%s1 + $0x12ec] sm:$0xf]
    %v1400 = vld [vmem:[%s1 + $0x12f0] sm:$0xf]
    %v1401 = vld [vmem:[%s1 + $0x12f4] sm:$0xf]
    %v1402 = vld [vmem:[%s1 + $0x12f8] sm:$0xf]
    %v1403 = vld [vmem:[%s1 + $0x12fc] sm:$0xf]
    %v1404 = vld [vmem:[%s1 + $0x1300] sm:$0xf]
    %v1405 = vld [vmem:[%s1 + $0x1304] sm:$0xf]
    %v1406 = vld [vmem:[%s1 + $0x1308] sm:$0xf]
    %v1407 = vld [vmem:[%s1 + $0x130c] sm:$0xf]
    %v1408 = vld [vmem:[%s1 + $0x1310] sm:$0xf]
    %v1409 = vld [vmem:[%s1 + $0x1314] sm:$0xf]
    %v1410 = vld [vmem:[%s1 + $0x1318] sm:$0xf]
    %v1411 = vld [vmem:[%s1 + $0x131c] sm:$0xf]
    %v1412 = vld [vmem:[%s1 + $0x1320] sm:$0xf]
    %v1413 = vld [vmem:[%s1 + $0x1324] sm:$0xf]
    %v1414 = vld [vmem:[%s1 + $0x1328] sm:$0xf]
    %v1415 = vld [vmem:[%s1 + $0x132c] sm:$0xf]
    %v1416 = vld [vmem:[%s1 + $0x1330] sm:$0xf]
    %v1417 = vld [vmem:[%s1 + $0x1334] sm:$0xf]
    %v1418 = vld [vmem:[%s1 + $0x1338] sm:$0xf]
    %v1419 = vld [vmem:[%s1 + $0x133c] sm:$0xf]
    %v1420 = vld [vmem:[%s1 + $0x1340] sm:$0xf]
    %v1421 = vld [vmem:[%s1 + $0x1344] sm:$0xf]
    %v1422 = vld [vmem:[%s1 + $0x1348] sm:$0xf]
    %v1423 = vld [vmem:[%s1 + $0x134c] sm:$0xf]
    %v1424 = vld [vmem:[%s1 + $0x1350] sm:$0xf]
    %v1425 = vld [vmem:[%s1 + $0x1354] sm:$0xf]
    %v1426 = vld [vmem:[%s1 + $0x1358] sm:$0xf]
    %v1427 = vld [vmem:[%s1 + $0x135c] sm:$0xf]
    %v1428 = vld [vmem:[%s1 + $0x1360] sm:$0xf]
    %v1429 = vld [vmem:[%s1 + $0x1364] sm:$0xf]
    %v1430 = vld [vmem:[%s1 + $0x1368] sm:$0xf]
    %v1431 = vld [vmem:[%s1 + $0x136c] sm:$0xf]
    %v1432 = vld [vmem:[%s1 + $0x1370] sm:$0xf]
    %v1433 = vld [vmem:[%s1 + $0x1374] sm:$0xf]
    %v1434 = vld [vmem:[%s1 + $0x1378] sm:$0xf]
    %v1435 = vld [vmem:[%s1 + $0x137c] sm:$0xf]
    %v1436 = vld [vmem:[%s1 + $0x1380] sm:$0xf]
    %v1437 = vld [vmem:[%s1 + $0x1384] sm:$0xf]
    %v1438 = vld [vmem:[%s2] sm:$0x1]
    %v1440 = vlaneseq
    %v1441 = vshrl.u32 %v1440, 7
    %v1442 = vsub.s32 0, %v1441
    %v1443 = vrot.slane %v1438, %v1442
    %v2695 = vunpack.c.l.b16 %v188
    %v2696 = vunpack.c.l.b16 %v189
    %v2697 = vunpack.c.l.b16 %v190
    %v2698 = vunpack.c.l.b16 %v191
    %v2699 = vunpack.c.l.b16 %v192
    %v2700 = vunpack.c.l.b16 %v193
    %v2701 = vunpack.c.l.b16 %v194
    %v2702 = vunpack.c.l.b16 %v195
    %v2703 = vunpack.c.l.b16 %v196
    %v2704 = vunpack.c.l.b16 %v197
    %v2705 = vunpack.c.l.b16 %v198
    %v2706 = vunpack.c.l.b16 %v199
    %v2707 = vunpack.c.l.b16 %v200
    %v2708 = vunpack.c.l.b16 %v201
    %v2709 = vunpack.c.l.b16 %v202
    %v2710 = vunpack.c.l.b16 %v203
    %v2711 = vunpack.c.l.b16 %v204
    %v2712 = vunpack.c.l.b16 %v205
    %v2713 = vunpack.c.l.b16 %v206
    %v2714 = vunpack.c.l.b16 %v207
    %v2715 = vunpack.c.l.b16 %v208
    %v2716 = vunpack.c.l.b16 %v209
    %v2717 = vunpack.c.l.b16 %v210
    %v2718 = vunpack.c.l.b16 %v211
    %v2719 = vunpack.c.l.b16 %v212
    %v2720 = vunpack.c.l.b16 %v213
    %v2721 = vunpack.c.l.b16 %v214
    %v2722 = vunpack.c.l.b16 %v215
    %v2723 = vunpack.c.l.b16 %v216
    %v2724 = vunpack.c.l.b16 %v217
    %v2725 = vunpack.c.l.b16 %v218
    %v2726 = vunpack.c.l.b16 %v219
    %v2727 = vunpack.c.l.b16 %v220
    %v2728 = vunpack.c.l.b16 %v221
    %v2729 = vunpack.c.l.b16 %v222
    %v2730 = vunpack.c.l.b16 %v223
    %v2731 = vunpack.c.l.b16 %v224
    %v2732 = vunpack.c.l.b16 %v225
    %v2733 = vunpack.c.l.b16 %v226
    %v2734 = vunpack.c.l.b16 %v227
    %v2735 = vunpack.c.l.b16 %v228
    %v2736 = vunpack.c.l.b16 %v229
    %v2737 = vunpack.c.l.b16 %v230
    %v2738 = vunpack.c.l.b16 %v231
    %v2739 = vunpack.c.l.b16 %v232
    %v2740 = vunpack.c.l.b16 %v233
    %v2741 = vunpack.c.l.b16 %v234
    %v2742 = vunpack.c.l.b16 %v235
    %v2743 = vunpack.c.l.b16 %v236
    %v2744 = vunpack.c.l.b16 %v237
    %v2745 = vunpack.c.l.b16 %v238
    %v2746 = vunpack.c.l.b16 %v239
    %v2747 = vunpack.c.l.b16 %v240
    %v2748 = vunpack.c.l.b16 %v241
    %v2749 = vunpack.c.l.b16 %v242
    %v2750 = vunpack.c.l.b16 %v243
    %v2751 = vunpack.c.l.b16 %v244
    %v2752 = vunpack.c.l.b16 %v245
    %v2753 = vunpack.c.l.b16 %v246
    %v2754 = vunpack.c.l.b16 %v247
    %v2755 = vunpack.c.l.b16 %v248
    %v2756 = vunpack.c.l.b16 %v249
    %v2757 = vunpack.c.l.b16 %v250
    %v2758 = vunpack.c.l.b16 %v251
    %v2759 = vunpack.c.l.b16 %v252
    %v2760 = vunpack.c.l.b16 %v253
    %v2761 = vunpack.c.l.b16 %v254
    %v2762 = vunpack.c.l.b16 %v255
    %v2763 = vunpack.c.l.b16 %v256
    %v2764 = vunpack.c.l.b16 %v257
    %v2765 = vunpack.c.l.b16 %v258
    %v2766 = vunpack.c.l.b16 %v259
    %v2767 = vunpack.c.l.b16 %v260
    %v2768 = vunpack.c.l.b16 %v261
    %v2769 = vunpack.c.l.b16 %v262
    %v2770 = vunpack.c.l.b16 %v263
    %v2771 = vunpack.c.l.b16 %v264
    %v2772 = vunpack.c.l.b16 %v265
    %v2773 = vunpack.c.l.b16 %v266
    %v2774 = vunpack.c.l.b16 %v267
    %v2775 = vunpack.c.l.b16 %v268
    %v2776 = vunpack.c.l.b16 %v269
    %v2777 = vunpack.c.l.b16 %v270
    %v2778 = vunpack.c.l.b16 %v271
    %v2779 = vunpack.c.l.b16 %v272
    %v2780 = vunpack.c.l.b16 %v273
    %v2781 = vunpack.c.l.b16 %v274
    %v2782 = vunpack.c.l.b16 %v275
    %v2783 = vunpack.c.l.b16 %v276
    %v2784 = vunpack.c.l.b16 %v277
    %v2785 = vunpack.c.l.b16 %v278
    %v2786 = vunpack.c.l.b16 %v279
    %v2787 = vunpack.c.l.b16 %v280
    %v2788 = vunpack.c.l.b16 %v281
    %v2789 = vunpack.c.l.b16 %v282
    %v2790 = vunpack.c.l.b16 %v283
    %v2791 = vunpack.c.l.b16 %v284
    %v2792 = vunpack.c.l.b16 %v285
    %v2793 = vunpack.c.l.b16 %v286
    %v2794 = vunpack.c.l.b16 %v287
    %v2795 = vunpack.c.l.b16 %v288
    %v2796 = vunpack.c.l.b16 %v289
    %v2797 = vunpack.c.l.b16 %v290
    %v2798 = vunpack.c.l.b16 %v291
    %v2799 = vunpack.c.l.b16 %v292
    %v2800 = vunpack.c.l.b16 %v293
    %v2801 = vunpack.c.l.b16 %v294
    %v2802 = vunpack.c.l.b16 %v295
    %v2803 = vunpack.c.l.b16 %v296
    %v2804 = vunpack.c.l.b16 %v297
    %v2805 = vunpack.c.l.b16 %v298
    %v2806 = vunpack.c.l.b16 %v299
    %v2807 = vunpack.c.l.b16 %v300
    %v2808 = vunpack.c.l.b16 %v301
    %v2809 = vunpack.c.l.b16 %v302
    %v2810 = vunpack.c.l.b16 %v303
    %v2811 = vunpack.c.l.b16 %v304
    %v2812 = vunpack.c.l.b16 %v305
    %v2813 = vunpack.c.l.b16 %v306
    %v2814 = vunpack.c.l.b16 %v307
    %v2815 = vunpack.c.l.b16 %v308
    %v2816 = vunpack.c.l.b16 %v309
    %v2817 = vunpack.c.l.b16 %v310
    %v2818 = vunpack.c.l.b16 %v311
    %v2819 = vunpack.c.l.b16 %v312
    %v2820 = vunpack.c.l.b16 %v313
    %v2821 = vunpack.c.l.b16 %v314
    %v2822 = vunpack.c.l.b16 %v315
    %v2823 = vunpack.c.l.b16 %v316
    %v2824 = vunpack.c.l.b16 %v317
    %v2825 = vunpack.c.l.b16 %v318
    %v2826 = vunpack.c.l.b16 %v319
    %v2827 = vunpack.c.l.b16 %v320
    %v2828 = vunpack.c.l.b16 %v321
    %v2829 = vunpack.c.l.b16 %v322
    %v2830 = vunpack.c.l.b16 %v323
    %v2831 = vunpack.c.l.b16 %v324
    %v2832 = vunpack.c.l.b16 %v325
    %v2833 = vunpack.c.l.b16 %v326
    %v2834 = vunpack.c.l.b16 %v327
    %v2835 = vunpack.c.l.b16 %v328
    %v2836 = vunpack.c.l.b16 %v329
    %v2837 = vunpack.c.l.b16 %v330
    %v2838 = vunpack.c.l.b16 %v331
    %v2839 = vunpack.c.l.b16 %v332
    %v2840 = vunpack.c.l.b16 %v333
    %v2841 = vunpack.c.l.b16 %v334
    %v2842 = vunpack.c.l.b16 %v335
    %v2843 = vunpack.c.l.b16 %v336
    %v2844 = vunpack.c.l.b16 %v337
    %v2845 = vunpack.c.l.b16 %v338
    %v2846 = vunpack.c.l.b16 %v339
    %v2847 = vunpack.c.l.b16 %v340
    %v2848 = vunpack.c.l.b16 %v341
    %v2849 = vunpack.c.l.b16 %v342
    %v2850 = vunpack.c.l.b16 %v343
    %v2851 = vunpack.c.l.b16 %v344
    %v2852 = vunpack.c.l.b16 %v345
    %v2853 = vunpack.c.l.b16 %v346
    %v2854 = vunpack.c.l.b16 %v347
    %v2855 = vunpack.c.l.b16 %v348
    %v2856 = vunpack.c.l.b16 %v349
    %v2857 = vunpack.c.l.b16 %v350
    %v2858 = vunpack.c.l.b16 %v351
    %v2859 = vunpack.c.l.b16 %v352
    %v2860 = vunpack.c.l.b16 %v353
    %v2861 = vunpack.c.l.b16 %v354
    %v2862 = vunpack.c.l.b16 %v355
    %v2863 = vunpack.c.l.b16 %v356
    %v2864 = vunpack.c.l.b16 %v357
    %v2865 = vunpack.c.l.b16 %v358
    %v2866 = vunpack.c.l.b16 %v359
    %v2867 = vunpack.c.l.b16 %v360
    %v2868 = vunpack.c.l.b16 %v361
    %v2869 = vunpack.c.l.b16 %v362
    %v2870 = vunpack.c.l.b16 %v363
    %v2871 = vunpack.c.l.b16 %v364
    %v2872 = vunpack.c.l.b16 %v365
    %v2873 = vunpack.c.l.b16 %v366
    %v2874 = vunpack.c.l.b16 %v367
    %v2875 = vunpack.c.l.b16 %v368
    %v2876 = vunpack.c.l.b16 %v369
    %v2877 = vunpack.c.l.b16 %v370
    %v2878 = vunpack.c.l.b16 %v371
    %v2879 = vunpack.c.l.b16 %v372
    %v2880 = vunpack.c.l.b16 %v373
    %v2881 = vunpack.c.l.b16 %v374
    %v2882 = vunpack.c.l.b16 %v375
    %v2883 = vunpack.c.l.b16 %v376
    %v2884 = vunpack.c.l.b16 %v377
    %v2885 = vunpack.c.l.b16 %v378
    %v2886 = vunpack.c.l.b16 %v379
    %v2887 = vunpack.c.l.b16 %v380
    %v2888 = vunpack.c.l.b16 %v381
    %v2889 = vunpack.c.l.b16 %v382
    %v2890 = vunpack.c.l.b16 %v383
    %v2891 = vunpack.c.l.b16 %v384
    %v2892 = vunpack.c.l.b16 %v385
    %v2893 = vunpack.c.l.b16 %v386
    %v2894 = vunpack.c.l.b16 %v387
    %v2895 = vunpack.c.l.b16 %v388
    %v2896 = vunpack.c.l.b16 %v389
    %v2897 = vunpack.c.l.b16 %v390
    %v2898 = vunpack.c.l.b16 %v391
    %v2899 = vunpack.c.l.b16 %v392
    %v2900 = vunpack.c.l.b16 %v393
    %v2901 = vunpack.c.l.b16 %v394
    %v2902 = vunpack.c.l.b16 %v395
    %v2903 = vunpack.c.l.b16 %v396
    %v2904 = vunpack.c.l.b16 %v397
    %v2905 = vunpack.c.l.b16 %v398
    %v2906 = vunpack.c.l.b16 %v399
    %v2907 = vunpack.c.l.b16 %v400
    %v2908 = vunpack.c.l.b16 %v401
    %v2909 = vunpack.c.l.b16 %v402
    %v2910 = vunpack.c.l.b16 %v403
    %v2911 = vunpack.c.l.b16 %v404
    %v2912 = vunpack.c.l.b16 %v405
    %v2913 = vunpack.c.l.b16 %v406
    %v2914 = vunpack.c.l.b16 %v407
    %v2915 = vunpack.c.l.b16 %v408
    %v2916 = vunpack.c.l.b16 %v409
    %v2917 = vunpack.c.l.b16 %v410
    %v2918 = vunpack.c.l.b16 %v411
    %v2919 = vunpack.c.l.b16 %v412
    %v2920 = vunpack.c.l.b16 %v413
    %v2921 = vunpack.c.l.b16 %v414
    %v2922 = vunpack.c.l.b16 %v415
    %v2923 = vunpack.c.l.b16 %v416
    %v2924 = vunpack.c.l.b16 %v417
    %v2925 = vunpack.c.l.b16 %v418
    %v2926 = vunpack.c.l.b16 %v419
    %v2927 = vunpack.c.l.b16 %v420
    %v2928 = vunpack.c.l.b16 %v421
    %v2929 = vunpack.c.l.b16 %v422
    %v2930 = vunpack.c.l.b16 %v423
    %v2931 = vunpack.c.l.b16 %v424
    %v2932 = vunpack.c.l.b16 %v425
    %v2933 = vunpack.c.l.b16 %v426
    %v2934 = vunpack.c.l.b16 %v427
    %v2935 = vunpack.c.l.b16 %v428
    %v2936 = vunpack.c.l.b16 %v429
    %v2937 = vunpack.c.l.b16 %v430
    %v2938 = vunpack.c.l.b16 %v431
    %v2939 = vunpack.c.l.b16 %v432
    %v2940 = vunpack.c.l.b16 %v433
    %v2941 = vunpack.c.l.b16 %v434
    %v2942 = vunpack.c.l.b16 %v435
    %v2943 = vunpack.c.l.b16 %v436
    %v2944 = vunpack.c.l.b16 %v437
    %v2945 = vunpack.c.l.b16 %v438
    %v2946 = vunpack.c.l.b16 %v439
    %v2947 = vunpack.c.l.b16 %v440
    %v2948 = vunpack.c.l.b16 %v441
    %v2949 = vunpack.c.l.b16 %v442
    %v2950 = vunpack.c.l.b16 %v443
    %v2951 = vunpack.c.l.b16 %v444
    %v2952 = vunpack.c.l.b16 %v445
    %v2953 = vunpack.c.l.b16 %v446
    %v2954 = vunpack.c.l.b16 %v447
    %v2955 = vunpack.c.l.b16 %v448
    %v2956 = vunpack.c.l.b16 %v449
    %v2957 = vunpack.c.l.b16 %v450
    %v2958 = vunpack.c.l.b16 %v451
    %v2959 = vunpack.c.l.b16 %v452
    %v2960 = vunpack.c.l.b16 %v453
    %v2961 = vunpack.c.l.b16 %v454
    %v2962 = vunpack.c.l.b16 %v455
    %v2963 = vunpack.c.l.b16 %v456
    %v2964 = vunpack.c.l.b16 %v457
    %v2965 = vunpack.c.l.b16 %v458
    %v2966 = vunpack.c.l.b16 %v459
    %v2967 = vunpack.c.l.b16 %v460
    %v2968 = vunpack.c.l.b16 %v461
    %v2969 = vunpack.c.l.b16 %v462
    %v2970 = vunpack.c.l.b16 %v463
    %v2971 = vunpack.c.l.b16 %v464
    %v2972 = vunpack.c.l.b16 %v465
    %v2973 = vunpack.c.l.b16 %v466
    %v2974 = vunpack.c.l.b16 %v467
    %v2975 = vunpack.c.l.b16 %v468
    %v2976 = vunpack.c.l.b16 %v469
    %v2977 = vunpack.c.l.b16 %v470
    %v2978 = vunpack.c.l.b16 %v471
    %v2979 = vunpack.c.l.b16 %v472
    %v2980 = vunpack.c.l.b16 %v473
    %v2981 = vunpack.c.l.b16 %v474
    %v2982 = vunpack.c.l.b16 %v475
    %v2983 = vunpack.c.l.b16 %v476
    %v2984 = vunpack.c.l.b16 %v477
    %v2985 = vunpack.c.l.b16 %v478
    %v2986 = vunpack.c.l.b16 %v479
    %v2987 = vunpack.c.l.b16 %v480
    %v2988 = vunpack.c.l.b16 %v481
    %v2989 = vunpack.c.l.b16 %v482
    %v2990 = vunpack.c.l.b16 %v483
    %v2991 = vunpack.c.l.b16 %v484
    %v2992 = vunpack.c.l.b16 %v485
    %v2993 = vunpack.c.l.b16 %v486
    %v2994 = vunpack.c.l.b16 %v487
    %v2995 = vunpack.c.l.b16 %v488
    %v2996 = vunpack.c.l.b16 %v489
    %v2997 = vunpack.c.l.b16 %v490
    %v2998 = vunpack.c.l.b16 %v491
    %v2999 = vunpack.c.l.b16 %v492
    %v3000 = vunpack.c.l.b16 %v493
    %v3001 = vunpack.c.l.b16 %v494
    %v3002 = vunpack.c.l.b16 %v495
    %v3003 = vunpack.c.l.b16 %v496
    %v3004 = vunpack.c.l.b16 %v497
    %v3005 = vunpack.c.l.b16 %v498
    %v3006 = vunpack.c.l.b16 %v499
    %v3007 = vunpack.c.l.b16 %v500
    %v3008 = vunpack.c.l.b16 %v501
    %v3009 = vunpack.c.l.b16 %v502
    %v3010 = vunpack.c.l.b16 %v503
    %v3011 = vunpack.c.l.b16 %v504
    %v3012 = vunpack.c.l.b16 %v505
    %v3013 = vunpack.c.l.b16 %v506
    %v3014 = vunpack.c.l.b16 %v507
    %v3015 = vunpack.c.l.b16 %v508
    %v3016 = vunpack.c.l.b16 %v509
    %v3017 = vunpack.c.l.b16 %v510
    %v3018 = vunpack.c.l.b16 %v511
    %v3019 = vunpack.c.l.b16 %v512
    %v3020 = vunpack.c.l.b16 %v513
    %v3021 = vunpack.c.l.b16 %v514
    %v3022 = vunpack.c.l.b16 %v515
    %v3023 = vunpack.c.l.b16 %v516
    %v3024 = vunpack.c.l.b16 %v517
    %v3025 = vunpack.c.l.b16 %v518
    %v3026 = vunpack.c.l.b16 %v519
    %v3027 = vunpack.c.l.b16 %v520
    %v3028 = vunpack.c.l.b16 %v521
    %v3029 = vunpack.c.l.b16 %v522
    %v3030 = vunpack.c.l.b16 %v523
    %v3031 = vunpack.c.l.b16 %v524
    %v3032 = vunpack.c.l.b16 %v525
    %v3033 = vunpack.c.l.b16 %v526
    %v3034 = vunpack.c.l.b16 %v527
    %v3035 = vunpack.c.l.b16 %v528
    %v3036 = vunpack.c.l.b16 %v529
    %v3037 = vunpack.c.l.b16 %v530
    %v3038 = vunpack.c.l.b16 %v531
    %v3039 = vunpack.c.l.b16 %v532
    %v3040 = vunpack.c.l.b16 %v533
    %v3041 = vunpack.c.l.b16 %v534
    %v3042 = vunpack.c.l.b16 %v535
    %v3043 = vunpack.c.l.b16 %v536
    %v3044 = vunpack.c.l.b16 %v537
    %v3045 = vunpack.c.l.b16 %v538
    %v3046 = vunpack.c.l.b16 %v539
    %v3047 = vunpack.c.l.b16 %v540
    %v3048 = vunpack.c.l.b16 %v541
    %v3049 = vunpack.c.l.b16 %v542
    %v3050 = vunpack.c.l.b16 %v543
    %v3051 = vunpack.c.l.b16 %v544
    %v3052 = vunpack.c.l.b16 %v545
    %v3053 = vunpack.c.l.b16 %v546
    %v3054 = vunpack.c.l.b16 %v547
    %v3055 = vunpack.c.l.b16 %v548
    %v3056 = vunpack.c.l.b16 %v549
    %v3057 = vunpack.c.l.b16 %v550
    %v3058 = vunpack.c.l.b16 %v551
    %v3059 = vunpack.c.l.b16 %v552
    %v3060 = vunpack.c.l.b16 %v553
    %v3061 = vunpack.c.l.b16 %v554
    %v3062 = vunpack.c.l.b16 %v555
    %v3063 = vunpack.c.l.b16 %v556
    %v3064 = vunpack.c.l.b16 %v557
    %v3065 = vunpack.c.l.b16 %v558
    %v3066 = vunpack.c.l.b16 %v559
    %v3067 = vunpack.c.l.b16 %v560
    %v3068 = vunpack.c.l.b16 %v561
    %v3069 = vunpack.c.l.b16 %v562
    %v3070 = vunpack.c.l.b16 %v563
    %v3071 = vunpack.c.l.b16 %v564
    %v3072 = vunpack.c.l.b16 %v565
    %v3073 = vunpack.c.l.b16 %v566
    %v3074 = vunpack.c.l.b16 %v567
    %v3075 = vunpack.c.l.b16 %v568
    %v3076 = vunpack.c.l.b16 %v569
    %v3077 = vunpack.c.l.b16 %v570
    %v3078 = vunpack.c.l.b16 %v571
    %v3079 = vunpack.c.l.b16 %v572
    %v3080 = vunpack.c.l.b16 %v573
    %v3081 = vunpack.c.l.b16 %v574
    %v3082 = vunpack.c.l.b16 %v575
    %v3083 = vunpack.c.l.b16 %v576
    %v3084 = vunpack.c.l.b16 %v577
    %v3085 = vunpack.c.l.b16 %v578
    %v3086 = vunpack.c.l.b16 %v579
    %v3087 = vunpack.c.l.b16 %v580
    %v3088 = vunpack.c.l.b16 %v581
    %v3089 = vunpack.c.l.b16 %v582
    %v3090 = vunpack.c.l.b16 %v583
    %v3091 = vunpack.c.l.b16 %v584
    %v3092 = vunpack.c.l.b16 %v585
    %v3093 = vunpack.c.l.b16 %v586
    %v3094 = vunpack.c.l.b16 %v587
    %v3095 = vunpack.c.l.b16 %v588
    %v3096 = vunpack.c.l.b16 %v589
    %v3097 = vunpack.c.l.b16 %v590
    %v3098 = vunpack.c.l.b16 %v591
    %v3099 = vunpack.c.l.b16 %v592
    %v3100 = vunpack.c.l.b16 %v593
    %v3101 = vunpack.c.l.b16 %v594
    %v3102 = vunpack.c.l.b16 %v595
    %v3103 = vunpack.c.l.b16 %v596
    %v3104 = vunpack.c.l.b16 %v597
    %v3105 = vunpack.c.l.b16 %v598
    %v3106 = vunpack.c.l.b16 %v599
    %v3107 = vunpack.c.l.b16 %v600
    %v3108 = vunpack.c.l.b16 %v601
    %v3109 = vunpack.c.l.b16 %v602
    %v3110 = vunpack.c.l.b16 %v603
    %v3111 = vunpack.c.l.b16 %v604
    %v3112 = vunpack.c.l.b16 %v605
    %v3113 = vunpack.c.l.b16 %v606
    %v3114 = vunpack.c.l.b16 %v607
    %v3115 = vunpack.c.l.b16 %v608
    %v3116 = vunpack.c.l.b16 %v609
    %v3117 = vunpack.c.l.b16 %v610
    %v3118 = vunpack.c.l.b16 %v611
    %v3119 = vunpack.c.l.b16 %v612
    %v3120 = vunpack.c.l.b16 %v613
    %v3121 = vunpack.c.l.b16 %v614
    %v3122 = vunpack.c.l.b16 %v615
    %v3123 = vunpack.c.l.b16 %v616
    %v3124 = vunpack.c.l.b16 %v617
    %v3125 = vunpack.c.l.b16 %v618
    %v3126 = vunpack.c.l.b16 %v619
    %v3127 = vunpack.c.l.b16 %v620
    %v3128 = vunpack.c.l.b16 %v621
    %v3129 = vunpack.c.l.b16 %v622
    %v3130 = vunpack.c.l.b16 %v623
    %v3131 = vunpack.c.l.b16 %v624
    %v3132 = vunpack.c.l.b16 %v625
    %v3133 = vunpack.c.l.b16 %v626
    %v3134 = vunpack.c.l.b16 %v627
    %v3135 = vunpack.c.l.b16 %v628
    %v3136 = vunpack.c.l.b16 %v629
    %v3137 = vunpack.c.l.b16 %v630
    %v3138 = vunpack.c.l.b16 %v631
    %v3139 = vunpack.c.l.b16 %v632
    %v3140 = vunpack.c.l.b16 %v633
    %v3141 = vunpack.c.l.b16 %v634
    %v3142 = vunpack.c.l.b16 %v635
    %v3143 = vunpack.c.l.b16 %v636
    %v3144 = vunpack.c.l.b16 %v637
    %v3145 = vunpack.c.l.b16 %v638
    %v3146 = vunpack.c.l.b16 %v639
    %v3147 = vunpack.c.l.b16 %v640
    %v3148 = vunpack.c.l.b16 %v641
    %v3149 = vunpack.c.l.b16 %v642
    %v3150 = vunpack.c.l.b16 %v643
    %v3151 = vunpack.c.l.b16 %v644
    %v3152 = vunpack.c.l.b16 %v645
    %v3153 = vunpack.c.l.b16 %v646
    %v3154 = vunpack.c.l.b16 %v647
    %v3155 = vunpack.c.l.b16 %v648
    %v3156 = vunpack.c.l.b16 %v649
    %v3157 = vunpack.c.l.b16 %v650
    %v3158 = vunpack.c.l.b16 %v651
    %v3159 = vunpack.c.l.b16 %v652
    %v3160 = vunpack.c.l.b16 %v653
    %v3161 = vunpack.c.l.b16 %v654
    %v3162 = vunpack.c.l.b16 %v655
    %v3163 = vunpack.c.l.b16 %v656
    %v3164 = vunpack.c.l.b16 %v657
    %v3165 = vunpack.c.l.b16 %v658
    %v3166 = vunpack.c.l.b16 %v659
    %v3167 = vunpack.c.l.b16 %v660
    %v3168 = vunpack.c.l.b16 %v661
    %v3169 = vunpack.c.l.b16 %v662
    %v3170 = vunpack.c.l.b16 %v663
    %v3171 = vunpack.c.l.b16 %v664
    %v3172 = vunpack.c.l.b16 %v665
    %v3173 = vunpack.c.l.b16 %v666
    %v3174 = vunpack.c.l.b16 %v667
    %v3175 = vunpack.c.l.b16 %v668
    %v3176 = vunpack.c.l.b16 %v669
    %v3177 = vunpack.c.l.b16 %v670
    %v3178 = vunpack.c.l.b16 %v671
    %v3179 = vunpack.c.l.b16 %v672
    %v3180 = vunpack.c.l.b16 %v673
    %v3181 = vunpack.c.l.b16 %v674
    %v3182 = vunpack.c.l.b16 %v675
    %v3183 = vunpack.c.l.b16 %v676
    %v3184 = vunpack.c.l.b16 %v677
    %v3185 = vunpack.c.l.b16 %v678
    %v3186 = vunpack.c.l.b16 %v679
    %v3187 = vunpack.c.l.b16 %v680
    %v3188 = vunpack.c.l.b16 %v681
    %v3189 = vunpack.c.l.b16 %v682
    %v3190 = vunpack.c.l.b16 %v683
    %v3191 = vunpack.c.l.b16 %v684
    %v3192 = vunpack.c.l.b16 %v685
    %v3193 = vunpack.c.l.b16 %v686
    %v3194 = vunpack.c.l.b16 %v687
    %v3195 = vunpack.c.l.b16 %v688
    %v3196 = vunpack.c.l.b16 %v689
    %v3197 = vunpack.c.l.b16 %v690
    %v3198 = vunpack.c.l.b16 %v691
    %v3199 = vunpack.c.l.b16 %v692
    %v3200 = vunpack.c.l.b16 %v693
    %v3201 = vunpack.c.l.b16 %v694
    %v3202 = vunpack.c.l.b16 %v695
    %v3203 = vunpack.c.l.b16 %v696
    %v3204 = vunpack.c.l.b16 %v697
    %v3205 = vunpack.c.l.b16 %v698
    %v3206 = vunpack.c.l.b16 %v699
    %v3207 = vunpack.c.l.b16 %v700
    %v3208 = vunpack.c.l.b16 %v701
    %v3209 = vunpack.c.l.b16 %v702
    %v3210 = vunpack.c.l.b16 %v703
    %v3211 = vunpack.c.l.b16 %v704
    %v3212 = vunpack.c.l.b16 %v705
    %v3213 = vunpack.c.l.b16 %v706
    %v3214 = vunpack.c.l.b16 %v707
    %v3215 = vunpack.c.l.b16 %v708
    %v3216 = vunpack.c.l.b16 %v709
    %v3217 = vunpack.c.l.b16 %v710
    %v3218 = vunpack.c.l.b16 %v711
    %v3219 = vunpack.c.l.b16 %v712
    %v3220 = vunpack.c.l.b16 %v713
    %v3221 = vunpack.c.l.b16 %v714
    %v3222 = vunpack.c.l.b16 %v715
    %v3223 = vunpack.c.l.b16 %v716
    %v3224 = vunpack.c.l.b16 %v717
    %v3225 = vunpack.c.l.b16 %v718
    %v3226 = vunpack.c.l.b16 %v719
    %v3227 = vunpack.c.l.b16 %v720
    %v3228 = vunpack.c.l.b16 %v721
    %v3229 = vunpack.c.l.b16 %v722
    %v3230 = vunpack.c.l.b16 %v723
    %v3231 = vunpack.c.l.b16 %v724
    %v3232 = vunpack.c.l.b16 %v725
    %v3233 = vunpack.c.l.b16 %v726
    %v3234 = vunpack.c.l.b16 %v727
    %v3235 = vunpack.c.l.b16 %v728
    %v3236 = vunpack.c.l.b16 %v729
    %v3237 = vunpack.c.l.b16 %v730
    %v3238 = vunpack.c.l.b16 %v731
    %v3239 = vunpack.c.l.b16 %v732
    %v3240 = vunpack.c.l.b16 %v733
    %v3241 = vunpack.c.l.b16 %v734
    %v3242 = vunpack.c.l.b16 %v735
    %v3243 = vunpack.c.l.b16 %v736
    %v3244 = vunpack.c.l.b16 %v737
    %v3245 = vunpack.c.l.b16 %v738
    %v3246 = vunpack.c.l.b16 %v739
    %v3247 = vunpack.c.l.b16 %v740
    %v3248 = vunpack.c.l.b16 %v741
    %v3249 = vunpack.c.l.b16 %v742
    %v3250 = vunpack.c.l.b16 %v743
    %v3251 = vunpack.c.l.b16 %v744
    %v3252 = vunpack.c.l.b16 %v745
    %v3253 = vunpack.c.l.b16 %v746
    %v3254 = vunpack.c.l.b16 %v747
    %v3255 = vunpack.c.l.b16 %v748
    %v3256 = vunpack.c.l.b16 %v749
    %v3257 = vunpack.c.l.b16 %v750
    %v3258 = vunpack.c.l.b16 %v751
    %v3259 = vunpack.c.l.b16 %v752
    %v3260 = vunpack.c.l.b16 %v753
    %v3261 = vunpack.c.l.b16 %v754
    %v3262 = vunpack.c.l.b16 %v755
    %v3263 = vunpack.c.l.b16 %v756
    %v3264 = vunpack.c.l.b16 %v757
    %v3265 = vunpack.c.l.b16 %v758
    %v3266 = vunpack.c.l.b16 %v759
    %v3267 = vunpack.c.l.b16 %v760
    %v3268 = vunpack.c.l.b16 %v761
    %v3269 = vunpack.c.l.b16 %v762
    %v3270 = vunpack.c.l.b16 %v763
    %v3271 = vunpack.c.l.b16 %v764
    %v3272 = vunpack.c.l.b16 %v765
    %v3273 = vunpack.c.l.b16 %v766
    %v3274 = vunpack.c.l.b16 %v767
    %v3275 = vunpack.c.l.b16 %v768
    %v3276 = vunpack.c.l.b16 %v769
    %v3277 = vunpack.c.l.b16 %v770
    %v3278 = vunpack.c.l.b16 %v771
    %v3279 = vunpack.c.l.b16 %v772
    %v3280 = vunpack.c.l.b16 %v773
    %v3281 = vunpack.c.l.b16 %v774
    %v3282 = vunpack.c.l.b16 %v775
    %v3283 = vunpack.c.l.b16 %v776
    %v3284 = vunpack.c.l.b16 %v777
    %v3285 = vunpack.c.l.b16 %v778
    %v3286 = vunpack.c.l.b16 %v779
    %v3287 = vunpack.c.l.b16 %v780
    %v3288 = vunpack.c.l.b16 %v781
    %v3289 = vunpack.c.l.b16 %v782
    %v3290 = vunpack.c.l.b16 %v783
    %v3291 = vunpack.c.l.b16 %v784
    %v3292 = vunpack.c.l.b16 %v785
    %v3293 = vunpack.c.l.b16 %v786
    %v3294 = vunpack.c.l.b16 %v787
    %v3295 = vunpack.c.l.b16 %v788
    %v3296 = vunpack.c.l.b16 %v789
    %v3297 = vunpack.c.l.b16 %v790
    %v3298 = vunpack.c.l.b16 %v791
    %v3299 = vunpack.c.l.b16 %v792
    %v3300 = vunpack.c.l.b16 %v793
    %v3301 = vunpack.c.l.b16 %v794
    %v3302 = vunpack.c.l.b16 %v795
    %v3303 = vunpack.c.l.b16 %v796
    %v3304 = vunpack.c.l.b16 %v797
    %v3305 = vunpack.c.l.b16 %v798
    %v3306 = vunpack.c.l.b16 %v799
    %v3307 = vunpack.c.l.b16 %v800
    %v3308 = vunpack.c.l.b16 %v801
    %v3309 = vunpack.c.l.b16 %v802
    %v3310 = vunpack.c.l.b16 %v803
    %v3311 = vunpack.c.l.b16 %v804
    %v3312 = vunpack.c.l.b16 %v805
    %v3313 = vunpack.c.l.b16 %v806
    %v3314 = vunpack.c.l.b16 %v807
    %v3315 = vunpack.c.l.b16 %v808
    %v3316 = vunpack.c.l.b16 %v809
    %v3317 = vunpack.c.l.b16 %v810
    %v3318 = vunpack.c.l.b16 %v811
    %v3319 = vunpack.c.l.b16 %v812
    %v3320 = vunpack.c.l.b16 %v813
    %v3321 = vunpack.c.l.b16 %v814
    %v3322 = vunpack.c.l.b16 %v815
    %v3323 = vunpack.c.l.b16 %v816
    %v3324 = vunpack.c.l.b16 %v817
    %v3325 = vunpack.c.l.b16 %v818
    %v3326 = vunpack.c.l.b16 %v819
    %v3327 = vunpack.c.l.b16 %v820
    %v3328 = vunpack.c.l.b16 %v821
    %v3329 = vunpack.c.l.b16 %v822
    %v3330 = vunpack.c.l.b16 %v823
    %v3331 = vunpack.c.l.b16 %v824
    %v3332 = vunpack.c.l.b16 %v825
    %v3333 = vunpack.c.l.b16 %v826
    %v3334 = vunpack.c.l.b16 %v827
    %v3335 = vunpack.c.l.b16 %v828
    %v3336 = vunpack.c.l.b16 %v829
    %v3337 = vunpack.c.l.b16 %v830
    %v3338 = vunpack.c.l.b16 %v831
    %v3339 = vunpack.c.l.b16 %v832
    %v3340 = vunpack.c.l.b16 %v833
    %v3341 = vunpack.c.l.b16 %v834
    %v3342 = vunpack.c.l.b16 %v835
    %v3343 = vunpack.c.l.b16 %v836
    %v3344 = vunpack.c.l.b16 %v837
    %v3345 = vunpack.c.l.b16 %v838
    %v3346 = vunpack.c.l.b16 %v839
    %v3347 = vunpack.c.l.b16 %v840
    %v3348 = vunpack.c.l.b16 %v841
    %v3349 = vunpack.c.l.b16 %v842
    %v3350 = vunpack.c.l.b16 %v843
    %v3351 = vunpack.c.l.b16 %v844
    %v3352 = vunpack.c.l.b16 %v845
    %v3353 = vunpack.c.l.b16 %v846
    %v3354 = vunpack.c.l.b16 %v847
    %v3355 = vunpack.c.l.b16 %v848
    %v3356 = vunpack.c.l.b16 %v849
    %v3357 = vunpack.c.l.b16 %v850
    %v3358 = vunpack.c.l.b16 %v851
    %v3359 = vunpack.c.l.b16 %v852
    %v3360 = vunpack.c.l.b16 %v853
    %v3361 = vunpack.c.l.b16 %v854
    %v3362 = vunpack.c.l.b16 %v855
    %v3363 = vunpack.c.l.b16 %v856
    %v3364 = vunpack.c.l.b16 %v857
    %v3365 = vunpack.c.l.b16 %v858
    %v3366 = vunpack.c.l.b16 %v859
    %v3367 = vunpack.c.l.b16 %v860
    %v3368 = vunpack.c.l.b16 %v861
    %v3369 = vunpack.c.l.b16 %v862
    %v3370 = vunpack.c.l.b16 %v863
    %v3371 = vunpack.c.l.b16 %v864
    %v3372 = vunpack.c.l.b16 %v865
    %v3373 = vunpack.c.l.b16 %v866
    %v3374 = vunpack.c.l.b16 %v867
    %v3375 = vunpack.c.l.b16 %v868
    %v3376 = vunpack.c.l.b16 %v869
    %v3377 = vunpack.c.l.b16 %v870
    %v3378 = vunpack.c.l.b16 %v871
    %v3379 = vunpack.c.l.b16 %v872
    %v3380 = vunpack.c.l.b16 %v873
    %v3381 = vunpack.c.l.b16 %v874
    %v3382 = vunpack.c.l.b16 %v875
    %v3383 = vunpack.c.l.b16 %v876
    %v3384 = vunpack.c.l.b16 %v877
    %v3385 = vunpack.c.l.b16 %v878
    %v3386 = vunpack.c.l.b16 %v879
    %v3387 = vunpack.c.l.b16 %v880
    %v3388 = vunpack.c.l.b16 %v881
    %v3389 = vunpack.c.l.b16 %v882
    %v3390 = vunpack.c.l.b16 %v883
    %v3391 = vunpack.c.l.b16 %v884
    %v3392 = vunpack.c.l.b16 %v885
    %v3393 = vunpack.c.l.b16 %v886
    %v3394 = vunpack.c.l.b16 %v887
    %v3395 = vunpack.c.l.b16 %v888
    %v3396 = vunpack.c.l.b16 %v889
    %v3397 = vunpack.c.l.b16 %v890
    %v3398 = vunpack.c.l.b16 %v891
    %v3399 = vunpack.c.l.b16 %v892
    %v3400 = vunpack.c.l.b16 %v893
    %v3401 = vunpack.c.l.b16 %v894
    %v3402 = vunpack.c.l.b16 %v895
    %v3403 = vunpack.c.l.b16 %v896
    %v3404 = vunpack.c.l.b16 %v897
    %v3405 = vunpack.c.l.b16 %v898
    %v3406 = vunpack.c.l.b16 %v899
    %v3407 = vunpack.c.l.b16 %v900
    %v3408 = vunpack.c.l.b16 %v901
    %v3409 = vunpack.c.l.b16 %v902
    %v3410 = vunpack.c.l.b16 %v903
    %v3411 = vunpack.c.l.b16 %v904
    %v3412 = vunpack.c.l.b16 %v905
    %v3413 = vunpack.c.l.b16 %v906
    %v3414 = vunpack.c.l.b16 %v907
    %v3415 = vunpack.c.l.b16 %v908
    %v3416 = vunpack.c.l.b16 %v909
    %v3417 = vunpack.c.l.b16 %v910
    %v3418 = vunpack.c.l.b16 %v911
    %v3419 = vunpack.c.l.b16 %v912
    %v3420 = vunpack.c.l.b16 %v913
    %v3421 = vunpack.c.l.b16 %v914
    %v3422 = vunpack.c.l.b16 %v915
    %v3423 = vunpack.c.l.b16 %v916
    %v3424 = vunpack.c.l.b16 %v917
    %v3425 = vunpack.c.l.b16 %v918
    %v3426 = vunpack.c.l.b16 %v919
    %v3427 = vunpack.c.l.b16 %v920
    %v3428 = vunpack.c.l.b16 %v921
    %v3429 = vunpack.c.l.b16 %v922
    %v3430 = vunpack.c.l.b16 %v923
    %v3431 = vunpack.c.l.b16 %v924
    %v3432 = vunpack.c.l.b16 %v925
    %v3433 = vunpack.c.l.b16 %v926
    %v3434 = vunpack.c.l.b16 %v927
    %v3435 = vunpack.c.l.b16 %v928
    %v3436 = vunpack.c.l.b16 %v929
    %v3437 = vunpack.c.l.b16 %v930
    %v3438 = vunpack.c.l.b16 %v931
    %v3439 = vunpack.c.l.b16 %v932
    %v3440 = vunpack.c.l.b16 %v933
    %v3441 = vunpack.c.l.b16 %v934
    %v3442 = vunpack.c.l.b16 %v935
    %v3443 = vunpack.c.l.b16 %v936
    %v3444 = vunpack.c.l.b16 %v937
    %v3445 = vunpack.c.l.b16 %v938
    %v3446 = vunpack.c.l.b16 %v939
    %v3447 = vunpack.c.l.b16 %v940
    %v3448 = vunpack.c.l.b16 %v941
    %v3449 = vunpack.c.l.b16 %v942
    %v3450 = vunpack.c.l.b16 %v943
    %v3451 = vunpack.c.l.b16 %v944
    %v3452 = vunpack.c.l.b16 %v945
    %v3453 = vunpack.c.l.b16 %v946
    %v3454 = vunpack.c.l.b16 %v947
    %v3455 = vunpack.c.l.b16 %v948
    %v3456 = vunpack.c.l.b16 %v949
    %v3457 = vunpack.c.l.b16 %v950
    %v3458 = vunpack.c.l.b16 %v951
    %v3459 = vunpack.c.l.b16 %v952
    %v3460 = vunpack.c.l.b16 %v953
    %v3461 = vunpack.c.l.b16 %v954
    %v3462 = vunpack.c.l.b16 %v955
    %v3463 = vunpack.c.l.b16 %v956
    %v3464 = vunpack.c.l.b16 %v957
    %v3465 = vunpack.c.l.b16 %v958
    %v3466 = vunpack.c.l.b16 %v959
    %v3467 = vunpack.c.l.b16 %v960
    %v3468 = vunpack.c.l.b16 %v961
    %v3469 = vunpack.c.l.b16 %v962
    %v3470 = vunpack.c.l.b16 %v963
    %v3471 = vunpack.c.l.b16 %v964
    %v3472 = vunpack.c.l.b16 %v965
    %v3473 = vunpack.c.l.b16 %v966
    %v3474 = vunpack.c.l.b16 %v967
    %v3475 = vunpack.c.l.b16 %v968
    %v3476 = vunpack.c.l.b16 %v969
    %v3477 = vunpack.c.l.b16 %v970
    %v3478 = vunpack.c.l.b16 %v971
    %v3479 = vunpack.c.l.b16 %v972
    %v3480 = vunpack.c.l.b16 %v973
    %v3481 = vunpack.c.l.b16 %v974
    %v3482 = vunpack.c.l.b16 %v975
    %v3483 = vunpack.c.l.b16 %v976
    %v3484 = vunpack.c.l.b16 %v977
    %v3485 = vunpack.c.l.b16 %v978
    %v3486 = vunpack.c.l.b16 %v979
    %v3487 = vunpack.c.l.b16 %v980
    %v3488 = vunpack.c.l.b16 %v981
    %v3489 = vunpack.c.l.b16 %v982
    %v3490 = vunpack.c.l.b16 %v983
    %v3491 = vunpack.c.l.b16 %v984
    %v3492 = vunpack.c.l.b16 %v985
    %v3493 = vunpack.c.l.b16 %v986
    %v3494 = vunpack.c.l.b16 %v987
    %v3495 = vunpack.c.l.b16 %v988
    %v3496 = vunpack.c.l.b16 %v989
    %v3497 = vunpack.c.l.b16 %v990
    %v3498 = vunpack.c.l.b16 %v991
    %v3499 = vunpack.c.l.b16 %v992
    %v3500 = vunpack.c.l.b16 %v993
    %v3501 = vunpack.c.l.b16 %v994
    %v3502 = vunpack.c.l.b16 %v995
    %v3503 = vunpack.c.l.b16 %v996
    %v3504 = vunpack.c.l.b16 %v997
    %v3505 = vunpack.c.l.b16 %v998
    %v3506 = vunpack.c.l.b16 %v999
    %v3507 = vunpack.c.l.b16 %v1000
    %v3508 = vunpack.c.l.b16 %v1001
    %v3509 = vunpack.c.l.b16 %v1002
    %v3510 = vunpack.c.l.b16 %v1003
    %v3511 = vunpack.c.l.b16 %v1004
    %v3512 = vunpack.c.l.b16 %v1005
    %v3513 = vunpack.c.l.b16 %v1006
    %v3514 = vunpack.c.l.b16 %v1007
    %v3515 = vunpack.c.l.b16 %v1008
    %v3516 = vunpack.c.l.b16 %v1009
    %v3517 = vunpack.c.l.b16 %v1010
    %v3518 = vunpack.c.l.b16 %v1011
    %v3519 = vunpack.c.l.b16 %v1012
    %v3520 = vunpack.c.l.b16 %v1013
    %v3521 = vunpack.c.l.b16 %v1014
    %v3522 = vunpack.c.l.b16 %v1015
    %v3523 = vunpack.c.l.b16 %v1016
    %v3524 = vunpack.c.l.b16 %v1017
    %v3525 = vunpack.c.l.b16 %v1018
    %v3526 = vunpack.c.l.b16 %v1019
    %v3527 = vunpack.c.l.b16 %v1020
    %v3528 = vunpack.c.l.b16 %v1021
    %v3529 = vunpack.c.l.b16 %v1022
    %v3530 = vunpack.c.l.b16 %v1023
    %v3531 = vunpack.c.l.b16 %v1024
    %v3532 = vunpack.c.l.b16 %v1025
    %v3533 = vunpack.c.l.b16 %v1026
    %v3534 = vunpack.c.l.b16 %v1027
    %v3535 = vunpack.c.l.b16 %v1028
    %v3536 = vunpack.c.l.b16 %v1029
    %v3537 = vunpack.c.l.b16 %v1030
    %v3538 = vunpack.c.l.b16 %v1031
    %v3539 = vunpack.c.l.b16 %v1032
    %v3540 = vunpack.c.l.b16 %v1033
    %v3541 = vunpack.c.l.b16 %v1034
    %v3542 = vunpack.c.l.b16 %v1035
    %v3543 = vunpack.c.l.b16 %v1036
    %v3544 = vunpack.c.l.b16 %v1037
    %v3545 = vunpack.c.l.b16 %v1038
    %v3546 = vunpack.c.l.b16 %v1039
    %v3547 = vunpack.c.l.b16 %v1040
    %v3548 = vunpack.c.l.b16 %v1041
    %v3549 = vunpack.c.l.b16 %v1042
    %v3550 = vunpack.c.l.b16 %v1043
    %v3551 = vunpack.c.l.b16 %v1044
    %v3552 = vunpack.c.l.b16 %v1045
    %v3553 = vunpack.c.l.b16 %v1046
    %v3554 = vunpack.c.l.b16 %v1047
    %v3555 = vunpack.c.l.b16 %v1048
    %v3556 = vunpack.c.l.b16 %v1049
    %v3557 = vunpack.c.l.b16 %v1050
    %v3558 = vunpack.c.l.b16 %v1051
    %v3559 = vunpack.c.l.b16 %v1052
    %v3560 = vunpack.c.l.b16 %v1053
    %v3561 = vunpack.c.l.b16 %v1054
    %v3562 = vunpack.c.l.b16 %v1055
    %v3563 = vunpack.c.l.b16 %v1056
    %v3564 = vunpack.c.l.b16 %v1057
    %v3565 = vunpack.c.l.b16 %v1058
    %v3566 = vunpack.c.l.b16 %v1059
    %v3567 = vunpack.c.l.b16 %v1060
    %v3568 = vunpack.c.l.b16 %v1061
    %v3569 = vunpack.c.l.b16 %v1062
    %v3570 = vunpack.c.l.b16 %v1063
    %v3571 = vunpack.c.l.b16 %v1064
    %v3572 = vunpack.c.l.b16 %v1065
    %v3573 = vunpack.c.l.b16 %v1066
    %v3574 = vunpack.c.l.b16 %v1067
    %v3575 = vunpack.c.l.b16 %v1068
    %v3576 = vunpack.c.l.b16 %v1069
    %v3577 = vunpack.c.l.b16 %v1070
    %v3578 = vunpack.c.l.b16 %v1071
    %v3579 = vunpack.c.l.b16 %v1072
    %v3580 = vunpack.c.l.b16 %v1073
    %v3581 = vunpack.c.l.b16 %v1074
    %v3582 = vunpack.c.l.b16 %v1075
    %v3583 = vunpack.c.l.b16 %v1076
    %v3584 = vunpack.c.l.b16 %v1077
    %v3585 = vunpack.c.l.b16 %v1078
    %v3586 = vunpack.c.l.b16 %v1079
    %v3587 = vunpack.c.l.b16 %v1080
    %v3588 = vunpack.c.l.b16 %v1081
    %v3589 = vunpack.c.l.b16 %v1082
    %v3590 = vunpack.c.l.b16 %v1083
    %v3591 = vunpack.c.l.b16 %v1084
    %v3592 = vunpack.c.l.b16 %v1085
    %v3593 = vunpack.c.l.b16 %v1086
    %v3594 = vunpack.c.l.b16 %v1087
    %v3595 = vunpack.c.l.b16 %v1088
    %v3596 = vunpack.c.l.b16 %v1089
    %v3597 = vunpack.c.l.b16 %v1090
    %v3598 = vunpack.c.l.b16 %v1091
    %v3599 = vunpack.c.l.b16 %v1092
    %v3600 = vunpack.c.l.b16 %v1093
    %v3601 = vunpack.c.l.b16 %v1094
    %v3602 = vunpack.c.l.b16 %v1095
    %v3603 = vunpack.c.l.b16 %v1096
    %v3604 = vunpack.c.l.b16 %v1097
    %v3605 = vunpack.c.l.b16 %v1098
    %v3606 = vunpack.c.l.b16 %v1099
    %v3607 = vunpack.c.l.b16 %v1100
    %v3608 = vunpack.c.l.b16 %v1101
    %v3609 = vunpack.c.l.b16 %v1102
    %v3610 = vunpack.c.l.b16 %v1103
    %v3611 = vunpack.c.l.b16 %v1104
    %v3612 = vunpack.c.l.b16 %v1105
    %v3613 = vunpack.c.l.b16 %v1106
    %v3614 = vunpack.c.l.b16 %v1107
    %v3615 = vunpack.c.l.b16 %v1108
    %v3616 = vunpack.c.l.b16 %v1109
    %v3617 = vunpack.c.l.b16 %v1110
    %v3618 = vunpack.c.l.b16 %v1111
    %v3619 = vunpack.c.l.b16 %v1112
    %v3620 = vunpack.c.l.b16 %v1113
    %v3621 = vunpack.c.l.b16 %v1114
    %v3622 = vunpack.c.l.b16 %v1115
    %v3623 = vunpack.c.l.b16 %v1116
    %v3624 = vunpack.c.l.b16 %v1117
    %v3625 = vunpack.c.l.b16 %v1118
    %v3626 = vunpack.c.l.b16 %v1119
    %v3627 = vunpack.c.l.b16 %v1120
    %v3628 = vunpack.c.l.b16 %v1121
    %v3629 = vunpack.c.l.b16 %v1122
    %v3630 = vunpack.c.l.b16 %v1123
    %v3631 = vunpack.c.l.b16 %v1124
    %v3632 = vunpack.c.l.b16 %v1125
    %v3633 = vunpack.c.l.b16 %v1126
    %v3634 = vunpack.c.l.b16 %v1127
    %v3635 = vunpack.c.l.b16 %v1128
    %v3636 = vunpack.c.l.b16 %v1129
    %v3637 = vunpack.c.l.b16 %v1130
    %v3638 = vunpack.c.l.b16 %v1131
    %v3639 = vunpack.c.l.b16 %v1132
    %v3640 = vunpack.c.l.b16 %v1133
    %v3641 = vunpack.c.l.b16 %v1134
    %v3642 = vunpack.c.l.b16 %v1135
    %v3643 = vunpack.c.l.b16 %v1136
    %v3644 = vunpack.c.l.b16 %v1137
    %v3645 = vunpack.c.l.b16 %v1138
    %v3646 = vunpack.c.l.b16 %v1139
    %v3647 = vunpack.c.l.b16 %v1140
    %v3648 = vunpack.c.l.b16 %v1141
    %v3649 = vunpack.c.l.b16 %v1142
    %v3650 = vunpack.c.l.b16 %v1143
    %v3651 = vunpack.c.l.b16 %v1144
    %v3652 = vunpack.c.l.b16 %v1145
    %v3653 = vunpack.c.l.b16 %v1146
    %v3654 = vunpack.c.l.b16 %v1147
    %v3655 = vunpack.c.l.b16 %v1148
    %v3656 = vunpack.c.l.b16 %v1149
    %v3657 = vunpack.c.l.b16 %v1150
    %v3658 = vunpack.c.l.b16 %v1151
    %v3659 = vunpack.c.l.b16 %v1152
    %v3660 = vunpack.c.l.b16 %v1153
    %v3661 = vunpack.c.l.b16 %v1154
    %v3662 = vunpack.c.l.b16 %v1155
    %v3663 = vunpack.c.l.b16 %v1156
    %v3664 = vunpack.c.l.b16 %v1157
    %v3665 = vunpack.c.l.b16 %v1158
    %v3666 = vunpack.c.l.b16 %v1159
    %v3667 = vunpack.c.l.b16 %v1160
    %v3668 = vunpack.c.l.b16 %v1161
    %v3669 = vunpack.c.l.b16 %v1162
    %v3670 = vunpack.c.l.b16 %v1163
    %v3671 = vunpack.c.l.b16 %v1164
    %v3672 = vunpack.c.l.b16 %v1165
    %v3673 = vunpack.c.l.b16 %v1166
    %v3674 = vunpack.c.l.b16 %v1167
    %v3675 = vunpack.c.l.b16 %v1168
    %v3676 = vunpack.c.l.b16 %v1169
    %v3677 = vunpack.c.l.b16 %v1170
    %v3678 = vunpack.c.l.b16 %v1171
    %v3679 = vunpack.c.l.b16 %v1172
    %v3680 = vunpack.c.l.b16 %v1173
    %v3681 = vunpack.c.l.b16 %v1174
    %v3682 = vunpack.c.l.b16 %v1175
    %v3683 = vunpack.c.l.b16 %v1176
    %v3684 = vunpack.c.l.b16 %v1177
    %v3685 = vunpack.c.l.b16 %v1178
    %v3686 = vunpack.c.l.b16 %v1179
    %v3687 = vunpack.c.l.b16 %v1180
    %v3688 = vunpack.c.l.b16 %v1181
    %v3689 = vunpack.c.l.b16 %v1182
    %v3690 = vunpack.c.l.b16 %v1183
    %v3691 = vunpack.c.l.b16 %v1184
    %v3692 = vunpack.c.l.b16 %v1185
    %v3693 = vunpack.c.l.b16 %v1186
    %v3694 = vunpack.c.l.b16 %v1187
    %v3695 = vunpack.c.l.b16 %v1188
    %v3696 = vunpack.c.l.b16 %v1189
    %v3697 = vunpack.c.l.b16 %v1190
    %v3698 = vunpack.c.l.b16 %v1191
    %v3699 = vunpack.c.l.b16 %v1192
    %v3700 = vunpack.c.l.b16 %v1193
    %v3701 = vunpack.c.l.b16 %v1194
    %v3702 = vunpack.c.l.b16 %v1195
    %v3703 = vunpack.c.l.b16 %v1196
    %v3704 = vunpack.c.l.b16 %v1197
    %v3705 = vunpack.c.l.b16 %v1198
    %v3706 = vunpack.c.l.b16 %v1199
    %v3707 = vunpack.c.l.b16 %v1200
    %v3708 = vunpack.c.l.b16 %v1201
    %v3709 = vunpack.c.l.b16 %v1202
    %v3710 = vunpack.c.l.b16 %v1203
    %v3711 = vunpack.c.l.b16 %v1204
    %v3712 = vunpack.c.l.b16 %v1205
    %v3713 = vunpack.c.l.b16 %v1206
    %v3714 = vunpack.c.l.b16 %v1207
    %v3715 = vunpack.c.l.b16 %v1208
    %v3716 = vunpack.c.l.b16 %v1209
    %v3717 = vunpack.c.l.b16 %v1210
    %v3718 = vunpack.c.l.b16 %v1211
    %v3719 = vunpack.c.l.b16 %v1212
    %v3720 = vunpack.c.l.b16 %v1213
    %v3721 = vunpack.c.l.b16 %v1214
    %v3722 = vunpack.c.l.b16 %v1215
    %v3723 = vunpack.c.l.b16 %v1216
    %v3724 = vunpack.c.l.b16 %v1217
    %v3725 = vunpack.c.l.b16 %v1218
    %v3726 = vunpack.c.l.b16 %v1219
    %v3727 = vunpack.c.l.b16 %v1220
    %v3728 = vunpack.c.l.b16 %v1221
    %v3729 = vunpack.c.l.b16 %v1222
    %v3730 = vunpack.c.l.b16 %v1223
    %v3731 = vunpack.c.l.b16 %v1224
    %v3732 = vunpack.c.l.b16 %v1225
    %v3733 = vunpack.c.l.b16 %v1226
    %v3734 = vunpack.c.l.b16 %v1227
    %v3735 = vunpack.c.l.b16 %v1228
    %v3736 = vunpack.c.l.b16 %v1229
    %v3737 = vunpack.c.l.b16 %v1230
    %v3738 = vunpack.c.l.b16 %v1231
    %v3739 = vunpack.c.l.b16 %v1232
    %v3740 = vunpack.c.l.b16 %v1233
    %v3741 = vunpack.c.l.b16 %v1234
    %v3742 = vunpack.c.l.b16 %v1235
    %v3743 = vunpack.c.l.b16 %v1236
    %v3744 = vunpack.c.l.b16 %v1237
    %v3745 = vunpack.c.l.b16 %v1238
    %v3746 = vunpack.c.l.b16 %v1239
    %v3747 = vunpack.c.l.b16 %v1240
    %v3748 = vunpack.c.l.b16 %v1241
    %v3749 = vunpack.c.l.b16 %v1242
    %v3750 = vunpack.c.l.b16 %v1243
    %v3751 = vunpack.c.l.b16 %v1244
    %v3752 = vunpack.c.l.b16 %v1245
    %v3753 = vunpack.c.l.b16 %v1246
    %v3754 = vunpack.c.l.b16 %v1247
    %v3755 = vunpack.c.l.b16 %v1248
    %v3756 = vunpack.c.l.b16 %v1249
    %v3757 = vunpack.c.l.b16 %v1250
    %v3758 = vunpack.c.l.b16 %v1251
    %v3759 = vunpack.c.l.b16 %v1252
    %v3760 = vunpack.c.l.b16 %v1253
    %v3761 = vunpack.c.l.b16 %v1254
    %v3762 = vunpack.c.l.b16 %v1255
    %v3763 = vunpack.c.l.b16 %v1256
    %v3764 = vunpack.c.l.b16 %v1257
    %v3765 = vunpack.c.l.b16 %v1258
    %v3766 = vunpack.c.l.b16 %v1259
    %v3767 = vunpack.c.l.b16 %v1260
    %v3768 = vunpack.c.l.b16 %v1261
    %v3769 = vunpack.c.l.b16 %v1262
    %v3770 = vunpack.c.l.b16 %v1263
    %v3771 = vunpack.c.l.b16 %v1264
    %v3772 = vunpack.c.l.b16 %v1265
    %v3773 = vunpack.c.l.b16 %v1266
    %v3774 = vunpack.c.l.b16 %v1267
    %v3775 = vunpack.c.l.b16 %v1268
    %v3776 = vunpack.c.l.b16 %v1269
    %v3777 = vunpack.c.l.b16 %v1270
    %v3778 = vunpack.c.l.b16 %v1271
    %v3779 = vunpack.c.l.b16 %v1272
    %v3780 = vunpack.c.l.b16 %v1273
    %v3781 = vunpack.c.l.b16 %v1274
    %v3782 = vunpack.c.l.b16 %v1275
    %v3783 = vunpack.c.l.b16 %v1276
    %v3784 = vunpack.c.l.b16 %v1277
    %v3785 = vunpack.c.l.b16 %v1278
    %v3786 = vunpack.c.l.b16 %v1279
    %v3787 = vunpack.c.l.b16 %v1280
    %v3788 = vunpack.c.l.b16 %v1281
    %v3789 = vunpack.c.l.b16 %v1282
    %v3790 = vunpack.c.l.b16 %v1283
    %v3791 = vunpack.c.l.b16 %v1284
    %v3792 = vunpack.c.l.b16 %v1285
    %v3793 = vunpack.c.l.b16 %v1286
    %v3794 = vunpack.c.l.b16 %v1287
    %v3795 = vunpack.c.l.b16 %v1288
    %v3796 = vunpack.c.l.b16 %v1289
    %v3797 = vunpack.c.l.b16 %v1290
    %v3798 = vunpack.c.l.b16 %v1291
    %v3799 = vunpack.c.l.b16 %v1292
    %v3800 = vunpack.c.l.b16 %v1293
    %v3801 = vunpack.c.l.b16 %v1294
    %v3802 = vunpack.c.l.b16 %v1295
    %v3803 = vunpack.c.l.b16 %v1296
    %v3804 = vunpack.c.l.b16 %v1297
    %v3805 = vunpack.c.l.b16 %v1298
    %v3806 = vunpack.c.l.b16 %v1299
    %v3807 = vunpack.c.l.b16 %v1300
    %v3808 = vunpack.c.l.b16 %v1301
    %v3809 = vunpack.c.l.b16 %v1302
    %v3810 = vunpack.c.l.b16 %v1303
    %v3811 = vunpack.c.l.b16 %v1304
    %v3812 = vunpack.c.l.b16 %v1305
    %v3813 = vunpack.c.l.b16 %v1306
    %v3814 = vunpack.c.l.b16 %v1307
    %v3815 = vunpack.c.l.b16 %v1308
    %v3816 = vunpack.c.l.b16 %v1309
    %v3817 = vunpack.c.l.b16 %v1310
    %v3818 = vunpack.c.l.b16 %v1311
    %v3819 = vunpack.c.l.b16 %v1312
    %v3820 = vunpack.c.l.b16 %v1313
    %v3821 = vunpack.c.l.b16 %v1314
    %v3822 = vunpack.c.l.b16 %v1315
    %v3823 = vunpack.c.l.b16 %v1316
    %v3824 = vunpack.c.l.b16 %v1317
    %v3825 = vunpack.c.l.b16 %v1318
    %v3826 = vunpack.c.l.b16 %v1319
    %v3827 = vunpack.c.l.b16 %v1320
    %v3828 = vunpack.c.l.b16 %v1321
    %v3829 = vunpack.c.l.b16 %v1322
    %v3830 = vunpack.c.l.b16 %v1323
    %v3831 = vunpack.c.l.b16 %v1324
    %v3832 = vunpack.c.l.b16 %v1325
    %v3833 = vunpack.c.l.b16 %v1326
    %v3834 = vunpack.c.l.b16 %v1327
    %v3835 = vunpack.c.l.b16 %v1328
    %v3836 = vunpack.c.l.b16 %v1329
    %v3837 = vunpack.c.l.b16 %v1330
    %v3838 = vunpack.c.l.b16 %v1331
    %v3839 = vunpack.c.l.b16 %v1332
    %v3840 = vunpack.c.l.b16 %v1333
    %v3841 = vunpack.c.l.b16 %v1334
    %v3842 = vunpack.c.l.b16 %v1335
    %v3843 = vunpack.c.l.b16 %v1336
    %v3844 = vunpack.c.l.b16 %v1337
    %v3845 = vunpack.c.l.b16 %v1338
    %v3846 = vunpack.c.l.b16 %v1339
    %v3847 = vunpack.c.l.b16 %v1340
    %v3848 = vunpack.c.l.b16 %v1341
    %v3849 = vunpack.c.l.b16 %v1342
    %v3850 = vunpack.c.l.b16 %v1343
    %v3851 = vunpack.c.l.b16 %v1344
    %v3852 = vunpack.c.l.b16 %v1345
    %v3853 = vunpack.c.l.b16 %v1346
    %v3854 = vunpack.c.l.b16 %v1347
    %v3855 = vunpack.c.l.b16 %v1348
    %v3856 = vunpack.c.l.b16 %v1349
    %v3857 = vunpack.c.l.b16 %v1350
    %v3858 = vunpack.c.l.b16 %v1351
    %v3859 = vunpack.c.l.b16 %v1352
    %v3860 = vunpack.c.l.b16 %v1353
    %v3861 = vunpack.c.l.b16 %v1354
    %v3862 = vunpack.c.l.b16 %v1355
    %v3863 = vunpack.c.l.b16 %v1356
    %v3864 = vunpack.c.l.b16 %v1357
    %v3865 = vunpack.c.l.b16 %v1358
    %v3866 = vunpack.c.l.b16 %v1359
    %v3867 = vunpack.c.l.b16 %v1360
    %v3868 = vunpack.c.l.b16 %v1361
    %v3869 = vunpack.c.l.b16 %v1362
    %v3870 = vunpack.c.l.b16 %v1363
    %v3871 = vunpack.c.l.b16 %v1364
    %v3872 = vunpack.c.l.b16 %v1365
    %v3873 = vunpack.c.l.b16 %v1366
    %v3874 = vunpack.c.l.b16 %v1367
    %v3875 = vunpack.c.l.b16 %v1368
    %v3876 = vunpack.c.l.b16 %v1369
    %v3877 = vunpack.c.l.b16 %v1370
    %v3878 = vunpack.c.l.b16 %v1371
    %v3879 = vunpack.c.l.b16 %v1372
    %v3880 = vunpack.c.l.b16 %v1373
    %v3881 = vunpack.c.l.b16 %v1374
    %v3882 = vunpack.c.l.b16 %v1375
    %v3883 = vunpack.c.l.b16 %v1376
    %v3884 = vunpack.c.l.b16 %v1377
    %v3885 = vunpack.c.l.b16 %v1378
    %v3886 = vunpack.c.l.b16 %v1379
    %v3887 = vunpack.c.l.b16 %v1380
    %v3888 = vunpack.c.l.b16 %v1381
    %v3889 = vunpack.c.l.b16 %v1382
    %v3890 = vunpack.c.l.b16 %v1383
    %v3891 = vunpack.c.l.b16 %v1384
    %v3892 = vunpack.c.l.b16 %v1385
    %v3893 = vunpack.c.l.b16 %v1386
    %v3894 = vunpack.c.l.b16 %v1387
    %v3895 = vunpack.c.l.b16 %v1388
    %v3896 = vunpack.c.l.b16 %v1389
    %v3897 = vunpack.c.l.b16 %v1390
    %v3898 = vunpack.c.l.b16 %v1391
    %v3899 = vunpack.c.l.b16 %v1392
    %v3900 = vunpack.c.l.b16 %v1393
    %v3901 = vunpack.c.l.b16 %v1394
    %v3902 = vunpack.c.l.b16 %v1395
    %v3903 = vunpack.c.l.b16 %v1396
    %v3904 = vunpack.c.l.b16 %v1397
    %v3905 = vunpack.c.l.b16 %v1398
    %v3906 = vunpack.c.l.b16 %v1399
    %v3907 = vunpack.c.l.b16 %v1400
    %v3908 = vunpack.c.l.b16 %v1401
    %v3909 = vunpack.c.l.b16 %v1402
    %v3910 = vunpack.c.l.b16 %v1403
    %v3911 = vunpack.c.l.b16 %v1404
    %v3912 = vunpack.c.l.b16 %v1405
    %v3913 = vunpack.c.l.b16 %v1406
    %v3914 = vunpack.c.l.b16 %v1407
    %v3915 = vunpack.c.l.b16 %v1408
    %v3916 = vunpack.c.l.b16 %v1409
    %v3917 = vunpack.c.l.b16 %v1410
    %v3918 = vunpack.c.l.b16 %v1411
    %v3919 = vunpack.c.l.b16 %v1412
    %v3920 = vunpack.c.l.b16 %v1413
    %v3921 = vunpack.c.l.b16 %v1414
    %v3922 = vunpack.c.l.b16 %v1415
    %v3923 = vunpack.c.l.b16 %v1416
    %v3924 = vunpack.c.l.b16 %v1417
    %v3925 = vunpack.c.l.b16 %v1418
    %v3926 = vunpack.c.l.b16 %v1419
    %v3927 = vunpack.c.l.b16 %v1420
    %v3928 = vunpack.c.l.b16 %v1421
    %v3929 = vunpack.c.l.b16 %v1422
    %v3930 = vunpack.c.l.b16 %v1423
    %v3931 = vunpack.c.l.b16 %v1424
    %v3932 = vunpack.c.l.b16 %v1425
    %v3933 = vunpack.c.l.b16 %v1426
    %v3934 = vunpack.c.l.b16 %v1427
    %v3935 = vunpack.c.l.b16 %v1428
    %v3936 = vunpack.c.l.b16 %v1429
    %v3937 = vunpack.c.l.b16 %v1430
    %v3938 = vunpack.c.l.b16 %v1431
    %v3939 = vunpack.c.l.b16 %v1432
    %v3940 = vunpack.c.l.b16 %v1433
    %v3941 = vunpack.c.l.b16 %v1434
    %v3942 = vunpack.c.l.b16 %v1435
    %v3943 = vunpack.c.l.b16 %v1436
    %v3944 = vunpack.c.l.b16 %v1437
    %v3945 = vpack.c.b16 %v2696, %v2695
    %v3946 = vpack.c.b16 %v2698, %v2697
    %v3947 = vpack.c.b16 %v2700, %v2699
    %v3948 = vpack.c.b16 %v2702, %v2701
    %v3949 = vpack.c.b16 %v2704, %v2703
    %v3950 = vpack.c.b16 %v2706, %v2705
    %v3951 = vpack.c.b16 %v2708, %v2707
    %v3952 = vpack.c.b16 %v2710, %v2709
    %v3953 = vpack.c.b16 %v2712, %v2711
    %v3954 = vpack.c.b16 %v2714, %v2713
    %v3955 = vpack.c.b16 %v2716, %v2715
    %v3956 = vpack.c.b16 %v2718, %v2717
    %v3957 = vpack.c.b16 %v2720, %v2719
    %v3958 = vpack.c.b16 %v2722, %v2721
    %v3959 = vpack.c.b16 %v2724, %v2723
    %v3960 = vpack.c.b16 %v2726, %v2725
    %v3961 = vpack.c.b16 %v2728, %v2727
    %v3962 = vpack.c.b16 %v2730, %v2729
    %v3963 = vpack.c.b16 %v2732, %v2731
    %v3964 = vpack.c.b16 %v2734, %v2733
    %v3965 = vpack.c.b16 %v2736, %v2735
    %v3966 = vpack.c.b16 %v2738, %v2737
    %v3967 = vpack.c.b16 %v2740, %v2739
    %v3968 = vpack.c.b16 %v2742, %v2741
    %v3969 = vpack.c.b16 %v2744, %v2743
    %v3970 = vpack.c.b16 %v2746, %v2745
    %v3971 = vpack.c.b16 %v2748, %v2747
    %v3972 = vpack.c.b16 %v2750, %v2749
    %v3973 = vpack.c.b16 %v2752, %v2751
    %v3974 = vpack.c.b16 %v2754, %v2753
    %v3975 = vpack.c.b16 %v2756, %v2755
    %v3976 = vpack.c.b16 %v2758, %v2757
    %v3977 = vpack.c.b16 %v2760, %v2759
    %v3978 = vpack.c.b16 %v2762, %v2761
    %v3979 = vpack.c.b16 %v2764, %v2763
    %v3980 = vpack.c.b16 %v2766, %v2765
    %v3981 = vpack.c.b16 %v2768, %v2767
    %v3982 = vpack.c.b16 %v2770, %v2769
    %v3983 = vpack.c.b16 %v2772, %v2771
    %v3984 = vpack.c.b16 %v2774, %v2773
    %v3985 = vpack.c.b16 %v2776, %v2775
    %v3986 = vpack.c.b16 %v2778, %v2777
    %v3987 = vpack.c.b16 %v2780, %v2779
    %v3988 = vpack.c.b16 %v2782, %v2781
    %v3989 = vpack.c.b16 %v2784, %v2783
    %v3990 = vpack.c.b16 %v2786, %v2785
    %v3991 = vpack.c.b16 %v2788, %v2787
    %v3992 = vpack.c.b16 %v2790, %v2789
    %v3993 = vpack.c.b16 %v2792, %v2791
    %v3994 = vpack.c.b16 %v2794, %v2793
    %v3995 = vpack.c.b16 %v2796, %v2795
    %v3996 = vpack.c.b16 %v2798, %v2797
    %v3997 = vpack.c.b16 %v2800, %v2799
    %v3998 = vpack.c.b16 %v2802, %v2801
    %v3999 = vpack.c.b16 %v2804, %v2803
    %v4000 = vpack.c.b16 %v2806, %v2805
    %v4001 = vpack.c.b16 %v2808, %v2807
    %v4002 = vpack.c.b16 %v2810, %v2809
    %v4003 = vpack.c.b16 %v2812, %v2811
    %v4004 = vpack.c.b16 %v2814, %v2813
    %v4005 = vpack.c.b16 %v2816, %v2815
    %v4006 = vpack.c.b16 %v2818, %v2817
    %v4007 = vpack.c.b16 %v2820, %v2819
    %v4008 = vpack.c.b16 %v2822, %v2821
    %v4009 = vpack.c.b16 %v2824, %v2823
    %v4010 = vpack.c.b16 %v2826, %v2825
    %v4011 = vpack.c.b16 %v2828, %v2827
    %v4012 = vpack.c.b16 %v2830, %v2829
    %v4013 = vpack.c.b16 %v2832, %v2831
    %v4014 = vpack.c.b16 %v2834, %v2833
    %v4015 = vpack.c.b16 %v2836, %v2835
    %v4016 = vpack.c.b16 %v2838, %v2837
    %v4017 = vpack.c.b16 %v2840, %v2839
    %v4018 = vpack.c.b16 %v2842, %v2841
    %v4019 = vpack.c.b16 %v2844, %v2843
    %v4020 = vpack.c.b16 %v2846, %v2845
    %v4021 = vpack.c.b16 %v2848, %v2847
    %v4022 = vpack.c.b16 %v2850, %v2849
    %v4023 = vpack.c.b16 %v2852, %v2851
    %v4024 = vpack.c.b16 %v2854, %v2853
    %v4025 = vpack.c.b16 %v2856, %v2855
    %v4026 = vpack.c.b16 %v2858, %v2857
    %v4027 = vpack.c.b16 %v2860, %v2859
    %v4028 = vpack.c.b16 %v2862, %v2861
    %v4029 = vpack.c.b16 %v2864, %v2863
    %v4030 = vpack.c.b16 %v2866, %v2865
    %v4031 = vpack.c.b16 %v2868, %v2867
    %v4032 = vpack.c.b16 %v2870, %v2869
    %v4033 = vpack.c.b16 %v2872, %v2871
    %v4034 = vpack.c.b16 %v2874, %v2873
    %v4035 = vpack.c.b16 %v2876, %v2875
    %v4036 = vpack.c.b16 %v2878, %v2877
    %v4037 = vpack.c.b16 %v2880, %v2879
    %v4038 = vpack.c.b16 %v2882, %v2881
    %v4039 = vpack.c.b16 %v2884, %v2883
    %v4040 = vpack.c.b16 %v2886, %v2885
    %v4041 = vpack.c.b16 %v2888, %v2887
    %v4042 = vpack.c.b16 %v2890, %v2889
    %v4043 = vpack.c.b16 %v2892, %v2891
    %v4044 = vpack.c.b16 %v2894, %v2893
    %v4045 = vpack.c.b16 %v2896, %v2895
    %v4046 = vpack.c.b16 %v2898, %v2897
    %v4047 = vpack.c.b16 %v2900, %v2899
    %v4048 = vpack.c.b16 %v2902, %v2901
    %v4049 = vpack.c.b16 %v2904, %v2903
    %v4050 = vpack.c.b16 %v2906, %v2905
    %v4051 = vpack.c.b16 %v2908, %v2907
    %v4052 = vpack.c.b16 %v2910, %v2909
    %v4053 = vpack.c.b16 %v2912, %v2911
    %v4054 = vpack.c.b16 %v2914, %v2913
    %v4055 = vpack.c.b16 %v2916, %v2915
    %v4056 = vpack.c.b16 %v2918, %v2917
    %v4057 = vpack.c.b16 %v2920, %v2919
    %v4058 = vpack.c.b16 %v2922, %v2921
    %v4059 = vpack.c.b16 %v2924, %v2923
    %v4060 = vpack.c.b16 %v2926, %v2925
    %v4061 = vpack.c.b16 %v2928, %v2927
    %v4062 = vpack.c.b16 %v2930, %v2929
    %v4063 = vpack.c.b16 %v2932, %v2931
    %v4064 = vpack.c.b16 %v2934, %v2933
    %v4065 = vpack.c.b16 %v2936, %v2935
    %v4066 = vpack.c.b16 %v2938, %v2937
    %v4067 = vpack.c.b16 %v2940, %v2939
    %v4068 = vpack.c.b16 %v2942, %v2941
    %v4069 = vpack.c.b16 %v2944, %v2943
    %v4070 = vpack.c.b16 %v2946, %v2945
    %v4071 = vpack.c.b16 %v2948, %v2947
    %v4072 = vpack.c.b16 %v2950, %v2949
    %v4073 = vpack.c.b16 %v2952, %v2951
    %v4074 = vpack.c.b16 %v2954, %v2953
    %v4075 = vpack.c.b16 %v2956, %v2955
    %v4076 = vpack.c.b16 %v2958, %v2957
    %v4077 = vpack.c.b16 %v2960, %v2959
    %v4078 = vpack.c.b16 %v2962, %v2961
    %v4079 = vpack.c.b16 %v2964, %v2963
    %v4080 = vpack.c.b16 %v2966, %v2965
    %v4081 = vpack.c.b16 %v2968, %v2967
    %v4082 = vpack.c.b16 %v2970, %v2969
    %v4083 = vpack.c.b16 %v2972, %v2971
    %v4084 = vpack.c.b16 %v2974, %v2973
    %v4085 = vpack.c.b16 %v2976, %v2975
    %v4086 = vpack.c.b16 %v2978, %v2977
    %v4087 = vpack.c.b16 %v2980, %v2979
    %v4088 = vpack.c.b16 %v2982, %v2981
    %v4089 = vpack.c.b16 %v2984, %v2983
    %v4090 = vpack.c.b16 %v2986, %v2985
    %v4091 = vpack.c.b16 %v2988, %v2987
    %v4092 = vpack.c.b16 %v2990, %v2989
    %v4093 = vpack.c.b16 %v2992, %v2991
    %v4094 = vpack.c.b16 %v2994, %v2993
    %v4095 = vpack.c.b16 %v2996, %v2995
    %v4096 = vpack.c.b16 %v2998, %v2997
    %v4097 = vpack.c.b16 %v3000, %v2999
    %v4098 = vpack.c.b16 %v3002, %v3001
    %v4099 = vpack.c.b16 %v3004, %v3003
    %v4100 = vpack.c.b16 %v3006, %v3005
    %v4101 = vpack.c.b16 %v3008, %v3007
    %v4102 = vpack.c.b16 %v3010, %v3009
    %v4103 = vpack.c.b16 %v3012, %v3011
    %v4104 = vpack.c.b16 %v3014, %v3013
    %v4105 = vpack.c.b16 %v3016, %v3015
    %v4106 = vpack.c.b16 %v3018, %v3017
    %v4107 = vpack.c.b16 %v3020, %v3019
    %v4108 = vpack.c.b16 %v3022, %v3021
    %v4109 = vpack.c.b16 %v3024, %v3023
    %v4110 = vpack.c.b16 %v3026, %v3025
    %v4111 = vpack.c.b16 %v3028, %v3027
    %v4112 = vpack.c.b16 %v3030, %v3029
    %v4113 = vpack.c.b16 %v3032, %v3031
    %v4114 = vpack.c.b16 %v3034, %v3033
    %v4115 = vpack.c.b16 %v3036, %v3035
    %v4116 = vpack.c.b16 %v3038, %v3037
    %v4117 = vpack.c.b16 %v3040, %v3039
    %v4118 = vpack.c.b16 %v3042, %v3041
    %v4119 = vpack.c.b16 %v3044, %v3043
    %v4120 = vpack.c.b16 %v3046, %v3045
    %v4121 = vpack.c.b16 %v3048, %v3047
    %v4122 = vpack.c.b16 %v3050, %v3049
    %v4123 = vpack.c.b16 %v3052, %v3051
    %v4124 = vpack.c.b16 %v3054, %v3053
    %v4125 = vpack.c.b16 %v3056, %v3055
    %v4126 = vpack.c.b16 %v3058, %v3057
    %v4127 = vpack.c.b16 %v3060, %v3059
    %v4128 = vpack.c.b16 %v3062, %v3061
    %v4129 = vpack.c.b16 %v3064, %v3063
    %v4130 = vpack.c.b16 %v3066, %v3065
    %v4131 = vpack.c.b16 %v3068, %v3067
    %v4132 = vpack.c.b16 %v3070, %v3069
    %v4133 = vpack.c.b16 %v3072, %v3071
    %v4134 = vpack.c.b16 %v3074, %v3073
    %v4135 = vpack.c.b16 %v3076, %v3075
    %v4136 = vpack.c.b16 %v3078, %v3077
    %v4137 = vpack.c.b16 %v3080, %v3079
    %v4138 = vpack.c.b16 %v3082, %v3081
    %v4139 = vpack.c.b16 %v3084, %v3083
    %v4140 = vpack.c.b16 %v3086, %v3085
    %v4141 = vpack.c.b16 %v3088, %v3087
    %v4142 = vpack.c.b16 %v3090, %v3089
    %v4143 = vpack.c.b16 %v3092, %v3091
    %v4144 = vpack.c.b16 %v3094, %v3093
    %v4145 = vpack.c.b16 %v3096, %v3095
    %v4146 = vpack.c.b16 %v3098, %v3097
    %v4147 = vpack.c.b16 %v3100, %v3099
    %v4148 = vpack.c.b16 %v3102, %v3101
    %v4149 = vpack.c.b16 %v3104, %v3103
    %v4150 = vpack.c.b16 %v3106, %v3105
    %v4151 = vpack.c.b16 %v3108, %v3107
    %v4152 = vpack.c.b16 %v3110, %v3109
    %v4153 = vpack.c.b16 %v3112, %v3111
    %v4154 = vpack.c.b16 %v3114, %v3113
    %v4155 = vpack.c.b16 %v3116, %v3115
    %v4156 = vpack.c.b16 %v3118, %v3117
    %v4157 = vpack.c.b16 %v3120, %v3119
    %v4158 = vpack.c.b16 %v3122, %v3121
    %v4159 = vpack.c.b16 %v3124, %v3123
    %v4160 = vpack.c.b16 %v3126, %v3125
    %v4161 = vpack.c.b16 %v3128, %v3127
    %v4162 = vpack.c.b16 %v3130, %v3129
    %v4163 = vpack.c.b16 %v3132, %v3131
    %v4164 = vpack.c.b16 %v3134, %v3133
    %v4165 = vpack.c.b16 %v3136, %v3135
    %v4166 = vpack.c.b16 %v3138, %v3137
    %v4167 = vpack.c.b16 %v3140, %v3139
    %v4168 = vpack.c.b16 %v3142, %v3141
    %v4169 = vpack.c.b16 %v3144, %v3143
    %v4170 = vpack.c.b16 %v3146, %v3145
    %v4171 = vpack.c.b16 %v3148, %v3147
    %v4172 = vpack.c.b16 %v3150, %v3149
    %v4173 = vpack.c.b16 %v3152, %v3151
    %v4174 = vpack.c.b16 %v3154, %v3153
    %v4175 = vpack.c.b16 %v3156, %v3155
    %v4176 = vpack.c.b16 %v3158, %v3157
    %v4177 = vpack.c.b16 %v3160, %v3159
    %v4178 = vpack.c.b16 %v3162, %v3161
    %v4179 = vpack.c.b16 %v3164, %v3163
    %v4180 = vpack.c.b16 %v3166, %v3165
    %v4181 = vpack.c.b16 %v3168, %v3167
    %v4182 = vpack.c.b16 %v3170, %v3169
    %v4183 = vpack.c.b16 %v3172, %v3171
    %v4184 = vpack.c.b16 %v3174, %v3173
    %v4185 = vpack.c.b16 %v3176, %v3175
    %v4186 = vpack.c.b16 %v3178, %v3177
    %v4187 = vpack.c.b16 %v3180, %v3179
    %v4188 = vpack.c.b16 %v3182, %v3181
    %v4189 = vpack.c.b16 %v3184, %v3183
    %v4190 = vpack.c.b16 %v3186, %v3185
    %v4191 = vpack.c.b16 %v3188, %v3187
    %v4192 = vpack.c.b16 %v3190, %v3189
    %v4193 = vpack.c.b16 %v3192, %v3191
    %v4194 = vpack.c.b16 %v3194, %v3193
    %v4195 = vpack.c.b16 %v3196, %v3195
    %v4196 = vpack.c.b16 %v3198, %v3197
    %v4197 = vpack.c.b16 %v3200, %v3199
    %v4198 = vpack.c.b16 %v3202, %v3201
    %v4199 = vpack.c.b16 %v3204, %v3203
    %v4200 = vpack.c.b16 %v3206, %v3205
    %v4201 = vpack.c.b16 %v3208, %v3207
    %v4202 = vpack.c.b16 %v3210, %v3209
    %v4203 = vpack.c.b16 %v3212, %v3211
    %v4204 = vpack.c.b16 %v3214, %v3213
    %v4205 = vpack.c.b16 %v3216, %v3215
    %v4206 = vpack.c.b16 %v3218, %v3217
    %v4207 = vpack.c.b16 %v3220, %v3219
    %v4208 = vpack.c.b16 %v3222, %v3221
    %v4209 = vpack.c.b16 %v3224, %v3223
    %v4210 = vpack.c.b16 %v3226, %v3225
    %v4211 = vpack.c.b16 %v3228, %v3227
    %v4212 = vpack.c.b16 %v3230, %v3229
    %v4213 = vpack.c.b16 %v3232, %v3231
    %v4214 = vpack.c.b16 %v3234, %v3233
    %v4215 = vpack.c.b16 %v3236, %v3235
    %v4216 = vpack.c.b16 %v3238, %v3237
    %v4217 = vpack.c.b16 %v3240, %v3239
    %v4218 = vpack.c.b16 %v3242, %v3241
    %v4219 = vpack.c.b16 %v3244, %v3243
    %v4220 = vpack.c.b16 %v3246, %v3245
    %v4221 = vpack.c.b16 %v3248, %v3247
    %v4222 = vpack.c.b16 %v3250, %v3249
    %v4223 = vpack.c.b16 %v3252, %v3251
    %v4224 = vpack.c.b16 %v3254, %v3253
    %v4225 = vpack.c.b16 %v3256, %v3255
    %v4226 = vpack.c.b16 %v3258, %v3257
    %v4227 = vpack.c.b16 %v3260, %v3259
    %v4228 = vpack.c.b16 %v3262, %v3261
    %v4229 = vpack.c.b16 %v3264, %v3263
    %v4230 = vpack.c.b16 %v3266, %v3265
    %v4231 = vpack.c.b16 %v3268, %v3267
    %v4232 = vpack.c.b16 %v3270, %v3269
    %v4233 = vpack.c.b16 %v3272, %v3271
    %v4234 = vpack.c.b16 %v3274, %v3273
    %v4235 = vpack.c.b16 %v3276, %v3275
    %v4236 = vpack.c.b16 %v3278, %v3277
    %v4237 = vpack.c.b16 %v3280, %v3279
    %v4238 = vpack.c.b16 %v3282, %v3281
    %v4239 = vpack.c.b16 %v3284, %v3283
    %v4240 = vpack.c.b16 %v3286, %v3285
    %v4241 = vpack.c.b16 %v3288, %v3287
    %v4242 = vpack.c.b16 %v3290, %v3289
    %v4243 = vpack.c.b16 %v3292, %v3291
    %v4244 = vpack.c.b16 %v3294, %v3293
    %v4245 = vpack.c.b16 %v3296, %v3295
    %v4246 = vpack.c.b16 %v3298, %v3297
    %v4247 = vpack.c.b16 %v3300, %v3299
    %v4248 = vpack.c.b16 %v3302, %v3301
    %v4249 = vpack.c.b16 %v3304, %v3303
    %v4250 = vpack.c.b16 %v3306, %v3305
    %v4251 = vpack.c.b16 %v3308, %v3307
    %v4252 = vpack.c.b16 %v3310, %v3309
    %v4253 = vpack.c.b16 %v3312, %v3311
    %v4254 = vpack.c.b16 %v3314, %v3313
    %v4255 = vpack.c.b16 %v3316, %v3315
    %v4256 = vpack.c.b16 %v3318, %v3317
    %v4257 = vpack.c.b16 %v3320, %v3319
    %v4258 = vpack.c.b16 %v3322, %v3321
    %v4259 = vpack.c.b16 %v3324, %v3323
    %v4260 = vpack.c.b16 %v3326, %v3325
    %v4261 = vpack.c.b16 %v3328, %v3327
    %v4262 = vpack.c.b16 %v3330, %v3329
    %v4263 = vpack.c.b16 %v3332, %v3331
    %v4264 = vpack.c.b16 %v3334, %v3333
    %v4265 = vpack.c.b16 %v3336, %v3335
    %v4266 = vpack.c.b16 %v3338, %v3337
    %v4267 = vpack.c.b16 %v3340, %v3339
    %v4268 = vpack.c.b16 %v3342, %v3341
    %v4269 = vpack.c.b16 %v3344, %v3343
    %v4270 = vpack.c.b16 %v3346, %v3345
    %v4271 = vpack.c.b16 %v3348, %v3347
    %v4272 = vpack.c.b16 %v3350, %v3349
    %v4273 = vpack.c.b16 %v3352, %v3351
    %v4274 = vpack.c.b16 %v3354, %v3353
    %v4275 = vpack.c.b16 %v3356, %v3355
    %v4276 = vpack.c.b16 %v3358, %v3357
    %v4277 = vpack.c.b16 %v3360, %v3359
    %v4278 = vpack.c.b16 %v3362, %v3361
    %v4279 = vpack.c.b16 %v3364, %v3363
    %v4280 = vpack.c.b16 %v3366, %v3365
    %v4281 = vpack.c.b16 %v3368, %v3367
    %v4282 = vpack.c.b16 %v3370, %v3369
    %v4283 = vpack.c.b16 %v3372, %v3371
    %v4284 = vpack.c.b16 %v3374, %v3373
    %v4285 = vpack.c.b16 %v3376, %v3375
    %v4286 = vpack.c.b16 %v3378, %v3377
    %v4287 = vpack.c.b16 %v3380, %v3379
    %v4288 = vpack.c.b16 %v3382, %v3381
    %v4289 = vpack.c.b16 %v3384, %v3383
    %v4290 = vpack.c.b16 %v3386, %v3385
    %v4291 = vpack.c.b16 %v3388, %v3387
    %v4292 = vpack.c.b16 %v3390, %v3389
    %v4293 = vpack.c.b16 %v3392, %v3391
    %v4294 = vpack.c.b16 %v3394, %v3393
    %v4295 = vpack.c.b16 %v3396, %v3395
    %v4296 = vpack.c.b16 %v3398, %v3397
    %v4297 = vpack.c.b16 %v3400, %v3399
    %v4298 = vpack.c.b16 %v3402, %v3401
    %v4299 = vpack.c.b16 %v3404, %v3403
    %v4300 = vpack.c.b16 %v3406, %v3405
    %v4301 = vpack.c.b16 %v3408, %v3407
    %v4302 = vpack.c.b16 %v3410, %v3409
    %v4303 = vpack.c.b16 %v3412, %v3411
    %v4304 = vpack.c.b16 %v3414, %v3413
    %v4305 = vpack.c.b16 %v3416, %v3415
    %v4306 = vpack.c.b16 %v3418, %v3417
    %v4307 = vpack.c.b16 %v3420, %v3419
    %v4308 = vpack.c.b16 %v3422, %v3421
    %v4309 = vpack.c.b16 %v3424, %v3423
    %v4310 = vpack.c.b16 %v3426, %v3425
    %v4311 = vpack.c.b16 %v3428, %v3427
    %v4312 = vpack.c.b16 %v3430, %v3429
    %v4313 = vpack.c.b16 %v3432, %v3431
    %v4314 = vpack.c.b16 %v3434, %v3433
    %v4315 = vpack.c.b16 %v3436, %v3435
    %v4316 = vpack.c.b16 %v3438, %v3437
    %v4317 = vpack.c.b16 %v3440, %v3439
    %v4318 = vpack.c.b16 %v3442, %v3441
    %v4319 = vpack.c.b16 %v3444, %v3443
    %v4320 = vpack.c.b16 %v3446, %v3445
    %v4321 = vpack.c.b16 %v3448, %v3447
    %v4322 = vpack.c.b16 %v3450, %v3449
    %v4323 = vpack.c.b16 %v3452, %v3451
    %v4324 = vpack.c.b16 %v3454, %v3453
    %v4325 = vpack.c.b16 %v3456, %v3455
    %v4326 = vpack.c.b16 %v3458, %v3457
    %v4327 = vpack.c.b16 %v3460, %v3459
    %v4328 = vpack.c.b16 %v3462, %v3461
    %v4329 = vpack.c.b16 %v3464, %v3463
    %v4330 = vpack.c.b16 %v3466, %v3465
    %v4331 = vpack.c.b16 %v3468, %v3467
    %v4332 = vpack.c.b16 %v3470, %v3469
    %v4333 = vpack.c.b16 %v3472, %v3471
    %v4334 = vpack.c.b16 %v3474, %v3473
    %v4335 = vpack.c.b16 %v3476, %v3475
    %v4336 = vpack.c.b16 %v3478, %v3477
    %v4337 = vpack.c.b16 %v3480, %v3479
    %v4338 = vpack.c.b16 %v3482, %v3481
    %v4339 = vpack.c.b16 %v3484, %v3483
    %v4340 = vpack.c.b16 %v3486, %v3485
    %v4341 = vpack.c.b16 %v3488, %v3487
    %v4342 = vpack.c.b16 %v3490, %v3489
    %v4343 = vpack.c.b16 %v3492, %v3491
    %v4344 = vpack.c.b16 %v3494, %v3493
    %v4345 = vpack.c.b16 %v3496, %v3495
    %v4346 = vpack.c.b16 %v3498, %v3497
    %v4347 = vpack.c.b16 %v3500, %v3499
    %v4348 = vpack.c.b16 %v3502, %v3501
    %v4349 = vpack.c.b16 %v3504, %v3503
    %v4350 = vpack.c.b16 %v3506, %v3505
    %v4351 = vpack.c.b16 %v3508, %v3507
    %v4352 = vpack.c.b16 %v3510, %v3509
    %v4353 = vpack.c.b16 %v3512, %v3511
    %v4354 = vpack.c.b16 %v3514, %v3513
    %v4355 = vpack.c.b16 %v3516, %v3515
    %v4356 = vpack.c.b16 %v3518, %v3517
    %v4357 = vpack.c.b16 %v3520, %v3519
    %v4358 = vpack.c.b16 %v3522, %v3521
    %v4359 = vpack.c.b16 %v3524, %v3523
    %v4360 = vpack.c.b16 %v3526, %v3525
    %v4361 = vpack.c.b16 %v3528, %v3527
    %v4362 = vpack.c.b16 %v3530, %v3529
    %v4363 = vpack.c.b16 %v3532, %v3531
    %v4364 = vpack.c.b16 %v3534, %v3533
    %v4365 = vpack.c.b16 %v3536, %v3535
    %v4366 = vpack.c.b16 %v3538, %v3537
    %v4367 = vpack.c.b16 %v3540, %v3539
    %v4368 = vpack.c.b16 %v3542, %v3541
    %v4369 = vpack.c.b16 %v3544, %v3543
    %v4370 = vpack.c.b16 %v3546, %v3545
    %v4371 = vpack.c.b16 %v3548, %v3547
    %v4372 = vpack.c.b16 %v3550, %v3549
    %v4373 = vpack.c.b16 %v3552, %v3551
    %v4374 = vpack.c.b16 %v3554, %v3553
    %v4375 = vpack.c.b16 %v3556, %v3555
    %v4376 = vpack.c.b16 %v3558, %v3557
    %v4377 = vpack.c.b16 %v3560, %v3559
    %v4378 = vpack.c.b16 %v3562, %v3561
    %v4379 = vpack.c.b16 %v3564, %v3563
    %v4380 = vpack.c.b16 %v3566, %v3565
    %v4381 = vpack.c.b16 %v3568, %v3567
    %v4382 = vpack.c.b16 %v3570, %v3569
    %v4383 = vpack.c.b16 %v3572, %v3571
    %v4384 = vpack.c.b16 %v3574, %v3573
    %v4385 = vpack.c.b16 %v3576, %v3575
    %v4386 = vpack.c.b16 %v3578, %v3577
    %v4387 = vpack.c.b16 %v3580, %v3579
    %v4388 = vpack.c.b16 %v3582, %v3581
    %v4389 = vpack.c.b16 %v3584, %v3583
    %v4390 = vpack.c.b16 %v3586, %v3585
    %v4391 = vpack.c.b16 %v3588, %v3587
    %v4392 = vpack.c.b16 %v3590, %v3589
    %v4393 = vpack.c.b16 %v3592, %v3591
    %v4394 = vpack.c.b16 %v3594, %v3593
    %v4395 = vpack.c.b16 %v3596, %v3595
    %v4396 = vpack.c.b16 %v3598, %v3597
    %v4397 = vpack.c.b16 %v3600, %v3599
    %v4398 = vpack.c.b16 %v3602, %v3601
    %v4399 = vpack.c.b16 %v3604, %v3603
    %v4400 = vpack.c.b16 %v3606, %v3605
    %v4401 = vpack.c.b16 %v3608, %v3607
    %v4402 = vpack.c.b16 %v3610, %v3609
    %v4403 = vpack.c.b16 %v3612, %v3611
    %v4404 = vpack.c.b16 %v3614, %v3613
    %v4405 = vpack.c.b16 %v3616, %v3615
    %v4406 = vpack.c.b16 %v3618, %v3617
    %v4407 = vpack.c.b16 %v3620, %v3619
    %v4408 = vpack.c.b16 %v3622, %v3621
    %v4409 = vpack.c.b16 %v3624, %v3623
    %v4410 = vpack.c.b16 %v3626, %v3625
    %v4411 = vpack.c.b16 %v3628, %v3627
    %v4412 = vpack.c.b16 %v3630, %v3629
    %v4413 = vpack.c.b16 %v3632, %v3631
    %v4414 = vpack.c.b16 %v3634, %v3633
    %v4415 = vpack.c.b16 %v3636, %v3635
    %v4416 = vpack.c.b16 %v3638, %v3637
    %v4417 = vpack.c.b16 %v3640, %v3639
    %v4418 = vpack.c.b16 %v3642, %v3641
    %v4419 = vpack.c.b16 %v3644, %v3643
    %v4420 = vpack.c.b16 %v3646, %v3645
    %v4421 = vpack.c.b16 %v3648, %v3647
    %v4422 = vpack.c.b16 %v3650, %v3649
    %v4423 = vpack.c.b16 %v3652, %v3651
    %v4424 = vpack.c.b16 %v3654, %v3653
    %v4425 = vpack.c.b16 %v3656, %v3655
    %v4426 = vpack.c.b16 %v3658, %v3657
    %v4427 = vpack.c.b16 %v3660, %v3659
    %v4428 = vpack.c.b16 %v3662, %v3661
    %v4429 = vpack.c.b16 %v3664, %v3663
    %v4430 = vpack.c.b16 %v3666, %v3665
    %v4431 = vpack.c.b16 %v3668, %v3667
    %v4432 = vpack.c.b16 %v3670, %v3669
    %v4433 = vpack.c.b16 %v3672, %v3671
    %v4434 = vpack.c.b16 %v3674, %v3673
    %v4435 = vpack.c.b16 %v3676, %v3675
    %v4436 = vpack.c.b16 %v3678, %v3677
    %v4437 = vpack.c.b16 %v3680, %v3679
    %v4438 = vpack.c.b16 %v3682, %v3681
    %v4439 = vpack.c.b16 %v3684, %v3683
    %v4440 = vpack.c.b16 %v3686, %v3685
    %v4441 = vpack.c.b16 %v3688, %v3687
    %v4442 = vpack.c.b16 %v3690, %v3689
    %v4443 = vpack.c.b16 %v3692, %v3691
    %v4444 = vpack.c.b16 %v3694, %v3693
    %v4445 = vpack.c.b16 %v3696, %v3695
    %v4446 = vpack.c.b16 %v3698, %v3697
    %v4447 = vpack.c.b16 %v3700, %v3699
    %v4448 = vpack.c.b16 %v3702, %v3701
    %v4449 = vpack.c.b16 %v3704, %v3703
    %v4450 = vpack.c.b16 %v3706, %v3705
    %v4451 = vpack.c.b16 %v3708, %v3707
    %v4452 = vpack.c.b16 %v3710, %v3709
    %v4453 = vpack.c.b16 %v3712, %v3711
    %v4454 = vpack.c.b16 %v3714, %v3713
    %v4455 = vpack.c.b16 %v3716, %v3715
    %v4456 = vpack.c.b16 %v3718, %v3717
    %v4457 = vpack.c.b16 %v3720, %v3719
    %v4458 = vpack.c.b16 %v3722, %v3721
    %v4459 = vpack.c.b16 %v3724, %v3723
    %v4460 = vpack.c.b16 %v3726, %v3725
    %v4461 = vpack.c.b16 %v3728, %v3727
    %v4462 = vpack.c.b16 %v3730, %v3729
    %v4463 = vpack.c.b16 %v3732, %v3731
    %v4464 = vpack.c.b16 %v3734, %v3733
    %v4465 = vpack.c.b16 %v3736, %v3735
    %v4466 = vpack.c.b16 %v3738, %v3737
    %v4467 = vpack.c.b16 %v3740, %v3739
    %v4468 = vpack.c.b16 %v3742, %v3741
    %v4469 = vpack.c.b16 %v3744, %v3743
    %v4470 = vpack.c.b16 %v3746, %v3745
    %v4471 = vpack.c.b16 %v3748, %v3747
    %v4472 = vpack.c.b16 %v3750, %v3749
    %v4473 = vpack.c.b16 %v3752, %v3751
    %v4474 = vpack.c.b16 %v3754, %v3753
    %v4475 = vpack.c.b16 %v3756, %v3755
    %v4476 = vpack.c.b16 %v3758, %v3757
    %v4477 = vpack.c.b16 %v3760, %v3759
    %v4478 = vpack.c.b16 %v3762, %v3761
    %v4479 = vpack.c.b16 %v3764, %v3763
    %v4480 = vpack.c.b16 %v3766, %v3765
    %v4481 = vpack.c.b16 %v3768, %v3767
    %v4482 = vpack.c.b16 %v3770, %v3769
    %v4483 = vpack.c.b16 %v3772, %v3771
    %v4484 = vpack.c.b16 %v3774, %v3773
    %v4485 = vpack.c.b16 %v3776, %v3775
    %v4486 = vpack.c.b16 %v3778, %v3777
    %v4487 = vpack.c.b16 %v3780, %v3779
    %v4488 = vpack.c.b16 %v3782, %v3781
    %v4489 = vpack.c.b16 %v3784, %v3783
    %v4490 = vpack.c.b16 %v3786, %v3785
    %v4491 = vpack.c.b16 %v3788, %v3787
    %v4492 = vpack.c.b16 %v3790, %v3789
    %v4493 = vpack.c.b16 %v3792, %v3791
    %v4494 = vpack.c.b16 %v3794, %v3793
    %v4495 = vpack.c.b16 %v3796, %v3795
    %v4496 = vpack.c.b16 %v3798, %v3797
    %v4497 = vpack.c.b16 %v3800, %v3799
    %v4498 = vpack.c.b16 %v3802, %v3801
    %v4499 = vpack.c.b16 %v3804, %v3803
    %v4500 = vpack.c.b16 %v3806, %v3805
    %v4501 = vpack.c.b16 %v3808, %v3807
    %v4502 = vpack.c.b16 %v3810, %v3809
    %v4503 = vpack.c.b16 %v3812, %v3811
    %v4504 = vpack.c.b16 %v3814, %v3813
    %v4505 = vpack.c.b16 %v3816, %v3815
    %v4506 = vpack.c.b16 %v3818, %v3817
    %v4507 = vpack.c.b16 %v3820, %v3819
    %v4508 = vpack.c.b16 %v3822, %v3821
    %v4509 = vpack.c.b16 %v3824, %v3823
    %v4510 = vpack.c.b16 %v3826, %v3825
    %v4511 = vpack.c.b16 %v3828, %v3827
    %v4512 = vpack.c.b16 %v3830, %v3829
    %v4513 = vpack.c.b16 %v3832, %v3831
    %v4514 = vpack.c.b16 %v3834, %v3833
    %v4515 = vpack.c.b16 %v3836, %v3835
    %v4516 = vpack.c.b16 %v3838, %v3837
    %v4517 = vpack.c.b16 %v3840, %v3839
    %v4518 = vpack.c.b16 %v3842, %v3841
    %v4519 = vpack.c.b16 %v3844, %v3843
    %v4520 = vpack.c.b16 %v3846, %v3845
    %v4521 = vpack.c.b16 %v3848, %v3847
    %v4522 = vpack.c.b16 %v3850, %v3849
    %v4523 = vpack.c.b16 %v3852, %v3851
    %v4524 = vpack.c.b16 %v3854, %v3853
    %v4525 = vpack.c.b16 %v3856, %v3855
    %v4526 = vpack.c.b16 %v3858, %v3857
    %v4527 = vpack.c.b16 %v3860, %v3859
    %v4528 = vpack.c.b16 %v3862, %v3861
    %v4529 = vpack.c.b16 %v3864, %v3863
    %v4530 = vpack.c.b16 %v3866, %v3865
    %v4531 = vpack.c.b16 %v3868, %v3867
    %v4532 = vpack.c.b16 %v3870, %v3869
    %v4533 = vpack.c.b16 %v3872, %v3871
    %v4534 = vpack.c.b16 %v3874, %v3873
    %v4535 = vpack.c.b16 %v3876, %v3875
    %v4536 = vpack.c.b16 %v3878, %v3877
    %v4537 = vpack.c.b16 %v3880, %v3879
    %v4538 = vpack.c.b16 %v3882, %v3881
    %v4539 = vpack.c.b16 %v3884, %v3883
    %v4540 = vpack.c.b16 %v3886, %v3885
    %v4541 = vpack.c.b16 %v3888, %v3887
    %v4542 = vpack.c.b16 %v3890, %v3889
    %v4543 = vpack.c.b16 %v3892, %v3891
    %v4544 = vpack.c.b16 %v3894, %v3893
    %v4545 = vpack.c.b16 %v3896, %v3895
    %v4546 = vpack.c.b16 %v3898, %v3897
    %v4547 = vpack.c.b16 %v3900, %v3899
    %v4548 = vpack.c.b16 %v3902, %v3901
    %v4549 = vpack.c.b16 %v3904, %v3903
    %v4550 = vpack.c.b16 %v3906, %v3905
    %v4551 = vpack.c.b16 %v3908, %v3907
    %v4552 = vpack.c.b16 %v3910, %v3909
    %v4553 = vpack.c.b16 %v3912, %v3911
    %v4554 = vpack.c.b16 %v3914, %v3913
    %v4555 = vpack.c.b16 %v3916, %v3915
    %v4556 = vpack.c.b16 %v3918, %v3917
    %v4557 = vpack.c.b16 %v3920, %v3919
    %v4558 = vpack.c.b16 %v3922, %v3921
    %v4559 = vpack.c.b16 %v3924, %v3923
    %v4560 = vpack.c.b16 %v3926, %v3925
    %v4561 = vpack.c.b16 %v3928, %v3927
    %v4562 = vpack.c.b16 %v3930, %v3929
    %v4563 = vpack.c.b16 %v3932, %v3931
    %v4564 = vpack.c.b16 %v3934, %v3933
    %v4565 = vpack.c.b16 %v3936, %v3935
    %v4566 = vpack.c.b16 %v3938, %v3937
    %v4567 = vpack.c.b16 %v3940, %v3939
    %v4568 = vpack.c.b16 %v3942, %v3941
    %v4569 = vpack.c.b16 %v3944, %v3943
    %vm5195 = vcmask 130048
    %v5197 = vsel %vm5195, %v187, 0
    %5199 = vmatprep.subr.bf16.mxu0 0
    %5200 = vmatpush1.bf16.msra.mxu0 %v3945
    %5201 = vmatprep.subr.bf16.mxu0 0
    %5202 = vmatpush1.bf16.msra.mxu0 %v3946
    %5203 = vmatprep.subr.bf16.mxu0 0
    %5204 = vmatpush1.bf16.msra.mxu0 %v3947
    %5205 = vmatprep.subr.bf16.mxu0 0
    %5206 = vmatpush1.bf16.msra.mxu0 %v3948
    %5207 = vmatprep.subr.bf16.mxu0 0
    %5208 = vmatpush1.bf16.msra.mxu0 %v3949
    %5209 = vmatprep.subr.bf16.mxu0 0
    %5210 = vmatpush1.bf16.msra.mxu0 %v3950
    %5211 = vmatprep.subr.bf16.mxu0 0
    %5212 = vmatpush1.bf16.msra.mxu0 %v3951
    %5213 = vmatprep.subr.bf16.mxu0 0
    %5214 = vmatpush1.bf16.msra.mxu0 %v3952
    %5215 = vmatprep.subr.bf16.mxu0 0
    %5216 = vmatpush1.bf16.msra.mxu0 %v3953
    %5217 = vmatprep.subr.bf16.mxu0 0
    %5218 = vmatpush1.bf16.msra.mxu0 %v3954
    %5219 = vmatprep.subr.bf16.mxu0 0
    %5220 = vmatpush1.bf16.msra.mxu0 %v3955
    %5221 = vmatprep.subr.bf16.mxu0 0
    %5222 = vmatpush1.bf16.msra.mxu0 %v3956
    %5223 = vmatprep.subr.bf16.mxu0 0
    %5224 = vmatpush1.bf16.msra.mxu0 %v3957
    %5225 = vmatprep.subr.bf16.mxu0 0
    %5226 = vmatpush1.bf16.msra.mxu0 %v3958
    %5227 = vmatprep.subr.bf16.mxu0 0
    %5228 = vmatpush1.bf16.msra.mxu0 %v3959
    %5229 = vmatprep.subr.bf16.mxu0 0
    %5230 = vmatpush1.bf16.msra.mxu0 %v3960
    %5231 = vmatprep.mubr.bf16.mxu0 %v110
    %5232 = vmatmul.mubr.bf16.gmra.mrb[0].mxu0 %v109
    %v5233 = vpop.f32.mrb[0].mxu0
    %v5234 = vadd.f32 %v1443, %v5233
    %v5235 = vpop.f32.mrb[0].mxu0
    %v5236 = vpop.f32.mrb[0].mxu0
    %v5237 = vpop.f32.mrb[0].mxu0
    %5238 = vdwg.mxu0
    %5239 = vmatprep.subr.bf16.mxu0 0
    %5240 = vmatpush1.bf16.msra.mxu0 %v3961
    %5241 = vmatprep.subr.bf16.mxu0 0
    %5242 = vmatpush1.bf16.msra.mxu0 %v3962
    %5243 = vmatprep.subr.bf16.mxu0 0
    %5244 = vmatpush1.bf16.msra.mxu0 %v3963
    %5245 = vmatprep.subr.bf16.mxu0 0
    %5246 = vmatpush1.bf16.msra.mxu0 %v3964
    %5247 = vmatprep.subr.bf16.mxu0 0
    %5248 = vmatpush1.bf16.msra.mxu0 %v3965
    %5249 = vmatprep.subr.bf16.mxu0 0
    %5250 = vmatpush1.bf16.msra.mxu0 %v3966
    %5251 = vmatprep.subr.bf16.mxu0 0
    %5252 = vmatpush1.bf16.msra.mxu0 %v3967
    %5253 = vmatprep.subr.bf16.mxu0 0
    %5254 = vmatpush1.bf16.msra.mxu0 %v3968
    %5255 = vmatprep.subr.bf16.mxu0 0
    %5256 = vmatpush1.bf16.msra.mxu0 %v3969
    %5257 = vmatprep.subr.bf16.mxu0 0
    %5258 = vmatpush1.bf16.msra.mxu0 %v3970
    %5259 = vmatprep.subr.bf16.mxu0 0
    %5260 = vmatpush1.bf16.msra.mxu0 %v3971
    %5261 = vmatprep.subr.bf16.mxu0 0
    %5262 = vmatpush1.bf16.msra.mxu0 %v3972
    %5263 = vmatprep.subr.bf16.mxu0 0
    %5264 = vmatpush1.bf16.msra.mxu0 %v3973
    %5265 = vmatprep.subr.bf16.mxu0 0
    %5266 = vmatpush1.bf16.msra.mxu0 %v3974
    %5267 = vmatprep.subr.bf16.mxu0 0
    %5268 = vmatpush1.bf16.msra.mxu0 %v3975
    %5269 = vmatprep.subr.bf16.mxu0 0
    %5270 = vmatpush1.bf16.msra.mxu0 %v3976
    %5271 = vmatprep.mubr.bf16.mxu0 %v112
    %5272 = vmatmul.mubr.bf16.gmra.mrb[0].mxu0 %v111
    %v5273 = vpop.f32.mrb[0].mxu0
    %v5274 = vadd.f32 %v5234, %v5273
    %v5275 = vpop.f32.mrb[0].mxu0
    %v5276 = vpop.f32.mrb[0].mxu0
    %v5277 = vpop.f32.mrb[0].mxu0
    %5278 = vdwg.mxu0
    %5279 = vmatprep.subr.bf16.mxu0 0
    %5280 = vmatpush1.bf16.msra.mxu0 %v3977
    %5281 = vmatprep.subr.bf16.mxu0 0
    %5282 = vmatpush1.bf16.msra.mxu0 %v3978
    %5283 = vmatprep.subr.bf16.mxu0 0
    %5284 = vmatpush1.bf16.msra.mxu0 %v3979
    %5285 = vmatprep.subr.bf16.mxu0 0
    %5286 = vmatpush1.bf16.msra.mxu0 %v3980
    %5287 = vmatprep.subr.bf16.mxu0 0
    %5288 = vmatpush1.bf16.msra.mxu0 %v3981
    %5289 = vmatprep.subr.bf16.mxu0 0
    %5290 = vmatpush1.bf16.msra.mxu0 %v3982
    %5291 = vmatprep.subr.bf16.mxu0 0
    %5292 = vmatpush1.bf16.msra.mxu0 %v3983
    %5293 = vmatprep.subr.bf16.mxu0 0
    %5294 = vmatpush1.bf16.msra.mxu0 %v3984
    %5295 = vmatprep.subr.bf16.mxu0 0
    %5296 = vmatpush1.bf16.msra.mxu0 %v3985
    %5297 = vmatprep.subr.bf16.mxu0 0
    %5298 = vmatpush1.bf16.msra.mxu0 %v3986
    %5299 = vmatprep.subr.bf16.mxu0 0
    %5300 = vmatpush1.bf16.msra.mxu0 %v3987
    %5301 = vmatprep.subr.bf16.mxu0 0
    %5302 = vmatpush1.bf16.msra.mxu0 %v3988
    %5303 = vmatprep.subr.bf16.mxu0 0
    %5304 = vmatpush1.bf16.msra.mxu0 %v3989
    %5305 = vmatprep.subr.bf16.mxu0 0
    %5306 = vmatpush1.bf16.msra.mxu0 %v3990
    %5307 = vmatprep.subr.bf16.mxu0 0
    %5308 = vmatpush1.bf16.msra.mxu0 %v3991
    %5309 = vmatprep.subr.bf16.mxu0 0
    %5310 = vmatpush1.bf16.msra.mxu0 %v3992
    %5311 = vmatprep.mubr.bf16.mxu0 %v114
    %5312 = vmatmul.mubr.bf16.gmra.mrb[0].mxu0 %v113
    %v5313 = vpop.f32.mrb[0].mxu0
    %v5314 = vadd.f32 %v5274, %v5313
    %v5315 = vpop.f32.mrb[0].mxu0
    %v5316 = vpop.f32.mrb[0].mxu0
    %v5317 = vpop.f32.mrb[0].mxu0
    %5318 = vdwg.mxu0
    %5319 = vmatprep.subr.bf16.mxu0 0
    %5320 = vmatpush1.bf16.msra.mxu0 %v3993
    %5321 = vmatprep.subr.bf16.mxu0 0
    %5322 = vmatpush1.bf16.msra.mxu0 %v3994
    %5323 = vmatprep.subr.bf16.mxu0 0
    %5324 = vmatpush1.bf16.msra.mxu0 %v3995
    %5325 = vmatprep.subr.bf16.mxu0 0
    %5326 = vmatpush1.bf16.msra.mxu0 %v3996
    %5327 = vmatprep.subr.bf16.mxu0 0
    %5328 = vmatpush1.bf16.msra.mxu0 %v3997
    %5329 = vmatprep.subr.bf16.mxu0 0
    %5330 = vmatpush1.bf16.msra.mxu0 %v3998
    %5331 = vmatprep.subr.bf16.mxu0 0
    %5332 = vmatpush1.bf16.msra.mxu0 %v3999
    %5333 = vmatprep.subr.bf16.mxu0 0
    %5334 = vmatpush1.bf16.msra.mxu0 %v4000
    %5335 = vmatprep.subr.bf16.mxu0 0
    %5336 = vmatpush1.bf16.msra.mxu0 %v4001
    %5337 = vmatprep.subr.bf16.mxu0 0
    %5338 = vmatpush1.bf16.msra.mxu0 %v4002
    %5339 = vmatprep.subr.bf16.mxu0 0
    %5340 = vmatpush1.bf16.msra.mxu0 %v4003
    %5341 = vmatprep.subr.bf16.mxu0 0
    %5342 = vmatpush1.bf16.msra.mxu0 %v4004
    %5343 = vmatprep.subr.bf16.mxu0 0
    %5344 = vmatpush1.bf16.msra.mxu0 %v4005
    %5345 = vmatprep.subr.bf16.mxu0 0
    %5346 = vmatpush1.bf16.msra.mxu0 %v4006
    %5347 = vmatprep.subr.bf16.mxu0 0
    %5348 = vmatpush1.bf16.msra.mxu0 %v4007
    %5349 = vmatprep.subr.bf16.mxu0 0
    %5350 = vmatpush1.bf16.msra.mxu0 %v4008
    %5351 = vmatprep.mubr.bf16.mxu0 %v116
    %5352 = vmatmul.mubr.bf16.gmra.mrb[0].mxu0 %v115
    %v5353 = vpop.f32.mrb[0].mxu0
    %v5354 = vadd.f32 %v5314, %v5353
    %v5355 = vpop.f32.mrb[0].mxu0
    %v5356 = vpop.f32.mrb[0].mxu0
    %v5357 = vpop.f32.mrb[0].mxu0
    %5358 = vdwg.mxu0
    %5359 = vmatprep.subr.bf16.mxu0 0
    %5360 = vmatpush1.bf16.msra.mxu0 %v4009
    %5361 = vmatprep.subr.bf16.mxu0 0
    %5362 = vmatpush1.bf16.msra.mxu0 %v4010
    %5363 = vmatprep.subr.bf16.mxu0 0
    %5364 = vmatpush1.bf16.msra.mxu0 %v4011
    %5365 = vmatprep.subr.bf16.mxu0 0
    %5366 = vmatpush1.bf16.msra.mxu0 %v4012
    %5367 = vmatprep.subr.bf16.mxu0 0
    %5368 = vmatpush1.bf16.msra.mxu0 %v4013
    %5369 = vmatprep.subr.bf16.mxu0 0
    %5370 = vmatpush1.bf16.msra.mxu0 %v4014
    %5371 = vmatprep.subr.bf16.mxu0 0
    %5372 = vmatpush1.bf16.msra.mxu0 %v4015
    %5373 = vmatprep.subr.bf16.mxu0 0
    %5374 = vmatpush1.bf16.msra.mxu0 %v4016
    %5375 = vmatprep.subr.bf16.mxu0 0
    %5376 = vmatpush1.bf16.msra.mxu0 %v4017
    %5377 = vmatprep.subr.bf16.mxu0 0
    %5378 = vmatpush1.bf16.msra.mxu0 %v4018
    %5379 = vmatprep.subr.bf16.mxu0 0
    %5380 = vmatpush1.bf16.msra.mxu0 %v4019
    %5381 = vmatprep.subr.bf16.mxu0 0
    %5382 = vmatpush1.bf16.msra.mxu0 %v4020
    %5383 = vmatprep.subr.bf16.mxu0 0
    %5384 = vmatpush1.bf16.msra.mxu0 %v4021
    %5385 = vmatprep.subr.bf16.mxu0 0
    %5386 = vmatpush1.bf16.msra.mxu0 %v4022
    %5387 = vmatprep.subr.bf16.mxu0 0
    %5388 = vmatpush1.bf16.msra.mxu0 %v4023
    %5389 = vmatprep.subr.bf16.mxu0 0
    %5390 = vmatpush1.bf16.msra.mxu0 %v4024
    %5391 = vmatprep.mubr.bf16.mxu0 %v118
    %5392 = vmatmul.mubr.bf16.gmra.mrb[0].mxu0 %v117
    %v5393 = vpop.f32.mrb[0].mxu0
    %v5394 = vadd.f32 %v5354, %v5393
    %v5395 = vpop.f32.mrb[0].mxu0
    %v5396 = vpop.f32.mrb[0].mxu0
    %v5397 = vpop.f32.mrb[0].mxu0
    %5398 = vdwg.mxu0
    %5399 = vmatprep.subr.bf16.mxu0 0
    %5400 = vmatpush1.bf16.msra.mxu0 %v4025
    %5401 = vmatprep.subr.bf16.mxu0 0
    %5402 = vmatpush1.bf16.msra.mxu0 %v4026
    %5403 = vmatprep.subr.bf16.mxu0 0
    %5404 = vmatpush1.bf16.msra.mxu0 %v4027
    %5405 = vmatprep.subr.bf16.mxu0 0
    %5406 = vmatpush1.bf16.msra.mxu0 %v4028
    %5407 = vmatprep.subr.bf16.mxu0 0
    %5408 = vmatpush1.bf16.msra.mxu0 %v4029
    %5409 = vmatprep.subr.bf16.mxu0 0
    %5410 = vmatpush1.bf16.msra.mxu0 %v4030
    %5411 = vmatprep.subr.bf16.mxu0 0
    %5412 = vmatpush1.bf16.msra.mxu0 %v4031
    %5413 = vmatprep.subr.bf16.mxu0 0
    %5414 = vmatpush1.bf16.msra.mxu0 %v4032
    %5415 = vmatprep.subr.bf16.mxu0 0
    %5416 = vmatpush1.bf16.msra.mxu0 %v4033
    %5417 = vmatprep.subr.bf16.mxu0 0
    %5418 = vmatpush1.bf16.msra.mxu0 %v4034
    %5419 = vmatprep.subr.bf16.mxu0 0
    %5420 = vmatpush1.bf16.msra.mxu0 %v4035
    %5421 = vmatprep.subr.bf16.mxu0 0
    %5422 = vmatpush1.bf16.msra.mxu0 %v4036
    %5423 = vmatprep.subr.bf16.mxu0 0
    %5424 = vmatpush1.bf16.msra.mxu0 %v4037
    %5425 = vmatprep.subr.bf16.mxu0 0
    %5426 = vmatpush1.bf16.msra.mxu0 %v4038
    %5427 = vmatprep.subr.bf16.mxu0 0
    %5428 = vmatpush1.bf16.msra.mxu0 %v4039
    %5429 = vmatprep.subr.bf16.mxu0 0
    %5430 = vmatpush1.bf16.msra.mxu0 %v4040
    %5431 = vmatprep.mubr.bf16.mxu0 %v120
    %5432 = vmatmul.mubr.bf16.gmra.mrb[0].mxu0 %v119
    %v5433 = vpop.f32.mrb[0].mxu0
    %v5434 = vadd.f32 %v5394, %v5433
    %v5435 = vpop.f32.mrb[0].mxu0
    %v5436 = vpop.f32.mrb[0].mxu0
    %v5437 = vpop.f32.mrb[0].mxu0
    %5438 = vdwg.mxu0
    %5439 = vmatprep.subr.bf16.mxu0 0
    %5440 = vmatpush1.bf16.msra.mxu0 %v4041
    %5441 = vmatprep.subr.bf16.mxu0 0
    %5442 = vmatpush1.bf16.msra.mxu0 %v4042
    %5443 = vmatprep.subr.bf16.mxu0 0
    %5444 = vmatpush1.bf16.msra.mxu0 %v4043
    %5445 = vmatprep.subr.bf16.mxu0 0
    %5446 = vmatpush1.bf16.msra.mxu0 %v4044
    %5447 = vmatprep.subr.bf16.mxu0 0
    %5448 = vmatpush1.bf16.msra.mxu0 %v4045
    %5449 = vmatprep.subr.bf16.mxu0 0
    %5450 = vmatpush1.bf16.msra.mxu0 %v4046
    %5451 = vmatprep.subr.bf16.mxu0 0
    %5452 = vmatpush1.bf16.msra.mxu0 %v4047
    %5453 = vmatprep.subr.bf16.mxu0 0
    %5454 = vmatpush1.bf16.msra.mxu0 %v4048
    %5455 = vmatprep.subr.bf16.mxu0 0
    %5456 = vmatpush1.bf16.msra.mxu0 %v4049
    %5457 = vmatprep.subr.bf16.mxu0 0
    %5458 = vmatpush1.bf16.msra.mxu0 %v4050
    %5459 = vmatprep.subr.bf16.mxu0 0
    %5460 = vmatpush1.bf16.msra.mxu0 %v4051
    %5461 = vmatprep.subr.bf16.mxu0 0
    %5462 = vmatpush1.bf16.msra.mxu0 %v4052
    %5463 = vmatprep.subr.bf16.mxu0 0
    %5464 = vmatpush1.bf16.msra.mxu0 %v4053
    %5465 = vmatprep.subr.bf16.mxu0 0
    %5466 = vmatpush1.bf16.msra.mxu0 %v4054
    %5467 = vmatprep.subr.bf16.mxu0 0
    %5468 = vmatpush1.bf16.msra.mxu0 %v4055
    %5469 = vmatprep.subr.bf16.mxu0 0
    %5470 = vmatpush1.bf16.msra.mxu0 %v4056
    %5471 = vmatprep.mubr.bf16.mxu0 %v122
    %5472 = vmatmul.mubr.bf16.gmra.mrb[0].mxu0 %v121
    %v5473 = vpop.f32.mrb[0].mxu0
    %v5474 = vadd.f32 %v5434, %v5473
    %v5475 = vpop.f32.mrb[0].mxu0
    %v5476 = vpop.f32.mrb[0].mxu0
    %v5477 = vpop.f32.mrb[0].mxu0
    %5478 = vdwg.mxu0
    %5479 = vmatprep.subr.bf16.mxu0 0
    %5480 = vmatpush1.bf16.msra.mxu0 %v4057
    %5481 = vmatprep.subr.bf16.mxu0 0
    %5482 = vmatpush1.bf16.msra.mxu0 %v4058
    %5483 = vmatprep.subr.bf16.mxu0 0
    %5484 = vmatpush1.bf16.msra.mxu0 %v4059
    %5485 = vmatprep.subr.bf16.mxu0 0
    %5486 = vmatpush1.bf16.msra.mxu0 %v4060
    %5487 = vmatprep.subr.bf16.mxu0 0
    %5488 = vmatpush1.bf16.msra.mxu0 %v4061
    %5489 = vmatprep.subr.bf16.mxu0 0
    %5490 = vmatpush1.bf16.msra.mxu0 %v4062
    %5491 = vmatprep.subr.bf16.mxu0 0
    %5492 = vmatpush1.bf16.msra.mxu0 %v4063
    %5493 = vmatprep.subr.bf16.mxu0 0
    %5494 = vmatpush1.bf16.msra.mxu0 %v4064
    %5495 = vmatprep.subr.bf16.mxu0 0
    %5496 = vmatpush1.bf16.msra.mxu0 %v4065
    %5497 = vmatprep.subr.bf16.mxu0 0
    %5498 = vmatpush1.bf16.msra.mxu0 %v4066
    %5499 = vmatprep.subr.bf16.mxu0 0
    %5500 = vmatpush1.bf16.msra.mxu0 %v4067
    %5501 = vmatprep.subr.bf16.mxu0 0
    %5502 = vmatpush1.bf16.msra.mxu0 %v4068
    %5503 = vmatprep.subr.bf16.mxu0 0
    %5504 = vmatpush1.bf16.msra.mxu0 %v4069
    %5505 = vmatprep.subr.bf16.mxu0 0
    %5506 = vmatpush1.bf16.msra.mxu0 %v4070
    %5507 = vmatprep.subr.bf16.mxu0 0
    %5508 = vmatpush1.bf16.msra.mxu0 %v4071
    %5509 = vmatprep.subr.bf16.mxu0 0
    %5510 = vmatpush1.bf16.msra.mxu0 %v4072
    %5511 = vmatprep.mubr.bf16.mxu0 %v124
    %5512 = vmatmul.mubr.bf16.gmra.mrb[0].mxu0 %v123
    %v5513 = vpop.f32.mrb[0].mxu0
    %v5514 = vadd.f32 %v5474, %v5513
    %v5515 = vpop.f32.mrb[0].mxu0
    %v5516 = vpop.f32.mrb[0].mxu0
    %v5517 = vpop.f32.mrb[0].mxu0
    %5518 = vdwg.mxu0
    %5519 = vmatprep.subr.bf16.mxu0 0
    %5520 = vmatpush1.bf16.msra.mxu0 %v4073
    %5521 = vmatprep.subr.bf16.mxu0 0
    %5522 = vmatpush1.bf16.msra.mxu0 %v4074
    %5523 = vmatprep.subr.bf16.mxu0 0
    %5524 = vmatpush1.bf16.msra.mxu0 %v4075
    %5525 = vmatprep.subr.bf16.mxu0 0
    %5526 = vmatpush1.bf16.msra.mxu0 %v4076
    %5527 = vmatprep.subr.bf16.mxu0 0
    %5528 = vmatpush1.bf16.msra.mxu0 %v4077
    %5529 = vmatprep.subr.bf16.mxu0 0
    %5530 = vmatpush1.bf16.msra.mxu0 %v4078
    %5531 = vmatprep.subr.bf16.mxu0 0
    %5532 = vmatpush1.bf16.msra.mxu0 %v4079
    %5533 = vmatprep.subr.bf16.mxu0 0
    %5534 = vmatpush1.bf16.msra.mxu0 %v4080
    %5535 = vmatprep.subr.bf16.mxu0 0
    %5536 = vmatpush1.bf16.msra.mxu0 %v4081
    %5537 = vmatprep.subr.bf16.mxu0 0
    %5538 = vmatpush1.bf16.msra.mxu0 %v4082
    %5539 = vmatprep.subr.bf16.mxu0 0
    %5540 = vmatpush1.bf16.msra.mxu0 %v4083
    %5541 = vmatprep.subr.bf16.mxu0 0
    %5542 = vmatpush1.bf16.msra.mxu0 %v4084
    %5543 = vmatprep.subr.bf16.mxu0 0
    %5544 = vmatpush1.bf16.msra.mxu0 %v4085
    %5545 = vmatprep.subr.bf16.mxu0 0
    %5546 = vmatpush1.bf16.msra.mxu0 %v4086
    %5547 = vmatprep.subr.bf16.mxu0 0
    %5548 = vmatpush1.bf16.msra.mxu0 %v4087
    %5549 = vmatprep.subr.bf16.mxu0 0
    %5550 = vmatpush1.bf16.msra.mxu0 %v4088
    %5551 = vmatprep.mubr.bf16.mxu0 %v126
    %5552 = vmatmul.mubr.bf16.gmra.mrb[0].mxu0 %v125
    %v5553 = vpop.f32.mrb[0].mxu0
    %v5554 = vadd.f32 %v5514, %v5553
    %v5555 = vpop.f32.mrb[0].mxu0
    %v5556 = vpop.f32.mrb[0].mxu0
    %v5557 = vpop.f32.mrb[0].mxu0
    %5558 = vdwg.mxu0
    %5559 = vmatprep.subr.bf16.mxu0 0
    %5560 = vmatpush1.bf16.msra.mxu0 %v4089
    %5561 = vmatprep.subr.bf16.mxu0 0
    %5562 = vmatpush1.bf16.msra.mxu0 %v4090
    %5563 = vmatprep.subr.bf16.mxu0 0
    %5564 = vmatpush1.bf16.msra.mxu0 %v4091
    %5565 = vmatprep.subr.bf16.mxu0 0
    %5566 = vmatpush1.bf16.msra.mxu0 %v4092
    %5567 = vmatprep.subr.bf16.mxu0 0
    %5568 = vmatpush1.bf16.msra.mxu0 %v4093
    %5569 = vmatprep.subr.bf16.mxu0 0
    %5570 = vmatpush1.bf16.msra.mxu0 %v4094
    %5571 = vmatprep.subr.bf16.mxu0 0
    %5572 = vmatpush1.bf16.msra.mxu0 %v4095
    %5573 = vmatprep.subr.bf16.mxu0 0
    %5574 = vmatpush1.bf16.msra.mxu0 %v4096
    %5575 = vmatprep.subr.bf16.mxu0 0
    %5576 = vmatpush1.bf16.msra.mxu0 %v4097
    %5577 = vmatprep.subr.bf16.mxu0 0
    %5578 = vmatpush1.bf16.msra.mxu0 %v4098
    %5579 = vmatprep.subr.bf16.mxu0 0
    %5580 = vmatpush1.bf16.msra.mxu0 %v4099
    %5581 = vmatprep.subr.bf16.mxu0 0
    %5582 = vmatpush1.bf16.msra.mxu0 %v4100
    %5583 = vmatprep.subr.bf16.mxu0 0
    %5584 = vmatpush1.bf16.msra.mxu0 %v4101
    %5585 = vmatprep.subr.bf16.mxu0 0
    %5586 = vmatpush1.bf16.msra.mxu0 %v4102
    %5587 = vmatprep.subr.bf16.mxu0 0
    %5588 = vmatpush1.bf16.msra.mxu0 %v4103
    %5589 = vmatprep.subr.bf16.mxu0 0
    %5590 = vmatpush1.bf16.msra.mxu0 %v4104
    %5591 = vmatprep.mubr.bf16.mxu0 %v128
    %5592 = vmatmul.mubr.bf16.gmra.mrb[0].mxu0 %v127
    %v5593 = vpop.f32.mrb[0].mxu0
    %v5594 = vadd.f32 %v5554, %v5593
    %v5595 = vpop.f32.mrb[0].mxu0
    %v5596 = vpop.f32.mrb[0].mxu0
    %v5597 = vpop.f32.mrb[0].mxu0
    %5598 = vdwg.mxu0
    %5599 = vmatprep.subr.bf16.mxu0 0
    %5600 = vmatpush1.bf16.msra.mxu0 %v4105
    %5601 = vmatprep.subr.bf16.mxu0 0
    %5602 = vmatpush1.bf16.msra.mxu0 %v4106
    %5603 = vmatprep.subr.bf16.mxu0 0
    %5604 = vmatpush1.bf16.msra.mxu0 %v4107
    %5605 = vmatprep.subr.bf16.mxu0 0
    %5606 = vmatpush1.bf16.msra.mxu0 %v4108
    %5607 = vmatprep.subr.bf16.mxu0 0
    %5608 = vmatpush1.bf16.msra.mxu0 %v4109
    %5609 = vmatprep.subr.bf16.mxu0 0
    %5610 = vmatpush1.bf16.msra.mxu0 %v4110
    %5611 = vmatprep.subr.bf16.mxu0 0
    %5612 = vmatpush1.bf16.msra.mxu0 %v4111
    %5613 = vmatprep.subr.bf16.mxu0 0
    %5614 = vmatpush1.bf16.msra.mxu0 %v4112
    %5615 = vmatprep.subr.bf16.mxu0 0
    %5616 = vmatpush1.bf16.msra.mxu0 %v4113
    %5617 = vmatprep.subr.bf16.mxu0 0
    %5618 = vmatpush1.bf16.msra.mxu0 %v4114
    %5619 = vmatprep.subr.bf16.mxu0 0
    %5620 = vmatpush1.bf16.msra.mxu0 %v4115
    %5621 = vmatprep.subr.bf16.mxu0 0
    %5622 = vmatpush1.bf16.msra.mxu0 %v4116
    %5623 = vmatprep.subr.bf16.mxu0 0
    %5624 = vmatpush1.bf16.msra.mxu0 %v4117
    %5625 = vmatprep.subr.bf16.mxu0 0
    %5626 = vmatpush1.bf16.msra.mxu0 %v4118
    %5627 = vmatprep.subr.bf16.mxu0 0
    %5628 = vmatpush1.bf16.msra.mxu0 %v4119
    %5629 = vmatprep.subr.bf16.mxu0 0
    %5630 = vmatpush1.bf16.msra.mxu0 %v4120
    %5631 = vmatprep.mubr.bf16.mxu0 %v130
    %5632 = vmatmul.mubr.bf16.gmra.mrb[0].mxu0 %v129
    %v5633 = vpop.f32.mrb[0].mxu0
    %v5634 = vadd.f32 %v5594, %v5633
    %v5635 = vpop.f32.mrb[0].mxu0
    %v5636 = vpop.f32.mrb[0].mxu0
    %v5637 = vpop.f32.mrb[0].mxu0
    %5638 = vdwg.mxu0
    %5639 = vmatprep.subr.bf16.mxu0 0
    %5640 = vmatpush1.bf16.msra.mxu0 %v4121
    %5641 = vmatprep.subr.bf16.mxu0 0
    %5642 = vmatpush1.bf16.msra.mxu0 %v4122
    %5643 = vmatprep.subr.bf16.mxu0 0
    %5644 = vmatpush1.bf16.msra.mxu0 %v4123
    %5645 = vmatprep.subr.bf16.mxu0 0
    %5646 = vmatpush1.bf16.msra.mxu0 %v4124
    %5647 = vmatprep.subr.bf16.mxu0 0
    %5648 = vmatpush1.bf16.msra.mxu0 %v4125
    %5649 = vmatprep.subr.bf16.mxu0 0
    %5650 = vmatpush1.bf16.msra.mxu0 %v4126
    %5651 = vmatprep.subr.bf16.mxu0 0
    %5652 = vmatpush1.bf16.msra.mxu0 %v4127
    %5653 = vmatprep.subr.bf16.mxu0 0
    %5654 = vmatpush1.bf16.msra.mxu0 %v4128
    %5655 = vmatprep.subr.bf16.mxu0 0
    %5656 = vmatpush1.bf16.msra.mxu0 %v4129
    %5657 = vmatprep.subr.bf16.mxu0 0
    %5658 = vmatpush1.bf16.msra.mxu0 %v4130
    %5659 = vmatprep.subr.bf16.mxu0 0
    %5660 = vmatpush1.bf16.msra.mxu0 %v4131
    %5661 = vmatprep.subr.bf16.mxu0 0
    %5662 = vmatpush1.bf16.msra.mxu0 %v4132
    %5663 = vmatprep.subr.bf16.mxu0 0
    %5664 = vmatpush1.bf16.msra.mxu0 %v4133
    %5665 = vmatprep.subr.bf16.mxu0 0
    %5666 = vmatpush1.bf16.msra.mxu0 %v4134
    %5667 = vmatprep.subr.bf16.mxu0 0
    %5668 = vmatpush1.bf16.msra.mxu0 %v4135
    %5669 = vmatprep.subr.bf16.mxu0 0
    %5670 = vmatpush1.bf16.msra.mxu0 %v4136
    %5671 = vmatprep.mubr.bf16.mxu0 %v132
    %5672 = vmatmul.mubr.bf16.gmra.mrb[0].mxu0 %v131
    %v5673 = vpop.f32.mrb[0].mxu0
    %v5674 = vadd.f32 %v5634, %v5673
    %v5675 = vpop.f32.mrb[0].mxu0
    %v5676 = vpop.f32.mrb[0].mxu0
    %v5677 = vpop.f32.mrb[0].mxu0
    %5678 = vdwg.mxu0
    %5679 = vmatprep.subr.bf16.mxu0 0
    %5680 = vmatpush1.bf16.msra.mxu0 %v4137
    %5681 = vmatprep.subr.bf16.mxu0 0
    %5682 = vmatpush1.bf16.msra.mxu0 %v4138
    %5683 = vmatprep.subr.bf16.mxu0 0
    %5684 = vmatpush1.bf16.msra.mxu0 %v4139
    %5685 = vmatprep.subr.bf16.mxu0 0
    %5686 = vmatpush1.bf16.msra.mxu0 %v4140
    %5687 = vmatprep.subr.bf16.mxu0 0
    %5688 = vmatpush1.bf16.msra.mxu0 %v4141
    %5689 = vmatprep.subr.bf16.mxu0 0
    %5690 = vmatpush1.bf16.msra.mxu0 %v4142
    %5691 = vmatprep.subr.bf16.mxu0 0
    %5692 = vmatpush1.bf16.msra.mxu0 %v4143
    %5693 = vmatprep.subr.bf16.mxu0 0
    %5694 = vmatpush1.bf16.msra.mxu0 %v4144
    %5695 = vmatprep.subr.bf16.mxu0 0
    %5696 = vmatpush1.bf16.msra.mxu0 %v4145
    %5697 = vmatprep.subr.bf16.mxu0 0
    %5698 = vmatpush1.bf16.msra.mxu0 %v4146
    %5699 = vmatprep.subr.bf16.mxu0 0
    %5700 = vmatpush1.bf16.msra.mxu0 %v4147
    %5701 = vmatprep.subr.bf16.mxu0 0
    %5702 = vmatpush1.bf16.msra.mxu0 %v4148
    %5703 = vmatprep.subr.bf16.mxu0 0
    %5704 = vmatpush1.bf16.msra.mxu0 %v4149
    %5705 = vmatprep.subr.bf16.mxu0 0
    %5706 = vmatpush1.bf16.msra.mxu0 %v4150
    %5707 = vmatprep.subr.bf16.mxu0 0
    %5708 = vmatpush1.bf16.msra.mxu0 %v4151
    %5709 = vmatprep.subr.bf16.mxu0 0
    %5710 = vmatpush1.bf16.msra.mxu0 %v4152
    %5711 = vmatprep.mubr.bf16.mxu0 %v134
    %5712 = vmatmul.mubr.bf16.gmra.mrb[0].mxu0 %v133
    %v5713 = vpop.f32.mrb[0].mxu0
    %v5714 = vadd.f32 %v5674, %v5713
    %v5715 = vpop.f32.mrb[0].mxu0
    %v5716 = vpop.f32.mrb[0].mxu0
    %v5717 = vpop.f32.mrb[0].mxu0
    %5718 = vdwg.mxu0
    %5719 = vmatprep.subr.bf16.mxu0 0
    %5720 = vmatpush1.bf16.msra.mxu0 %v4153
    %5721 = vmatprep.subr.bf16.mxu0 0
    %5722 = vmatpush1.bf16.msra.mxu0 %v4154
    %5723 = vmatprep.subr.bf16.mxu0 0
    %5724 = vmatpush1.bf16.msra.mxu0 %v4155
    %5725 = vmatprep.subr.bf16.mxu0 0
    %5726 = vmatpush1.bf16.msra.mxu0 %v4156
    %5727 = vmatprep.subr.bf16.mxu0 0
    %5728 = vmatpush1.bf16.msra.mxu0 %v4157
    %5729 = vmatprep.subr.bf16.mxu0 0
    %5730 = vmatpush1.bf16.msra.mxu0 %v4158
    %5731 = vmatprep.subr.bf16.mxu0 0
    %5732 = vmatpush1.bf16.msra.mxu0 %v4159
    %5733 = vmatprep.subr.bf16.mxu0 0
    %5734 = vmatpush1.bf16.msra.mxu0 %v4160
    %5735 = vmatprep.subr.bf16.mxu0 0
    %5736 = vmatpush1.bf16.msra.mxu0 %v4161
    %5737 = vmatprep.subr.bf16.mxu0 0
    %5738 = vmatpush1.bf16.msra.mxu0 %v4162
    %5739 = vmatprep.subr.bf16.mxu0 0
    %5740 = vmatpush1.bf16.msra.mxu0 %v4163
    %5741 = vmatprep.subr.bf16.mxu0 0
    %5742 = vmatpush1.bf16.msra.mxu0 %v4164
    %5743 = vmatprep.subr.bf16.mxu0 0
    %5744 = vmatpush1.bf16.msra.mxu0 %v4165
    %5745 = vmatprep.subr.bf16.mxu0 0
    %5746 = vmatpush1.bf16.msra.mxu0 %v4166
    %5747 = vmatprep.subr.bf16.mxu0 0
    %5748 = vmatpush1.bf16.msra.mxu0 %v4167
    %5749 = vmatprep.subr.bf16.mxu0 0
    %5750 = vmatpush1.bf16.msra.mxu0 %v4168
    %5751 = vmatprep.mubr.bf16.mxu0 %v136
    %5752 = vmatmul.mubr.bf16.gmra.mrb[0].mxu0 %v135
    %v5753 = vpop.f32.mrb[0].mxu0
    %v5754 = vadd.f32 %v5714, %v5753
    %v5755 = vpop.f32.mrb[0].mxu0
    %v5756 = vpop.f32.mrb[0].mxu0
    %v5757 = vpop.f32.mrb[0].mxu0
    %5758 = vdwg.mxu0
    %5759 = vmatprep.subr.bf16.mxu0 0
    %5760 = vmatpush1.bf16.msra.mxu0 %v4169
    %5761 = vmatprep.subr.bf16.mxu0 0
    %5762 = vmatpush1.bf16.msra.mxu0 %v4170
    %5763 = vmatprep.subr.bf16.mxu0 0
    %5764 = vmatpush1.bf16.msra.mxu0 %v4171
    %5765 = vmatprep.subr.bf16.mxu0 0
    %5766 = vmatpush1.bf16.msra.mxu0 %v4172
    %5767 = vmatprep.subr.bf16.mxu0 0
    %5768 = vmatpush1.bf16.msra.mxu0 %v4173
    %5769 = vmatprep.subr.bf16.mxu0 0
    %5770 = vmatpush1.bf16.msra.mxu0 %v4174
    %5771 = vmatprep.subr.bf16.mxu0 0
    %5772 = vmatpush1.bf16.msra.mxu0 %v4175
    %5773 = vmatprep.subr.bf16.mxu0 0
    %5774 = vmatpush1.bf16.msra.mxu0 %v4176
    %5775 = vmatprep.subr.bf16.mxu0 0
    %5776 = vmatpush1.bf16.msra.mxu0 %v4177
    %5777 = vmatprep.subr.bf16.mxu0 0
    %5778 = vmatpush1.bf16.msra.mxu0 %v4178
    %5779 = vmatprep.subr.bf16.mxu0 0
    %5780 = vmatpush1.bf16.msra.mxu0 %v4179
    %5781 = vmatprep.subr.bf16.mxu0 0
    %5782 = vmatpush1.bf16.msra.mxu0 %v4180
    %5783 = vmatprep.subr.bf16.mxu0 0
    %5784 = vmatpush1.bf16.msra.mxu0 %v4181
    %5785 = vmatprep.subr.bf16.mxu0 0
    %5786 = vmatpush1.bf16.msra.mxu0 %v4182
    %5787 = vmatprep.subr.bf16.mxu0 0
    %5788 = vmatpush1.bf16.msra.mxu0 %v4183
    %5789 = vmatprep.subr.bf16.mxu0 0
    %5790 = vmatpush1.bf16.msra.mxu0 %v4184
    %5791 = vmatprep.mubr.bf16.mxu0 %v138
    %5792 = vmatmul.mubr.bf16.gmra.mrb[0].mxu0 %v137
    %v5793 = vpop.f32.mrb[0].mxu0
    %v5794 = vadd.f32 %v5754, %v5793
    %v5795 = vpop.f32.mrb[0].mxu0
    %v5796 = vpop.f32.mrb[0].mxu0
    %v5797 = vpop.f32.mrb[0].mxu0
    %5798 = vdwg.mxu0
    %5799 = vmatprep.subr.bf16.mxu0 0
    %5800 = vmatpush1.bf16.msra.mxu0 %v4185
    %5801 = vmatprep.subr.bf16.mxu0 0
    %5802 = vmatpush1.bf16.msra.mxu0 %v4186
    %5803 = vmatprep.subr.bf16.mxu0 0
    %5804 = vmatpush1.bf16.msra.mxu0 %v4187
    %5805 = vmatprep.subr.bf16.mxu0 0
    %5806 = vmatpush1.bf16.msra.mxu0 %v4188
    %5807 = vmatprep.subr.bf16.mxu0 0
    %5808 = vmatpush1.bf16.msra.mxu0 %v4189
    %5809 = vmatprep.subr.bf16.mxu0 0
    %5810 = vmatpush1.bf16.msra.mxu0 %v4190
    %5811 = vmatprep.subr.bf16.mxu0 0
    %5812 = vmatpush1.bf16.msra.mxu0 %v4191
    %5813 = vmatprep.subr.bf16.mxu0 0
    %5814 = vmatpush1.bf16.msra.mxu0 %v4192
    %5815 = vmatprep.subr.bf16.mxu0 0
    %5816 = vmatpush1.bf16.msra.mxu0 %v4193
    %5817 = vmatprep.subr.bf16.mxu0 0
    %5818 = vmatpush1.bf16.msra.mxu0 %v4194
    %5819 = vmatprep.subr.bf16.mxu0 0
    %5820 = vmatpush1.bf16.msra.mxu0 %v4195
    %5821 = vmatprep.subr.bf16.mxu0 0
    %5822 = vmatpush1.bf16.msra.mxu0 %v4196
    %5823 = vmatprep.subr.bf16.mxu0 0
    %5824 = vmatpush1.bf16.msra.mxu0 %v4197
    %5825 = vmatprep.subr.bf16.mxu0 0
    %5826 = vmatpush1.bf16.msra.mxu0 %v4198
    %5827 = vmatprep.subr.bf16.mxu0 0
    %5828 = vmatpush1.bf16.msra.mxu0 %v4199
    %5829 = vmatprep.subr.bf16.mxu0 0
    %5830 = vmatpush1.bf16.msra.mxu0 %v4200
    %5831 = vmatprep.mubr.bf16.mxu0 %v140
    %5832 = vmatmul.mubr.bf16.gmra.mrb[0].mxu0 %v139
    %v5833 = vpop.f32.mrb[0].mxu0
    %v5834 = vadd.f32 %v5794, %v5833
    %v5835 = vpop.f32.mrb[0].mxu0
    %v5836 = vpop.f32.mrb[0].mxu0
    %v5837 = vpop.f32.mrb[0].mxu0
    %5838 = vdwg.mxu0
    %5839 = vmatprep.subr.bf16.mxu0 0
    %5840 = vmatpush1.bf16.msra.mxu0 %v4201
    %5841 = vmatprep.subr.bf16.mxu0 0
    %5842 = vmatpush1.bf16.msra.mxu0 %v4202
    %5843 = vmatprep.subr.bf16.mxu0 0
    %5844 = vmatpush1.bf16.msra.mxu0 %v4203
    %5845 = vmatprep.subr.bf16.mxu0 0
    %5846 = vmatpush1.bf16.msra.mxu0 %v4204
    %5847 = vmatprep.subr.bf16.mxu0 0
    %5848 = vmatpush1.bf16.msra.mxu0 %v4205
    %5849 = vmatprep.subr.bf16.mxu0 0
    %5850 = vmatpush1.bf16.msra.mxu0 %v4206
    %5851 = vmatprep.subr.bf16.mxu0 0
    %5852 = vmatpush1.bf16.msra.mxu0 %v4207
    %5853 = vmatprep.subr.bf16.mxu0 0
    %5854 = vmatpush1.bf16.msra.mxu0 %v4208
    %5855 = vmatprep.subr.bf16.mxu0 0
    %5856 = vmatpush1.bf16.msra.mxu0 %v4209
    %5857 = vmatprep.subr.bf16.mxu0 0
    %5858 = vmatpush1.bf16.msra.mxu0 %v4210
    %5859 = vmatprep.subr.bf16.mxu0 0
    %5860 = vmatpush1.bf16.msra.mxu0 %v4211
    %5861 = vmatprep.subr.bf16.mxu0 0
    %5862 = vmatpush1.bf16.msra.mxu0 %v4212
    %5863 = vmatprep.subr.bf16.mxu0 0
    %5864 = vmatpush1.bf16.msra.mxu0 %v4213
    %5865 = vmatprep.subr.bf16.mxu0 0
    %5866 = vmatpush1.bf16.msra.mxu0 %v4214
    %5867 = vmatprep.subr.bf16.mxu0 0
    %5868 = vmatpush1.bf16.msra.mxu0 %v4215
    %5869 = vmatprep.subr.bf16.mxu0 0
    %5870 = vmatpush1.bf16.msra.mxu0 %v4216
    %5871 = vmatprep.mubr.bf16.mxu0 %v142
    %5872 = vmatmul.mubr.bf16.gmra.mrb[0].mxu0 %v141
    %v5873 = vpop.f32.mrb[0].mxu0
    %v5874 = vadd.f32 %v5834, %v5873
    %v5875 = vpop.f32.mrb[0].mxu0
    %v5876 = vpop.f32.mrb[0].mxu0
    %v5877 = vpop.f32.mrb[0].mxu0
    %5878 = vdwg.mxu0
    %5879 = vmatprep.subr.bf16.mxu0 0
    %5880 = vmatpush1.bf16.msra.mxu0 %v4217
    %5881 = vmatprep.subr.bf16.mxu0 0
    %5882 = vmatpush1.bf16.msra.mxu0 %v4218
    %5883 = vmatprep.subr.bf16.mxu0 0
    %5884 = vmatpush1.bf16.msra.mxu0 %v4219
    %5885 = vmatprep.subr.bf16.mxu0 0
    %5886 = vmatpush1.bf16.msra.mxu0 %v4220
    %5887 = vmatprep.subr.bf16.mxu0 0
    %5888 = vmatpush1.bf16.msra.mxu0 %v4221
    %5889 = vmatprep.subr.bf16.mxu0 0
    %5890 = vmatpush1.bf16.msra.mxu0 %v4222
    %5891 = vmatprep.subr.bf16.mxu0 0
    %5892 = vmatpush1.bf16.msra.mxu0 %v4223
    %5893 = vmatprep.subr.bf16.mxu0 0
    %5894 = vmatpush1.bf16.msra.mxu0 %v4224
    %5895 = vmatprep.subr.bf16.mxu0 0
    %5896 = vmatpush1.bf16.msra.mxu0 %v4225
    %5897 = vmatprep.subr.bf16.mxu0 0
    %5898 = vmatpush1.bf16.msra.mxu0 %v4226
    %5899 = vmatprep.subr.bf16.mxu0 0
    %5900 = vmatpush1.bf16.msra.mxu0 %v4227
    %5901 = vmatprep.subr.bf16.mxu0 0
    %5902 = vmatpush1.bf16.msra.mxu0 %v4228
    %5903 = vmatprep.subr.bf16.mxu0 0
    %5904 = vmatpush1.bf16.msra.mxu0 %v4229
    %5905 = vmatprep.subr.bf16.mxu0 0
    %5906 = vmatpush1.bf16.msra.mxu0 %v4230
    %5907 = vmatprep.subr.bf16.mxu0 0
    %5908 = vmatpush1.bf16.msra.mxu0 %v4231
    %5909 = vmatprep.subr.bf16.mxu0 0
    %5910 = vmatpush1.bf16.msra.mxu0 %v4232
    %5911 = vmatprep.mubr.bf16.mxu0 %v144
    %5912 = vmatmul.mubr.bf16.gmra.mrb[0].mxu0 %v143
    %v5913 = vpop.f32.mrb[0].mxu0
    %v5914 = vadd.f32 %v5874, %v5913
    %v5915 = vpop.f32.mrb[0].mxu0
    %v5916 = vpop.f32.mrb[0].mxu0
    %v5917 = vpop.f32.mrb[0].mxu0
    %5918 = vdwg.mxu0
    %5919 = vmatprep.subr.bf16.mxu0 0
    %5920 = vmatpush1.bf16.msra.mxu0 %v4233
    %5921 = vmatprep.subr.bf16.mxu0 0
    %5922 = vmatpush1.bf16.msra.mxu0 %v4234
    %5923 = vmatprep.subr.bf16.mxu0 0
    %5924 = vmatpush1.bf16.msra.mxu0 %v4235
    %5925 = vmatprep.subr.bf16.mxu0 0
    %5926 = vmatpush1.bf16.msra.mxu0 %v4236
    %5927 = vmatprep.subr.bf16.mxu0 0
    %5928 = vmatpush1.bf16.msra.mxu0 %v4237
    %5929 = vmatprep.subr.bf16.mxu0 0
    %5930 = vmatpush1.bf16.msra.mxu0 %v4238
    %5931 = vmatprep.subr.bf16.mxu0 0
    %5932 = vmatpush1.bf16.msra.mxu0 %v4239
    %5933 = vmatprep.subr.bf16.mxu0 0
    %5934 = vmatpush1.bf16.msra.mxu0 %v4240
    %5935 = vmatprep.subr.bf16.mxu0 0
    %5936 = vmatpush1.bf16.msra.mxu0 %v4241
    %5937 = vmatprep.subr.bf16.mxu0 0
    %5938 = vmatpush1.bf16.msra.mxu0 %v4242
    %5939 = vmatprep.subr.bf16.mxu0 0
    %5940 = vmatpush1.bf16.msra.mxu0 %v4243
    %5941 = vmatprep.subr.bf16.mxu0 0
    %5942 = vmatpush1.bf16.msra.mxu0 %v4244
    %5943 = vmatprep.subr.bf16.mxu0 0
    %5944 = vmatpush1.bf16.msra.mxu0 %v4245
    %5945 = vmatprep.subr.bf16.mxu0 0
    %5946 = vmatpush1.bf16.msra.mxu0 %v4246
    %5947 = vmatprep.subr.bf16.mxu0 0
    %5948 = vmatpush1.bf16.msra.mxu0 %v4247
    %5949 = vmatprep.subr.bf16.mxu0 0
    %5950 = vmatpush1.bf16.msra.mxu0 %v4248
    %5951 = vmatprep.mubr.bf16.mxu0 %v146
    %5952 = vmatmul.mubr.bf16.gmra.mrb[0].mxu0 %v145
    %v5953 = vpop.f32.mrb[0].mxu0
    %v5954 = vadd.f32 %v5914, %v5953
    %v5955 = vpop.f32.mrb[0].mxu0
    %v5956 = vpop.f32.mrb[0].mxu0
    %v5957 = vpop.f32.mrb[0].mxu0
    %5958 = vdwg.mxu0
    %5959 = vmatprep.subr.bf16.mxu0 0
    %5960 = vmatpush1.bf16.msra.mxu0 %v4249
    %5961 = vmatprep.subr.bf16.mxu0 0
    %5962 = vmatpush1.bf16.msra.mxu0 %v4250
    %5963 = vmatprep.subr.bf16.mxu0 0
    %5964 = vmatpush1.bf16.msra.mxu0 %v4251
    %5965 = vmatprep.subr.bf16.mxu0 0
    %5966 = vmatpush1.bf16.msra.mxu0 %v4252
    %5967 = vmatprep.subr.bf16.mxu0 0
    %5968 = vmatpush1.bf16.msra.mxu0 %v4253
    %5969 = vmatprep.subr.bf16.mxu0 0
    %5970 = vmatpush1.bf16.msra.mxu0 %v4254
    %5971 = vmatprep.subr.bf16.mxu0 0
    %5972 = vmatpush1.bf16.msra.mxu0 %v4255
    %5973 = vmatprep.subr.bf16.mxu0 0
    %5974 = vmatpush1.bf16.msra.mxu0 %v4256
    %5975 = vmatprep.subr.bf16.mxu0 0
    %5976 = vmatpush1.bf16.msra.mxu0 %v4257
    %5977 = vmatprep.subr.bf16.mxu0 0
    %5978 = vmatpush1.bf16.msra.mxu0 %v4258
    %5979 = vmatprep.subr.bf16.mxu0 0
    %5980 = vmatpush1.bf16.msra.mxu0 %v4259
    %5981 = vmatprep.subr.bf16.mxu0 0
    %5982 = vmatpush1.bf16.msra.mxu0 %v4260
    %5983 = vmatprep.subr.bf16.mxu0 0
    %5984 = vmatpush1.bf16.msra.mxu0 %v4261
    %5985 = vmatprep.subr.bf16.mxu0 0
    %5986 = vmatpush1.bf16.msra.mxu0 %v4262
    %5987 = vmatprep.subr.bf16.mxu0 0
    %5988 = vmatpush1.bf16.msra.mxu0 %v4263
    %5989 = vmatprep.subr.bf16.mxu0 0
    %5990 = vmatpush1.bf16.msra.mxu0 %v4264
    %5991 = vmatprep.mubr.bf16.mxu0 %v148
    %5992 = vmatmul.mubr.bf16.gmra.mrb[0].mxu0 %v147
    %v5993 = vpop.f32.mrb[0].mxu0
    %v5994 = vadd.f32 %v5954, %v5993
    %v5995 = vpop.f32.mrb[0].mxu0
    %v5996 = vpop.f32.mrb[0].mxu0
    %v5997 = vpop.f32.mrb[0].mxu0
    %5998 = vdwg.mxu0
    %5999 = vmatprep.subr.bf16.mxu0 0
    %6000 = vmatpush1.bf16.msra.mxu0 %v4265
    %6001 = vmatprep.subr.bf16.mxu0 0
    %6002 = vmatpush1.bf16.msra.mxu0 %v4266
    %6003 = vmatprep.subr.bf16.mxu0 0
    %6004 = vmatpush1.bf16.msra.mxu0 %v4267
    %6005 = vmatprep.subr.bf16.mxu0 0
    %6006 = vmatpush1.bf16.msra.mxu0 %v4268
    %6007 = vmatprep.subr.bf16.mxu0 0
    %6008 = vmatpush1.bf16.msra.mxu0 %v4269
    %6009 = vmatprep.subr.bf16.mxu0 0
    %6010 = vmatpush1.bf16.msra.mxu0 %v4270
    %6011 = vmatprep.subr.bf16.mxu0 0
    %6012 = vmatpush1.bf16.msra.mxu0 %v4271
    %6013 = vmatprep.subr.bf16.mxu0 0
    %6014 = vmatpush1.bf16.msra.mxu0 %v4272
    %6015 = vmatprep.subr.bf16.mxu0 0
    %6016 = vmatpush1.bf16.msra.mxu0 %v4273
    %6017 = vmatprep.subr.bf16.mxu0 0
    %6018 = vmatpush1.bf16.msra.mxu0 %v4274
    %6019 = vmatprep.subr.bf16.mxu0 0
    %6020 = vmatpush1.bf16.msra.mxu0 %v4275
    %6021 = vmatprep.subr.bf16.mxu0 0
    %6022 = vmatpush1.bf16.msra.mxu0 %v4276
    %6023 = vmatprep.subr.bf16.mxu0 0
    %6024 = vmatpush1.bf16.msra.mxu0 %v4277
    %6025 = vmatprep.subr.bf16.mxu0 0
    %6026 = vmatpush1.bf16.msra.mxu0 %v4278
    %6027 = vmatprep.subr.bf16.mxu0 0
    %6028 = vmatpush1.bf16.msra.mxu0 %v4279
    %6029 = vmatprep.subr.bf16.mxu0 0
    %6030 = vmatpush1.bf16.msra.mxu0 %v4280
    %6031 = vmatprep.mubr.bf16.mxu0 %v150
    %6032 = vmatmul.mubr.bf16.gmra.mrb[0].mxu0 %v149
    %v6033 = vpop.f32.mrb[0].mxu0
    %v6034 = vadd.f32 %v5994, %v6033
    %v6035 = vpop.f32.mrb[0].mxu0
    %v6036 = vpop.f32.mrb[0].mxu0
    %v6037 = vpop.f32.mrb[0].mxu0
    %6038 = vdwg.mxu0
    %6039 = vmatprep.subr.bf16.mxu0 0
    %6040 = vmatpush1.bf16.msra.mxu0 %v4281
    %6041 = vmatprep.subr.bf16.mxu0 0
    %6042 = vmatpush1.bf16.msra.mxu0 %v4282
    %6043 = vmatprep.subr.bf16.mxu0 0
    %6044 = vmatpush1.bf16.msra.mxu0 %v4283
    %6045 = vmatprep.subr.bf16.mxu0 0
    %6046 = vmatpush1.bf16.msra.mxu0 %v4284
    %6047 = vmatprep.subr.bf16.mxu0 0
    %6048 = vmatpush1.bf16.msra.mxu0 %v4285
    %6049 = vmatprep.subr.bf16.mxu0 0
    %6050 = vmatpush1.bf16.msra.mxu0 %v4286
    %6051 = vmatprep.subr.bf16.mxu0 0
    %6052 = vmatpush1.bf16.msra.mxu0 %v4287
    %6053 = vmatprep.subr.bf16.mxu0 0
    %6054 = vmatpush1.bf16.msra.mxu0 %v4288
    %6055 = vmatprep.subr.bf16.mxu0 0
    %6056 = vmatpush1.bf16.msra.mxu0 %v4289
    %6057 = vmatprep.subr.bf16.mxu0 0
    %6058 = vmatpush1.bf16.msra.mxu0 %v4290
    %6059 = vmatprep.subr.bf16.mxu0 0
    %6060 = vmatpush1.bf16.msra.mxu0 %v4291
    %6061 = vmatprep.subr.bf16.mxu0 0
    %6062 = vmatpush1.bf16.msra.mxu0 %v4292
    %6063 = vmatprep.subr.bf16.mxu0 0
    %6064 = vmatpush1.bf16.msra.mxu0 %v4293
    %6065 = vmatprep.subr.bf16.mxu0 0
    %6066 = vmatpush1.bf16.msra.mxu0 %v4294
    %6067 = vmatprep.subr.bf16.mxu0 0
    %6068 = vmatpush1.bf16.msra.mxu0 %v4295
    %6069 = vmatprep.subr.bf16.mxu0 0
    %6070 = vmatpush1.bf16.msra.mxu0 %v4296
    %6071 = vmatprep.mubr.bf16.mxu0 %v152
    %6072 = vmatmul.mubr.bf16.gmra.mrb[0].mxu0 %v151
    %v6073 = vpop.f32.mrb[0].mxu0
    %v6074 = vadd.f32 %v6034, %v6073
    %v6075 = vpop.f32.mrb[0].mxu0
    %v6076 = vpop.f32.mrb[0].mxu0
    %v6077 = vpop.f32.mrb[0].mxu0
    %6078 = vdwg.mxu0
    %6079 = vmatprep.subr.bf16.mxu0 0
    %6080 = vmatpush1.bf16.msra.mxu0 %v4297
    %6081 = vmatprep.subr.bf16.mxu0 0
    %6082 = vmatpush1.bf16.msra.mxu0 %v4298
    %6083 = vmatprep.subr.bf16.mxu0 0
    %6084 = vmatpush1.bf16.msra.mxu0 %v4299
    %6085 = vmatprep.subr.bf16.mxu0 0
    %6086 = vmatpush1.bf16.msra.mxu0 %v4300
    %6087 = vmatprep.subr.bf16.mxu0 0
    %6088 = vmatpush1.bf16.msra.mxu0 %v4301
    %6089 = vmatprep.subr.bf16.mxu0 0
    %6090 = vmatpush1.bf16.msra.mxu0 %v4302
    %6091 = vmatprep.subr.bf16.mxu0 0
    %6092 = vmatpush1.bf16.msra.mxu0 %v4303
    %6093 = vmatprep.subr.bf16.mxu0 0
    %6094 = vmatpush1.bf16.msra.mxu0 %v4304
    %6095 = vmatprep.subr.bf16.mxu0 0
    %6096 = vmatpush1.bf16.msra.mxu0 %v4305
    %6097 = vmatprep.subr.bf16.mxu0 0
    %6098 = vmatpush1.bf16.msra.mxu0 %v4306
    %6099 = vmatprep.subr.bf16.mxu0 0
    %6100 = vmatpush1.bf16.msra.mxu0 %v4307
    %6101 = vmatprep.subr.bf16.mxu0 0
    %6102 = vmatpush1.bf16.msra.mxu0 %v4308
    %6103 = vmatprep.subr.bf16.mxu0 0
    %6104 = vmatpush1.bf16.msra.mxu0 %v4309
    %6105 = vmatprep.subr.bf16.mxu0 0
    %6106 = vmatpush1.bf16.msra.mxu0 %v4310
    %6107 = vmatprep.subr.bf16.mxu0 0
    %6108 = vmatpush1.bf16.msra.mxu0 %v4311
    %6109 = vmatprep.subr.bf16.mxu0 0
    %6110 = vmatpush1.bf16.msra.mxu0 %v4312
    %6111 = vmatprep.mubr.bf16.mxu0 %v154
    %6112 = vmatmul.mubr.bf16.gmra.mrb[0].mxu0 %v153
    %v6113 = vpop.f32.mrb[0].mxu0
    %v6114 = vadd.f32 %v6074, %v6113
    %v6115 = vpop.f32.mrb[0].mxu0
    %v6116 = vpop.f32.mrb[0].mxu0
    %v6117 = vpop.f32.mrb[0].mxu0
    %6118 = vdwg.mxu0
    %6119 = vmatprep.subr.bf16.mxu0 0
    %6120 = vmatpush1.bf16.msra.mxu0 %v4313
    %6121 = vmatprep.subr.bf16.mxu0 0
    %6122 = vmatpush1.bf16.msra.mxu0 %v4314
    %6123 = vmatprep.subr.bf16.mxu0 0
    %6124 = vmatpush1.bf16.msra.mxu0 %v4315
    %6125 = vmatprep.subr.bf16.mxu0 0
    %6126 = vmatpush1.bf16.msra.mxu0 %v4316
    %6127 = vmatprep.subr.bf16.mxu0 0
    %6128 = vmatpush1.bf16.msra.mxu0 %v4317
    %6129 = vmatprep.subr.bf16.mxu0 0
    %6130 = vmatpush1.bf16.msra.mxu0 %v4318
    %6131 = vmatprep.subr.bf16.mxu0 0
    %6132 = vmatpush1.bf16.msra.mxu0 %v4319
    %6133 = vmatprep.subr.bf16.mxu0 0
    %6134 = vmatpush1.bf16.msra.mxu0 %v4320
    %6135 = vmatprep.subr.bf16.mxu0 0
    %6136 = vmatpush1.bf16.msra.mxu0 %v4321
    %6137 = vmatprep.subr.bf16.mxu0 0
    %6138 = vmatpush1.bf16.msra.mxu0 %v4322
    %6139 = vmatprep.subr.bf16.mxu0 0
    %6140 = vmatpush1.bf16.msra.mxu0 %v4323
    %6141 = vmatprep.subr.bf16.mxu0 0
    %6142 = vmatpush1.bf16.msra.mxu0 %v4324
    %6143 = vmatprep.subr.bf16.mxu0 0
    %6144 = vmatpush1.bf16.msra.mxu0 %v4325
    %6145 = vmatprep.subr.bf16.mxu0 0
    %6146 = vmatpush1.bf16.msra.mxu0 %v4326
    %6147 = vmatprep.subr.bf16.mxu0 0
    %6148 = vmatpush1.bf16.msra.mxu0 %v4327
    %6149 = vmatprep.subr.bf16.mxu0 0
    %6150 = vmatpush1.bf16.msra.mxu0 %v4328
    %6151 = vmatprep.mubr.bf16.mxu0 %v156
    %6152 = vmatmul.mubr.bf16.gmra.mrb[0].mxu0 %v155
    %v6153 = vpop.f32.mrb[0].mxu0
    %v6154 = vadd.f32 %v6114, %v6153
    %v6155 = vpop.f32.mrb[0].mxu0
    %v6156 = vpop.f32.mrb[0].mxu0
    %v6157 = vpop.f32.mrb[0].mxu0
    %6158 = vdwg.mxu0
    %6159 = vmatprep.subr.bf16.mxu0 0
    %6160 = vmatpush1.bf16.msra.mxu0 %v4329
    %6161 = vmatprep.subr.bf16.mxu0 0
    %6162 = vmatpush1.bf16.msra.mxu0 %v4330
    %6163 = vmatprep.subr.bf16.mxu0 0
    %6164 = vmatpush1.bf16.msra.mxu0 %v4331
    %6165 = vmatprep.subr.bf16.mxu0 0
    %6166 = vmatpush1.bf16.msra.mxu0 %v4332
    %6167 = vmatprep.subr.bf16.mxu0 0
    %6168 = vmatpush1.bf16.msra.mxu0 %v4333
    %6169 = vmatprep.subr.bf16.mxu0 0
    %6170 = vmatpush1.bf16.msra.mxu0 %v4334
    %6171 = vmatprep.subr.bf16.mxu0 0
    %6172 = vmatpush1.bf16.msra.mxu0 %v4335
    %6173 = vmatprep.subr.bf16.mxu0 0
    %6174 = vmatpush1.bf16.msra.mxu0 %v4336
    %6175 = vmatprep.subr.bf16.mxu0 0
    %6176 = vmatpush1.bf16.msra.mxu0 %v4337
    %6177 = vmatprep.subr.bf16.mxu0 0
    %6178 = vmatpush1.bf16.msra.mxu0 %v4338
    %6179 = vmatprep.subr.bf16.mxu0 0
    %6180 = vmatpush1.bf16.msra.mxu0 %v4339
    %6181 = vmatprep.subr.bf16.mxu0 0
    %6182 = vmatpush1.bf16.msra.mxu0 %v4340
    %6183 = vmatprep.subr.bf16.mxu0 0
    %6184 = vmatpush1.bf16.msra.mxu0 %v4341
    %6185 = vmatprep.subr.bf16.mxu0 0
    %6186 = vmatpush1.bf16.msra.mxu0 %v4342
    %6187 = vmatprep.subr.bf16.mxu0 0
    %6188 = vmatpush1.bf16.msra.mxu0 %v4343
    %6189 = vmatprep.subr.bf16.mxu0 0
    %6190 = vmatpush1.bf16.msra.mxu0 %v4344
    %6191 = vmatprep.mubr.bf16.mxu0 %v158
    %6192 = vmatmul.mubr.bf16.gmra.mrb[0].mxu0 %v157
    %v6193 = vpop.f32.mrb[0].mxu0
    %v6194 = vadd.f32 %v6154, %v6193
    %v6195 = vpop.f32.mrb[0].mxu0
    %v6196 = vpop.f32.mrb[0].mxu0
    %v6197 = vpop.f32.mrb[0].mxu0
    %6198 = vdwg.mxu0
    %6199 = vmatprep.subr.bf16.mxu0 0
    %6200 = vmatpush1.bf16.msra.mxu0 %v4345
    %6201 = vmatprep.subr.bf16.mxu0 0
    %6202 = vmatpush1.bf16.msra.mxu0 %v4346
    %6203 = vmatprep.subr.bf16.mxu0 0
    %6204 = vmatpush1.bf16.msra.mxu0 %v4347
    %6205 = vmatprep.subr.bf16.mxu0 0
    %6206 = vmatpush1.bf16.msra.mxu0 %v4348
    %6207 = vmatprep.subr.bf16.mxu0 0
    %6208 = vmatpush1.bf16.msra.mxu0 %v4349
    %6209 = vmatprep.subr.bf16.mxu0 0
    %6210 = vmatpush1.bf16.msra.mxu0 %v4350
    %6211 = vmatprep.subr.bf16.mxu0 0
    %6212 = vmatpush1.bf16.msra.mxu0 %v4351
    %6213 = vmatprep.subr.bf16.mxu0 0
    %6214 = vmatpush1.bf16.msra.mxu0 %v4352
    %6215 = vmatprep.subr.bf16.mxu0 0
    %6216 = vmatpush1.bf16.msra.mxu0 %v4353
    %6217 = vmatprep.subr.bf16.mxu0 0
    %6218 = vmatpush1.bf16.msra.mxu0 %v4354
    %6219 = vmatprep.subr.bf16.mxu0 0
    %6220 = vmatpush1.bf16.msra.mxu0 %v4355
    %6221 = vmatprep.subr.bf16.mxu0 0
    %6222 = vmatpush1.bf16.msra.mxu0 %v4356
    %6223 = vmatprep.subr.bf16.mxu0 0
    %6224 = vmatpush1.bf16.msra.mxu0 %v4357
    %6225 = vmatprep.subr.bf16.mxu0 0
    %6226 = vmatpush1.bf16.msra.mxu0 %v4358
    %6227 = vmatprep.subr.bf16.mxu0 0
    %6228 = vmatpush1.bf16.msra.mxu0 %v4359
    %6229 = vmatprep.subr.bf16.mxu0 0
    %6230 = vmatpush1.bf16.msra.mxu0 %v4360
    %6231 = vmatprep.mubr.bf16.mxu0 %v160
    %6232 = vmatmul.mubr.bf16.gmra.mrb[0].mxu0 %v159
    %v6233 = vpop.f32.mrb[0].mxu0
    %v6234 = vadd.f32 %v6194, %v6233
    %v6235 = vpop.f32.mrb[0].mxu0
    %v6236 = vpop.f32.mrb[0].mxu0
    %v6237 = vpop.f32.mrb[0].mxu0
    %6238 = vdwg.mxu0
    %6239 = vmatprep.subr.bf16.mxu0 0
    %6240 = vmatpush1.bf16.msra.mxu0 %v4361
    %6241 = vmatprep.subr.bf16.mxu0 0
    %6242 = vmatpush1.bf16.msra.mxu0 %v4362
    %6243 = vmatprep.subr.bf16.mxu0 0
    %6244 = vmatpush1.bf16.msra.mxu0 %v4363
    %6245 = vmatprep.subr.bf16.mxu0 0
    %6246 = vmatpush1.bf16.msra.mxu0 %v4364
    %6247 = vmatprep.subr.bf16.mxu0 0
    %6248 = vmatpush1.bf16.msra.mxu0 %v4365
    %6249 = vmatprep.subr.bf16.mxu0 0
    %6250 = vmatpush1.bf16.msra.mxu0 %v4366
    %6251 = vmatprep.subr.bf16.mxu0 0
    %6252 = vmatpush1.bf16.msra.mxu0 %v4367
    %6253 = vmatprep.subr.bf16.mxu0 0
    %6254 = vmatpush1.bf16.msra.mxu0 %v4368
    %6255 = vmatprep.subr.bf16.mxu0 0
    %6256 = vmatpush1.bf16.msra.mxu0 %v4369
    %6257 = vmatprep.subr.bf16.mxu0 0
    %6258 = vmatpush1.bf16.msra.mxu0 %v4370
    %6259 = vmatprep.subr.bf16.mxu0 0
    %6260 = vmatpush1.bf16.msra.mxu0 %v4371
    %6261 = vmatprep.subr.bf16.mxu0 0
    %6262 = vmatpush1.bf16.msra.mxu0 %v4372
    %6263 = vmatprep.subr.bf16.mxu0 0
    %6264 = vmatpush1.bf16.msra.mxu0 %v4373
    %6265 = vmatprep.subr.bf16.mxu0 0
    %6266 = vmatpush1.bf16.msra.mxu0 %v4374
    %6267 = vmatprep.subr.bf16.mxu0 0
    %6268 = vmatpush1.bf16.msra.mxu0 %v4375
    %6269 = vmatprep.subr.bf16.mxu0 0
    %6270 = vmatpush1.bf16.msra.mxu0 %v4376
    %6271 = vmatprep.mubr.bf16.mxu0 %v162
    %6272 = vmatmul.mubr.bf16.gmra.mrb[0].mxu0 %v161
    %v6273 = vpop.f32.mrb[0].mxu0
    %v6274 = vadd.f32 %v6234, %v6273
    %v6275 = vpop.f32.mrb[0].mxu0
    %v6276 = vpop.f32.mrb[0].mxu0
    %v6277 = vpop.f32.mrb[0].mxu0
    %6278 = vdwg.mxu0
    %6279 = vmatprep.subr.bf16.mxu0 0
    %6280 = vmatpush1.bf16.msra.mxu0 %v4377
    %6281 = vmatprep.subr.bf16.mxu0 0
    %6282 = vmatpush1.bf16.msra.mxu0 %v4378
    %6283 = vmatprep.subr.bf16.mxu0 0
    %6284 = vmatpush1.bf16.msra.mxu0 %v4379
    %6285 = vmatprep.subr.bf16.mxu0 0
    %6286 = vmatpush1.bf16.msra.mxu0 %v4380
    %6287 = vmatprep.subr.bf16.mxu0 0
    %6288 = vmatpush1.bf16.msra.mxu0 %v4381
    %6289 = vmatprep.subr.bf16.mxu0 0
    %6290 = vmatpush1.bf16.msra.mxu0 %v4382
    %6291 = vmatprep.subr.bf16.mxu0 0
    %6292 = vmatpush1.bf16.msra.mxu0 %v4383
    %6293 = vmatprep.subr.bf16.mxu0 0
    %6294 = vmatpush1.bf16.msra.mxu0 %v4384
    %6295 = vmatprep.subr.bf16.mxu0 0
    %6296 = vmatpush1.bf16.msra.mxu0 %v4385
    %6297 = vmatprep.subr.bf16.mxu0 0
    %6298 = vmatpush1.bf16.msra.mxu0 %v4386
    %6299 = vmatprep.subr.bf16.mxu0 0
    %6300 = vmatpush1.bf16.msra.mxu0 %v4387
    %6301 = vmatprep.subr.bf16.mxu0 0
    %6302 = vmatpush1.bf16.msra.mxu0 %v4388
    %6303 = vmatprep.subr.bf16.mxu0 0
    %6304 = vmatpush1.bf16.msra.mxu0 %v4389
    %6305 = vmatprep.subr.bf16.mxu0 0
    %6306 = vmatpush1.bf16.msra.mxu0 %v4390
    %6307 = vmatprep.subr.bf16.mxu0 0
    %6308 = vmatpush1.bf16.msra.mxu0 %v4391
    %6309 = vmatprep.subr.bf16.mxu0 0
    %6310 = vmatpush1.bf16.msra.mxu0 %v4392
    %6311 = vmatprep.mubr.bf16.mxu0 %v164
    %6312 = vmatmul.mubr.bf16.gmra.mrb[0].mxu0 %v163
    %v6313 = vpop.f32.mrb[0].mxu0
    %v6314 = vadd.f32 %v6274, %v6313
    %v6315 = vpop.f32.mrb[0].mxu0
    %v6316 = vpop.f32.mrb[0].mxu0
    %v6317 = vpop.f32.mrb[0].mxu0
    %6318 = vdwg.mxu0
    %6319 = vmatprep.subr.bf16.mxu0 0
    %6320 = vmatpush1.bf16.msra.mxu0 %v4393
    %6321 = vmatprep.subr.bf16.mxu0 0
    %6322 = vmatpush1.bf16.msra.mxu0 %v4394
    %6323 = vmatprep.subr.bf16.mxu0 0
    %6324 = vmatpush1.bf16.msra.mxu0 %v4395
    %6325 = vmatprep.subr.bf16.mxu0 0
    %6326 = vmatpush1.bf16.msra.mxu0 %v4396
    %6327 = vmatprep.subr.bf16.mxu0 0
    %6328 = vmatpush1.bf16.msra.mxu0 %v4397
    %6329 = vmatprep.subr.bf16.mxu0 0
    %6330 = vmatpush1.bf16.msra.mxu0 %v4398
    %6331 = vmatprep.subr.bf16.mxu0 0
    %6332 = vmatpush1.bf16.msra.mxu0 %v4399
    %6333 = vmatprep.subr.bf16.mxu0 0
    %6334 = vmatpush1.bf16.msra.mxu0 %v4400
    %6335 = vmatprep.subr.bf16.mxu0 0
    %6336 = vmatpush1.bf16.msra.mxu0 %v4401
    %6337 = vmatprep.subr.bf16.mxu0 0
    %6338 = vmatpush1.bf16.msra.mxu0 %v4402
    %6339 = vmatprep.subr.bf16.mxu0 0
    %6340 = vmatpush1.bf16.msra.mxu0 %v4403
    %6341 = vmatprep.subr.bf16.mxu0 0
    %6342 = vmatpush1.bf16.msra.mxu0 %v4404
    %6343 = vmatprep.subr.bf16.mxu0 0
    %6344 = vmatpush1.bf16.msra.mxu0 %v4405
    %6345 = vmatprep.subr.bf16.mxu0 0
    %6346 = vmatpush1.bf16.msra.mxu0 %v4406
    %6347 = vmatprep.subr.bf16.mxu0 0
    %6348 = vmatpush1.bf16.msra.mxu0 %v4407
    %6349 = vmatprep.subr.bf16.mxu0 0
    %6350 = vmatpush1.bf16.msra.mxu0 %v4408
    %6351 = vmatprep.mubr.bf16.mxu0 %v166
    %6352 = vmatmul.mubr.bf16.gmra.mrb[0].mxu0 %v165
    %v6353 = vpop.f32.mrb[0].mxu0
    %v6354 = vadd.f32 %v6314, %v6353
    %v6355 = vpop.f32.mrb[0].mxu0
    %v6356 = vpop.f32.mrb[0].mxu0
    %v6357 = vpop.f32.mrb[0].mxu0
    %6358 = vdwg.mxu0
    %6359 = vmatprep.subr.bf16.mxu0 0
    %6360 = vmatpush1.bf16.msra.mxu0 %v4409
    %6361 = vmatprep.subr.bf16.mxu0 0
    %6362 = vmatpush1.bf16.msra.mxu0 %v4410
    %6363 = vmatprep.subr.bf16.mxu0 0
    %6364 = vmatpush1.bf16.msra.mxu0 %v4411
    %6365 = vmatprep.subr.bf16.mxu0 0
    %6366 = vmatpush1.bf16.msra.mxu0 %v4412
    %6367 = vmatprep.subr.bf16.mxu0 0
    %6368 = vmatpush1.bf16.msra.mxu0 %v4413
    %6369 = vmatprep.subr.bf16.mxu0 0
    %6370 = vmatpush1.bf16.msra.mxu0 %v4414
    %6371 = vmatprep.subr.bf16.mxu0 0
    %6372 = vmatpush1.bf16.msra.mxu0 %v4415
    %6373 = vmatprep.subr.bf16.mxu0 0
    %6374 = vmatpush1.bf16.msra.mxu0 %v4416
    %6375 = vmatprep.subr.bf16.mxu0 0
    %6376 = vmatpush1.bf16.msra.mxu0 %v4417
    %6377 = vmatprep.subr.bf16.mxu0 0
    %6378 = vmatpush1.bf16.msra.mxu0 %v4418
    %6379 = vmatprep.subr.bf16.mxu0 0
    %6380 = vmatpush1.bf16.msra.mxu0 %v4419
    %6381 = vmatprep.subr.bf16.mxu0 0
    %6382 = vmatpush1.bf16.msra.mxu0 %v4420
    %6383 = vmatprep.subr.bf16.mxu0 0
    %6384 = vmatpush1.bf16.msra.mxu0 %v4421
    %6385 = vmatprep.subr.bf16.mxu0 0
    %6386 = vmatpush1.bf16.msra.mxu0 %v4422
    %6387 = vmatprep.subr.bf16.mxu0 0
    %6388 = vmatpush1.bf16.msra.mxu0 %v4423
    %6389 = vmatprep.subr.bf16.mxu0 0
    %6390 = vmatpush1.bf16.msra.mxu0 %v4424
    %6391 = vmatprep.mubr.bf16.mxu0 %v168
    %6392 = vmatmul.mubr.bf16.gmra.mrb[0].mxu0 %v167
    %v6393 = vpop.f32.mrb[0].mxu0
    %v6394 = vadd.f32 %v6354, %v6393
    %v6395 = vpop.f32.mrb[0].mxu0
    %v6396 = vpop.f32.mrb[0].mxu0
    %v6397 = vpop.f32.mrb[0].mxu0
    %6398 = vdwg.mxu0
    %6399 = vmatprep.subr.bf16.mxu0 0
    %6400 = vmatpush1.bf16.msra.mxu0 %v4425
    %6401 = vmatprep.subr.bf16.mxu0 0
    %6402 = vmatpush1.bf16.msra.mxu0 %v4426
    %6403 = vmatprep.subr.bf16.mxu0 0
    %6404 = vmatpush1.bf16.msra.mxu0 %v4427
    %6405 = vmatprep.subr.bf16.mxu0 0
    %6406 = vmatpush1.bf16.msra.mxu0 %v4428
    %6407 = vmatprep.subr.bf16.mxu0 0
    %6408 = vmatpush1.bf16.msra.mxu0 %v4429
    %6409 = vmatprep.subr.bf16.mxu0 0
    %6410 = vmatpush1.bf16.msra.mxu0 %v4430
    %6411 = vmatprep.subr.bf16.mxu0 0
    %6412 = vmatpush1.bf16.msra.mxu0 %v4431
    %6413 = vmatprep.subr.bf16.mxu0 0
    %6414 = vmatpush1.bf16.msra.mxu0 %v4432
    %6415 = vmatprep.subr.bf16.mxu0 0
    %6416 = vmatpush1.bf16.msra.mxu0 %v4433
    %6417 = vmatprep.subr.bf16.mxu0 0
    %6418 = vmatpush1.bf16.msra.mxu0 %v4434
    %6419 = vmatprep.subr.bf16.mxu0 0
    %6420 = vmatpush1.bf16.msra.mxu0 %v4435
    %6421 = vmatprep.subr.bf16.mxu0 0
    %6422 = vmatpush1.bf16.msra.mxu0 %v4436
    %6423 = vmatprep.subr.bf16.mxu0 0
    %6424 = vmatpush1.bf16.msra.mxu0 %v4437
    %6425 = vmatprep.subr.bf16.mxu0 0
    %6426 = vmatpush1.bf16.msra.mxu0 %v4438
    %6427 = vmatprep.subr.bf16.mxu0 0
    %6428 = vmatpush1.bf16.msra.mxu0 %v4439
    %6429 = vmatprep.subr.bf16.mxu0 0
    %6430 = vmatpush1.bf16.msra.mxu0 %v4440
    %6431 = vmatprep.mubr.bf16.mxu0 %v170
    %6432 = vmatmul.mubr.bf16.gmra.mrb[0].mxu0 %v169
    %v6433 = vpop.f32.mrb[0].mxu0
    %v6434 = vadd.f32 %v6394, %v6433
    %v6435 = vpop.f32.mrb[0].mxu0
    %v6436 = vpop.f32.mrb[0].mxu0
    %v6437 = vpop.f32.mrb[0].mxu0
    %6438 = vdwg.mxu0
    %6439 = vmatprep.subr.bf16.mxu0 0
    %6440 = vmatpush1.bf16.msra.mxu0 %v4441
    %6441 = vmatprep.subr.bf16.mxu0 0
    %6442 = vmatpush1.bf16.msra.mxu0 %v4442
    %6443 = vmatprep.subr.bf16.mxu0 0
    %6444 = vmatpush1.bf16.msra.mxu0 %v4443
    %6445 = vmatprep.subr.bf16.mxu0 0
    %6446 = vmatpush1.bf16.msra.mxu0 %v4444
    %6447 = vmatprep.subr.bf16.mxu0 0
    %6448 = vmatpush1.bf16.msra.mxu0 %v4445
    %6449 = vmatprep.subr.bf16.mxu0 0
    %6450 = vmatpush1.bf16.msra.mxu0 %v4446
    %6451 = vmatprep.subr.bf16.mxu0 0
    %6452 = vmatpush1.bf16.msra.mxu0 %v4447
    %6453 = vmatprep.subr.bf16.mxu0 0
    %6454 = vmatpush1.bf16.msra.mxu0 %v4448
    %6455 = vmatprep.subr.bf16.mxu0 0
    %6456 = vmatpush1.bf16.msra.mxu0 %v4449
    %6457 = vmatprep.subr.bf16.mxu0 0
    %6458 = vmatpush1.bf16.msra.mxu0 %v4450
    %6459 = vmatprep.subr.bf16.mxu0 0
    %6460 = vmatpush1.bf16.msra.mxu0 %v4451
    %6461 = vmatprep.subr.bf16.mxu0 0
    %6462 = vmatpush1.bf16.msra.mxu0 %v4452
    %6463 = vmatprep.subr.bf16.mxu0 0
    %6464 = vmatpush1.bf16.msra.mxu0 %v4453
    %6465 = vmatprep.subr.bf16.mxu0 0
    %6466 = vmatpush1.bf16.msra.mxu0 %v4454
    %6467 = vmatprep.subr.bf16.mxu0 0
    %6468 = vmatpush1.bf16.msra.mxu0 %v4455
    %6469 = vmatprep.subr.bf16.mxu0 0
    %6470 = vmatpush1.bf16.msra.mxu0 %v4456
    %6471 = vmatprep.mubr.bf16.mxu0 %v172
    %6472 = vmatmul.mubr.bf16.gmra.mrb[0].mxu0 %v171
    %v6473 = vpop.f32.mrb[0].mxu0
    %v6474 = vadd.f32 %v6434, %v6473
    %v6475 = vpop.f32.mrb[0].mxu0
    %v6476 = vpop.f32.mrb[0].mxu0
    %v6477 = vpop.f32.mrb[0].mxu0
    %6478 = vdwg.mxu0
    %6479 = vmatprep.subr.bf16.mxu0 0
    %6480 = vmatpush1.bf16.msra.mxu0 %v4457
    %6481 = vmatprep.subr.bf16.mxu0 0
    %6482 = vmatpush1.bf16.msra.mxu0 %v4458
    %6483 = vmatprep.subr.bf16.mxu0 0
    %6484 = vmatpush1.bf16.msra.mxu0 %v4459
    %6485 = vmatprep.subr.bf16.mxu0 0
    %6486 = vmatpush1.bf16.msra.mxu0 %v4460
    %6487 = vmatprep.subr.bf16.mxu0 0
    %6488 = vmatpush1.bf16.msra.mxu0 %v4461
    %6489 = vmatprep.subr.bf16.mxu0 0
    %6490 = vmatpush1.bf16.msra.mxu0 %v4462
    %6491 = vmatprep.subr.bf16.mxu0 0
    %6492 = vmatpush1.bf16.msra.mxu0 %v4463
    %6493 = vmatprep.subr.bf16.mxu0 0
    %6494 = vmatpush1.bf16.msra.mxu0 %v4464
    %6495 = vmatprep.subr.bf16.mxu0 0
    %6496 = vmatpush1.bf16.msra.mxu0 %v4465
    %6497 = vmatprep.subr.bf16.mxu0 0
    %6498 = vmatpush1.bf16.msra.mxu0 %v4466
    %6499 = vmatprep.subr.bf16.mxu0 0
    %6500 = vmatpush1.bf16.msra.mxu0 %v4467
    %6501 = vmatprep.subr.bf16.mxu0 0
    %6502 = vmatpush1.bf16.msra.mxu0 %v4468
    %6503 = vmatprep.subr.bf16.mxu0 0
    %6504 = vmatpush1.bf16.msra.mxu0 %v4469
    %6505 = vmatprep.subr.bf16.mxu0 0
    %6506 = vmatpush1.bf16.msra.mxu0 %v4470
    %6507 = vmatprep.subr.bf16.mxu0 0
    %6508 = vmatpush1.bf16.msra.mxu0 %v4471
    %6509 = vmatprep.subr.bf16.mxu0 0
    %6510 = vmatpush1.bf16.msra.mxu0 %v4472
    %6511 = vmatprep.mubr.bf16.mxu0 %v174
    %6512 = vmatmul.mubr.bf16.gmra.mrb[0].mxu0 %v173
    %v6513 = vpop.f32.mrb[0].mxu0
    %v6514 = vadd.f32 %v6474, %v6513
    %v6515 = vpop.f32.mrb[0].mxu0
    %v6516 = vpop.f32.mrb[0].mxu0
    %v6517 = vpop.f32.mrb[0].mxu0
    %6518 = vdwg.mxu0
    %6519 = vmatprep.subr.bf16.mxu0 0
    %6520 = vmatpush1.bf16.msra.mxu0 %v4473
    %6521 = vmatprep.subr.bf16.mxu0 0
    %6522 = vmatpush1.bf16.msra.mxu0 %v4474
    %6523 = vmatprep.subr.bf16.mxu0 0
    %6524 = vmatpush1.bf16.msra.mxu0 %v4475
    %6525 = vmatprep.subr.bf16.mxu0 0
    %6526 = vmatpush1.bf16.msra.mxu0 %v4476
    %6527 = vmatprep.subr.bf16.mxu0 0
    %6528 = vmatpush1.bf16.msra.mxu0 %v4477
    %6529 = vmatprep.subr.bf16.mxu0 0
    %6530 = vmatpush1.bf16.msra.mxu0 %v4478
    %6531 = vmatprep.subr.bf16.mxu0 0
    %6532 = vmatpush1.bf16.msra.mxu0 %v4479
    %6533 = vmatprep.subr.bf16.mxu0 0
    %6534 = vmatpush1.bf16.msra.mxu0 %v4480
    %6535 = vmatprep.subr.bf16.mxu0 0
    %6536 = vmatpush1.bf16.msra.mxu0 %v4481
    %6537 = vmatprep.subr.bf16.mxu0 0
    %6538 = vmatpush1.bf16.msra.mxu0 %v4482
    %6539 = vmatprep.subr.bf16.mxu0 0
    %6540 = vmatpush1.bf16.msra.mxu0 %v4483
    %6541 = vmatprep.subr.bf16.mxu0 0
    %6542 = vmatpush1.bf16.msra.mxu0 %v4484
    %6543 = vmatprep.subr.bf16.mxu0 0
    %6544 = vmatpush1.bf16.msra.mxu0 %v4485
    %6545 = vmatprep.subr.bf16.mxu0 0
    %6546 = vmatpush1.bf16.msra.mxu0 %v4486
    %6547 = vmatprep.subr.bf16.mxu0 0
    %6548 = vmatpush1.bf16.msra.mxu0 %v4487
    %6549 = vmatprep.subr.bf16.mxu0 0
    %6550 = vmatpush1.bf16.msra.mxu0 %v4488
    %6551 = vmatprep.mubr.bf16.mxu0 %v176
    %6552 = vmatmul.mubr.bf16.gmra.mrb[0].mxu0 %v175
    %v6553 = vpop.f32.mrb[0].mxu0
    %v6554 = vadd.f32 %v6514, %v6553
    %v6555 = vpop.f32.mrb[0].mxu0
    %v6556 = vpop.f32.mrb[0].mxu0
    %v6557 = vpop.f32.mrb[0].mxu0
    %6558 = vdwg.mxu0
    %6559 = vmatprep.subr.bf16.mxu0 0
    %6560 = vmatpush1.bf16.msra.mxu0 %v4489
    %6561 = vmatprep.subr.bf16.mxu0 0
    %6562 = vmatpush1.bf16.msra.mxu0 %v4490
    %6563 = vmatprep.subr.bf16.mxu0 0
    %6564 = vmatpush1.bf16.msra.mxu0 %v4491
    %6565 = vmatprep.subr.bf16.mxu0 0
    %6566 = vmatpush1.bf16.msra.mxu0 %v4492
    %6567 = vmatprep.subr.bf16.mxu0 0
    %6568 = vmatpush1.bf16.msra.mxu0 %v4493
    %6569 = vmatprep.subr.bf16.mxu0 0
    %6570 = vmatpush1.bf16.msra.mxu0 %v4494
    %6571 = vmatprep.subr.bf16.mxu0 0
    %6572 = vmatpush1.bf16.msra.mxu0 %v4495
    %6573 = vmatprep.subr.bf16.mxu0 0
    %6574 = vmatpush1.bf16.msra.mxu0 %v4496
    %6575 = vmatprep.subr.bf16.mxu0 0
    %6576 = vmatpush1.bf16.msra.mxu0 %v4497
    %6577 = vmatprep.subr.bf16.mxu0 0
    %6578 = vmatpush1.bf16.msra.mxu0 %v4498
    %6579 = vmatprep.subr.bf16.mxu0 0
    %6580 = vmatpush1.bf16.msra.mxu0 %v4499
    %6581 = vmatprep.subr.bf16.mxu0 0
    %6582 = vmatpush1.bf16.msra.mxu0 %v4500
    %6583 = vmatprep.subr.bf16.mxu0 0
    %6584 = vmatpush1.bf16.msra.mxu0 %v4501
    %6585 = vmatprep.subr.bf16.mxu0 0
    %6586 = vmatpush1.bf16.msra.mxu0 %v4502
    %6587 = vmatprep.subr.bf16.mxu0 0
    %6588 = vmatpush1.bf16.msra.mxu0 %v4503
    %6589 = vmatprep.subr.bf16.mxu0 0
    %6590 = vmatpush1.bf16.msra.mxu0 %v4504
    %6591 = vmatprep.mubr.bf16.mxu0 %v178
    %6592 = vmatmul.mubr.bf16.gmra.mrb[0].mxu0 %v177
    %v6593 = vpop.f32.mrb[0].mxu0
    %v6594 = vadd.f32 %v6554, %v6593
    %v6595 = vpop.f32.mrb[0].mxu0
    %v6596 = vpop.f32.mrb[0].mxu0
    %v6597 = vpop.f32.mrb[0].mxu0
    %6598 = vdwg.mxu0
    %6599 = vmatprep.subr.bf16.mxu0 0
    %6600 = vmatpush1.bf16.msra.mxu0 %v4505
    %6601 = vmatprep.subr.bf16.mxu0 0
    %6602 = vmatpush1.bf16.msra.mxu0 %v4506
    %6603 = vmatprep.subr.bf16.mxu0 0
    %6604 = vmatpush1.bf16.msra.mxu0 %v4507
    %6605 = vmatprep.subr.bf16.mxu0 0
    %6606 = vmatpush1.bf16.msra.mxu0 %v4508
    %6607 = vmatprep.subr.bf16.mxu0 0
    %6608 = vmatpush1.bf16.msra.mxu0 %v4509
    %6609 = vmatprep.subr.bf16.mxu0 0
    %6610 = vmatpush1.bf16.msra.mxu0 %v4510
    %6611 = vmatprep.subr.bf16.mxu0 0
    %6612 = vmatpush1.bf16.msra.mxu0 %v4511
    %6613 = vmatprep.subr.bf16.mxu0 0
    %6614 = vmatpush1.bf16.msra.mxu0 %v4512
    %6615 = vmatprep.subr.bf16.mxu0 0
    %6616 = vmatpush1.bf16.msra.mxu0 %v4513
    %6617 = vmatprep.subr.bf16.mxu0 0
    %6618 = vmatpush1.bf16.msra.mxu0 %v4514
    %6619 = vmatprep.subr.bf16.mxu0 0
    %6620 = vmatpush1.bf16.msra.mxu0 %v4515
    %6621 = vmatprep.subr.bf16.mxu0 0
    %6622 = vmatpush1.bf16.msra.mxu0 %v4516
    %6623 = vmatprep.subr.bf16.mxu0 0
    %6624 = vmatpush1.bf16.msra.mxu0 %v4517
    %6625 = vmatprep.subr.bf16.mxu0 0
    %6626 = vmatpush1.bf16.msra.mxu0 %v4518
    %6627 = vmatprep.subr.bf16.mxu0 0
    %6628 = vmatpush1.bf16.msra.mxu0 %v4519
    %6629 = vmatprep.subr.bf16.mxu0 0
    %6630 = vmatpush1.bf16.msra.mxu0 %v4520
    %6631 = vmatprep.mubr.bf16.mxu0 %v180
    %6632 = vmatmul.mubr.bf16.gmra.mrb[0].mxu0 %v179
    %v6633 = vpop.f32.mrb[0].mxu0
    %v6634 = vadd.f32 %v6594, %v6633
    %v6635 = vpop.f32.mrb[0].mxu0
    %v6636 = vpop.f32.mrb[0].mxu0
    %v6637 = vpop.f32.mrb[0].mxu0
    %6638 = vdwg.mxu0
    %6639 = vmatprep.subr.bf16.mxu0 0
    %6640 = vmatpush1.bf16.msra.mxu0 %v4521
    %6641 = vmatprep.subr.bf16.mxu0 0
    %6642 = vmatpush1.bf16.msra.mxu0 %v4522
    %6643 = vmatprep.subr.bf16.mxu0 0
    %6644 = vmatpush1.bf16.msra.mxu0 %v4523
    %6645 = vmatprep.subr.bf16.mxu0 0
    %6646 = vmatpush1.bf16.msra.mxu0 %v4524
    %6647 = vmatprep.subr.bf16.mxu0 0
    %6648 = vmatpush1.bf16.msra.mxu0 %v4525
    %6649 = vmatprep.subr.bf16.mxu0 0
    %6650 = vmatpush1.bf16.msra.mxu0 %v4526
    %6651 = vmatprep.subr.bf16.mxu0 0
    %6652 = vmatpush1.bf16.msra.mxu0 %v4527
    %6653 = vmatprep.subr.bf16.mxu0 0
    %6654 = vmatpush1.bf16.msra.mxu0 %v4528
    %6655 = vmatprep.subr.bf16.mxu0 0
    %6656 = vmatpush1.bf16.msra.mxu0 %v4529
    %6657 = vmatprep.subr.bf16.mxu0 0
    %6658 = vmatpush1.bf16.msra.mxu0 %v4530
    %6659 = vmatprep.subr.bf16.mxu0 0
    %6660 = vmatpush1.bf16.msra.mxu0 %v4531
    %6661 = vmatprep.subr.bf16.mxu0 0
    %6662 = vmatpush1.bf16.msra.mxu0 %v4532
    %6663 = vmatprep.subr.bf16.mxu0 0
    %6664 = vmatpush1.bf16.msra.mxu0 %v4533
    %6665 = vmatprep.subr.bf16.mxu0 0
    %6666 = vmatpush1.bf16.msra.mxu0 %v4534
    %6667 = vmatprep.subr.bf16.mxu0 0
    %6668 = vmatpush1.bf16.msra.mxu0 %v4535
    %6669 = vmatprep.subr.bf16.mxu0 0
    %6670 = vmatpush1.bf16.msra.mxu0 %v4536
    %6671 = vmatprep.mubr.bf16.mxu0 %v182
    %6672 = vmatmul.mubr.bf16.gmra.mrb[0].mxu0 %v181
    %v6673 = vpop.f32.mrb[0].mxu0
    %v6674 = vadd.f32 %v6634, %v6673
    %v6675 = vpop.f32.mrb[0].mxu0
    %v6676 = vpop.f32.mrb[0].mxu0
    %v6677 = vpop.f32.mrb[0].mxu0
    %6678 = vdwg.mxu0
    %6679 = vmatprep.subr.bf16.mxu0 0
    %6680 = vmatpush1.bf16.msra.mxu0 %v4537
    %6681 = vmatprep.subr.bf16.mxu0 0
    %6682 = vmatpush1.bf16.msra.mxu0 %v4538
    %6683 = vmatprep.subr.bf16.mxu0 0
    %6684 = vmatpush1.bf16.msra.mxu0 %v4539
    %6685 = vmatprep.subr.bf16.mxu0 0
    %6686 = vmatpush1.bf16.msra.mxu0 %v4540
    %6687 = vmatprep.subr.bf16.mxu0 0
    %6688 = vmatpush1.bf16.msra.mxu0 %v4541
    %6689 = vmatprep.subr.bf16.mxu0 0
    %6690 = vmatpush1.bf16.msra.mxu0 %v4542
    %6691 = vmatprep.subr.bf16.mxu0 0
    %6692 = vmatpush1.bf16.msra.mxu0 %v4543
    %6693 = vmatprep.subr.bf16.mxu0 0
    %6694 = vmatpush1.bf16.msra.mxu0 %v4544
    %6695 = vmatprep.subr.bf16.mxu0 0
    %6696 = vmatpush1.bf16.msra.mxu0 %v4545
    %6697 = vmatprep.subr.bf16.mxu0 0
    %6698 = vmatpush1.bf16.msra.mxu0 %v4546
    %6699 = vmatprep.subr.bf16.mxu0 0
    %6700 = vmatpush1.bf16.msra.mxu0 %v4547
    %6701 = vmatprep.subr.bf16.mxu0 0
    %6702 = vmatpush1.bf16.msra.mxu0 %v4548
    %6703 = vmatprep.subr.bf16.mxu0 0
    %6704 = vmatpush1.bf16.msra.mxu0 %v4549
    %6705 = vmatprep.subr.bf16.mxu0 0
    %6706 = vmatpush1.bf16.msra.mxu0 %v4550
    %6707 = vmatprep.subr.bf16.mxu0 0
    %6708 = vmatpush1.bf16.msra.mxu0 %v4551
    %6709 = vmatprep.subr.bf16.mxu0 0
    %6710 = vmatpush1.bf16.msra.mxu0 %v4552
    %6711 = vmatprep.mubr.bf16.mxu0 %v184
    %6712 = vmatmul.mubr.bf16.gmra.mrb[0].mxu0 %v183
    %v6713 = vpop.f32.mrb[0].mxu0
    %v6714 = vadd.f32 %v6674, %v6713
    %v6715 = vpop.f32.mrb[0].mxu0
    %v6716 = vpop.f32.mrb[0].mxu0
    %v6717 = vpop.f32.mrb[0].mxu0
    %6718 = vdwg.mxu0
    %6719 = vmatprep.subr.bf16.mxu0 0
    %6720 = vmatpush1.bf16.msra.mxu0 %v4553
    %6721 = vmatprep.subr.bf16.mxu0 0
    %6722 = vmatpush1.bf16.msra.mxu0 %v4554
    %6723 = vmatprep.subr.bf16.mxu0 0
    %6724 = vmatpush1.bf16.msra.mxu0 %v4555
    %6725 = vmatprep.subr.bf16.mxu0 0
    %6726 = vmatpush1.bf16.msra.mxu0 %v4556
    %6727 = vmatprep.subr.bf16.mxu0 0
    %6728 = vmatpush1.bf16.msra.mxu0 %v4557
    %6729 = vmatprep.subr.bf16.mxu0 0
    %6730 = vmatpush1.bf16.msra.mxu0 %v4558
    %6731 = vmatprep.subr.bf16.mxu0 0
    %6732 = vmatpush1.bf16.msra.mxu0 %v4559
    %6733 = vmatprep.subr.bf16.mxu0 0
    %6734 = vmatpush1.bf16.msra.mxu0 %v4560
    %6735 = vmatprep.subr.bf16.mxu0 0
    %6736 = vmatpush1.bf16.msra.mxu0 %v4561
    %6737 = vmatprep.subr.bf16.mxu0 0
    %6738 = vmatpush1.bf16.msra.mxu0 %v4562
    %6739 = vmatprep.subr.bf16.mxu0 0
    %6740 = vmatpush1.bf16.msra.mxu0 %v4563
    %6741 = vmatprep.subr.bf16.mxu0 0
    %6742 = vmatpush1.bf16.msra.mxu0 %v4564
    %6743 = vmatprep.subr.bf16.mxu0 0
    %6744 = vmatpush1.bf16.msra.mxu0 %v4565
    %6745 = vmatprep.subr.bf16.mxu0 0
    %6746 = vmatpush1.bf16.msra.mxu0 %v4566
    %6747 = vmatprep.subr.bf16.mxu0 0
    %6748 = vmatpush1.bf16.msra.mxu0 %v4567
    %6749 = vmatprep.subr.bf16.mxu0 0
    %6750 = vmatpush1.bf16.msra.mxu0 %v4568
    %6751 = vmatprep.mubr.bf16.mxu0 %v186
    %6752 = vmatmul.mubr.bf16.gmra.mrb[0].mxu0 %v185
    %v6753 = vpop.f32.mrb[0].mxu0
    %v6754 = vadd.f32 %v6714, %v6753
    %v6755 = vpop.f32.mrb[0].mxu0
    %v6756 = vpop.f32.mrb[0].mxu0
    %v6757 = vpop.f32.mrb[0].mxu0
    %6758 = vdwg.mxu0
    %6759 = vmatprep.subr.bf16.mxu0 0
    %6760 = vmatpush1.bf16.msra.mxu0 %v4569
    %6761 = vmatprep.subr.bf16.mxu0 0
    %6762 = vmatpush1.bf16.msra.mxu0 0
    %6763 = vmatprep.subr.bf16.mxu0 0
    %6764 = vmatpush1.bf16.msra.mxu0 0
    %6765 = vmatprep.subr.bf16.mxu0 0
    %6766 = vmatpush1.bf16.msra.mxu0 0
    %6767 = vmatprep.subr.bf16.mxu0 0
    %6768 = vmatpush1.bf16.msra.mxu0 0
    %6769 = vmatprep.subr.bf16.mxu0 0
    %6770 = vmatpush1.bf16.msra.mxu0 0
    %6771 = vmatprep.subr.bf16.mxu0 0
    %6772 = vmatpush1.bf16.msra.mxu0 0
    %6773 = vmatprep.subr.bf16.mxu0 0
    %6774 = vmatpush1.bf16.msra.mxu0 0
    %6775 = vmatprep.subr.bf16.mxu0 0
    %6776 = vmatpush1.bf16.msra.mxu0 0
    %6777 = vmatprep.subr.bf16.mxu0 0
    %6778 = vmatpush1.bf16.msra.mxu0 0
    %6779 = vmatprep.subr.bf16.mxu0 0
    %6780 = vmatpush1.bf16.msra.mxu0 0
    %6781 = vmatprep.subr.bf16.mxu0 0
    %6782 = vmatpush1.bf16.msra.mxu0 0
    %6783 = vmatprep.subr.bf16.mxu0 0
    %6784 = vmatpush1.bf16.msra.mxu0 0
    %6785 = vmatprep.subr.bf16.mxu0 0
    %6786 = vmatpush1.bf16.msra.mxu0 0
    %6787 = vmatprep.subr.bf16.mxu0 0
    %6788 = vmatpush1.bf16.msra.mxu0 0
    %6789 = vmatprep.subr.bf16.mxu0 0
    %6790 = vmatpush1.bf16.msra.mxu0 0
    %6791 = vmatprep.mubr.bf16.mxu0 0
    %6792 = vmatmul.mubr.bf16.gmra.mrb[0].mxu0 %v5197
    %v6793 = vpop.f32.mrb[0].mxu0
    %v6794 = vadd.f32 %v6754, %v6793
    %v6795 = vpop.f32.mrb[0].mxu0
    %v6796 = vpop.f32.mrb[0].mxu0
    %v6797 = vpop.f32.mrb[0].mxu0
    %6798 = vdwg.mxu0
    %v6799 = vmax.f32 %v6794, 0.0
    %v6800 = vld [vmem:[%s3] sm:$0xff]
    %v6801 = vld [vmem:[%s3 + $0x8] sm:$0xff]
    %v6802 = vld [vmem:[%s4] sm:$0x1]
    %v6804 = vlaneseq
    %v6805 = vshrl.u32 %v6804, 7
    %v6806 = vsub.s32 0, %v6805
    %v6807 = vrot.slane %v6802, %v6806
    %v6810 = vsel %vm5195, %v6799, 0
    %6812 = vmatprep.subr.mxu0 0.0
    %6813 = vmatpush1.msra.mxu0 %v6800
    %6814 = vmatprep.subr.mxu0 0.0
    %6815 = vmatpush1.msra.mxu0 %v6801
    %6816 = vmatprep.subr.mxu0 0.0
    %6817 = vmatpush1.msra.mxu0 0.0
    %6818 = vmatprep.subr.mxu0 0.0
    %6819 = vmatpush1.msra.mxu0 0.0
    %6820 = vmatprep.subr.mxu0 0.0
    %6821 = vmatpush1.msra.mxu0 0.0
    %6822 = vmatprep.subr.mxu0 0.0
    %6823 = vmatpush1.msra.mxu0 0.0
    %6824 = vmatprep.subr.mxu0 0.0
    %6825 = vmatpush1.msra.mxu0 0.0
    %6826 = vmatprep.subr.mxu0 0.0
    %6827 = vmatpush1.msra.mxu0 0.0
    %6828 = vmatprep.subr.mxu0 0.0
    %6829 = vmatpush1.msra.mxu0 0.0
    %6830 = vmatprep.subr.mxu0 0.0
    %6831 = vmatpush1.msra.mxu0 0.0
    %6832 = vmatprep.subr.mxu0 0.0
    %6833 = vmatpush1.msra.mxu0 0.0
    %6834 = vmatprep.subr.mxu0 0.0
    %6835 = vmatpush1.msra.mxu0 0.0
    %6836 = vmatprep.subr.mxu0 0.0
    %6837 = vmatpush1.msra.mxu0 0.0
    %6838 = vmatprep.subr.mxu0 0.0
    %6839 = vmatpush1.msra.mxu0 0.0
    %6840 = vmatprep.subr.mxu0 0.0
    %6841 = vmatpush1.msra.mxu0 0.0
    %6842 = vmatprep.subr.mxu0 0.0
    %6843 = vmatpush1.msra.mxu0 0.0
    %6844 = vmatprep.subr.mxu0 0.0
    %6845 = vmatpush1.msra.mxu0 0.0
    %6846 = vmatprep.subr.mxu0 0.0
    %6847 = vmatpush1.msra.mxu0 0.0
    %6848 = vmatprep.subr.mxu0 0.0
    %6849 = vmatpush1.msra.mxu0 0.0
    %6850 = vmatprep.subr.mxu0 0.0
    %6851 = vmatpush1.msra.mxu0 0.0
    %6852 = vmatprep.subr.mxu0 0.0
    %6853 = vmatpush1.msra.mxu0 0.0
    %6854 = vmatprep.subr.mxu0 0.0
    %6855 = vmatpush1.msra.mxu0 0.0
    %6856 = vmatprep.subr.mxu0 0.0
    %6857 = vmatpush1.msra.mxu0 0.0
    %6858 = vmatprep.subr.mxu0 0.0
    %6859 = vmatpush1.msra.mxu0 0.0
    %6860 = vmatprep.subr.mxu0 0.0
    %6861 = vmatpush1.msra.mxu0 0.0
    %6862 = vmatprep.subr.mxu0 0.0
    %6863 = vmatpush1.msra.mxu0 0.0
    %6864 = vmatprep.subr.mxu0 0.0
    %6865 = vmatpush1.msra.mxu0 0.0
    %6866 = vmatprep.subr.mxu0 0.0
    %6867 = vmatpush1.msra.mxu0 0.0
    %6868 = vmatprep.subr.mxu0 0.0
    %6869 = vmatpush1.msra.mxu0 0.0
    %6870 = vmatprep.subr.mxu0 0.0
    %6871 = vmatpush1.msra.mxu0 0.0
    %6872 = vmatprep.subr.mxu0 0.0
    %6873 = vmatpush1.msra.mxu0 0.0
    %6874 = vmatprep.subr.mxu0 0.0
    %6875 = vmatpush1.msra.mxu0 0.0
    %6876 = vmatprep.mubr.f32.mxu0 0.0
    %6877 = vmatmul.mubr.f32.gmra.mrb[0].mxu0 %v6810
    %v6878 = vpop.f32.mrb[0].mxu0
    %v6879 = vadd.f32 %v6807, %v6878
    %v6880 = vpop.f32.mrb[0].mxu0
    %6881 = vdwg.mxu0
    %v6882 = vmax.f32 %v6879, 0.0
    %v6883 = vld [vmem:[%s5] sm:$0x1]
    %v6884 = vld [vmem:[#allocation2] sm:$0x1]
    %6886 = vset.pattern.permute.xlu0 0
    %6887 = vperm.xlu0 %6886, %v6884
    %v6888 = vpop.permute.xlu0 %6887
    %v6890 = vlaneseq
    %v6891 = vshrl.u32 %v6890, 7
    %v6892 = vsub.s32 0, %v6891
    %v6893 = vrot.slane %v6888, %v6892
    %v6895 = vsel %vm5195, %v6883, 0
    %v6898 = vsel %vm5195, %v6882, 0
    %6900 = vmatprep.subr.mxu0 0.0
    %6901 = vmatpush1.xpose.msra.mxu0 %v6898
    %6902 = vmatprep.subr.mxu0 0.0
    %6903 = vmatpush1.xpose.msra.mxu0 0.0
    %6904 = vmatprep.subr.mxu0 0.0
    %6905 = vmatpush1.xpose.msra.mxu0 0.0
    %6906 = vmatprep.subr.mxu0 0.0
    %6907 = vmatpush1.xpose.msra.mxu0 0.0
    %6908 = vmatprep.subr.mxu0 0.0
    %6909 = vmatpush1.xpose.msra.mxu0 0.0
    %6910 = vmatprep.subr.mxu0 0.0
    %6911 = vmatpush1.xpose.msra.mxu0 0.0
    %6912 = vmatprep.subr.mxu0 0.0
    %6913 = vmatpush1.xpose.msra.mxu0 0.0
    %6914 = vmatprep.subr.mxu0 0.0
    %6915 = vmatpush1.xpose.msra.mxu0 0.0
    %6916 = vmatprep.subr.mxu0 0.0
    %6917 = vmatpush1.xpose.msra.mxu0 0.0
    %6918 = vmatprep.subr.mxu0 0.0
    %6919 = vmatpush1.xpose.msra.mxu0 0.0
    %6920 = vmatprep.subr.mxu0 0.0
    %6921 = vmatpush1.xpose.msra.mxu0 0.0
    %6922 = vmatprep.subr.mxu0 0.0
    %6923 = vmatpush1.xpose.msra.mxu0 0.0
    %6924 = vmatprep.subr.mxu0 0.0
    %6925 = vmatpush1.xpose.msra.mxu0 0.0
    %6926 = vmatprep.subr.mxu0 0.0
    %6927 = vmatpush1.xpose.msra.mxu0 0.0
    %6928 = vmatprep.subr.mxu0 0.0
    %6929 = vmatpush1.xpose.msra.mxu0 0.0
    %6930 = vmatprep.subr.mxu0 0.0
    %6931 = vmatpush1.xpose.msra.mxu0 0.0
    %6932 = vmatprep.subr.mxu0 0.0
    %6933 = vmatpush1.xpose.msra.mxu0 0.0
    %6934 = vmatprep.subr.mxu0 0.0
    %6935 = vmatpush1.xpose.msra.mxu0 0.0
    %6936 = vmatprep.subr.mxu0 0.0
    %6937 = vmatpush1.xpose.msra.mxu0 0.0
    %6938 = vmatprep.subr.mxu0 0.0
    %6939 = vmatpush1.xpose.msra.mxu0 0.0
    %6940 = vmatprep.subr.mxu0 0.0
    %6941 = vmatpush1.xpose.msra.mxu0 0.0
    %6942 = vmatprep.subr.mxu0 0.0
    %6943 = vmatpush1.xpose.msra.mxu0 0.0
    %6944 = vmatprep.subr.mxu0 0.0
    %6945 = vmatpush1.xpose.msra.mxu0 0.0
    %6946 = vmatprep.subr.mxu0 0.0
    %6947 = vmatpush1.xpose.msra.mxu0 0.0
    %6948 = vmatprep.subr.mxu0 0.0
    %6949 = vmatpush1.xpose.msra.mxu0 0.0
    %6950 = vmatprep.subr.mxu0 0.0
    %6951 = vmatpush1.xpose.msra.mxu0 0.0
    %6952 = vmatprep.subr.mxu0 0.0
    %6953 = vmatpush1.xpose.msra.mxu0 0.0
    %6954 = vmatprep.subr.mxu0 0.0
    %6955 = vmatpush1.xpose.msra.mxu0 0.0
    %6956 = vmatprep.subr.mxu0 0.0
    %6957 = vmatpush1.xpose.msra.mxu0 0.0
    %6958 = vmatprep.subr.mxu0 0.0
    %6959 = vmatpush1.xpose.msra.mxu0 0.0
    %6960 = vmatprep.subr.mxu0 0.0
    %6961 = vmatpush1.xpose.msra.mxu0 0.0
    %6962 = vmatprep.subr.mxu0 0.0
    %6963 = vmatpush1.xpose.msra.mxu0 0.0
    %6964 = vmatprep.mubr.f32.mxu0 0.0
    %6965 = vmatmul.mubr.f32.gmra.mrb[0].mxu0 %v6895
    %v6966 = vpop.f32.mrb[0].mxu0
    %v6967 = vadd.f32 %v6893, %v6966
    %v6968 = vpop.f32.mrb[0].mxu0
    %6969 = vdwg.mxu0
    %v6970 = vxor.u32 %v6967, 2147483648
    %v6971 = vmul.f32 %v6970, 1.442695
    %v6972 = vpow.pop %v6971
    %v6973 = vadd.f32 %v6972, 1.0
    %v6974 = vrcp.pop %v6973
    %v6975 = vmul.f32 1.0, %v6974
    %vm6976 = vcmask 57344
    %6977 = vst.msk [vmem:[#allocation3] sm:$0x1] %vm6976, %v6975
    // Predicated region
    $region30: #{tpu_custom_call.1} parent=1 // pred_check
      _
    $region31: #{tpu_custom_call.1} parent=1 // pred_check_branch
      %6979 = sbr.rel (0) target = $region33
    $region32: #{tpu_custom_call.1} parent=1 // pred_region
      %s6981 = ssub.s32 16, 16
      %6982 = vsyncadd [#allocation4], %s6981
      %s6984 = sshll.u32 [#allocation3], 4
      %s6985 = int_to_ptr.vmem [resolvable:$true] %s6984
      %6987 = dma.vmem_to_hbm [thread:$0]  %s6985, 16, %s7, [#allocation4]
    $region33: #{tpu_custom_call.1} parent=1 // pred_fallthru
      _
    // Predicated region
    $region34: #{tpu_custom_call.1} parent=1 // pred_check
      _
    $region35: #{tpu_custom_call.1} parent=1 // pred_check_branch
      %6989 = sbr.rel (0) target = $region37
    $region36: #{tpu_custom_call.1} parent=1 // pred_region
      %6990 = dma.done [#allocation4], 16
    $region37: #{tpu_custom_call.1} parent=1 // pred_fallthru
      _
    %6991 = vsyncpa [#allocation4], 1

</llo_original>
